<compile_context>
chip_gen: v6e
topology: v6e:2x2x1
jax: 0.10.0
libtpu: 0.0.40
codegen_flags: <defaults>
</compile_context>

<pallas_src>
import functools
import math

import jax
import jax.numpy as jnp
import numpy as np
from jax import lax
from jax.experimental import pallas as pl
from jax.experimental.pallas import tpu as pltpu

NUM_HEADS = 8
LN_EPS = 1e-12        # BertLayerNorm eps in pytorch_pretrained_bert
NEG_PAD = -10000.0    # key-padding additive mask (matches the reference)
NEG_BLOCK = -1e9      # cross-sequence (block-diagonal) additive mask


# ---------------------------------------------------------------------------
# Elementwise helpers (used both inside the kernel and in the pure-JAX ref)
# ---------------------------------------------------------------------------
def _erf(x):
    # Mosaic has no guaranteed lowering for lax.erf; use the Abramowitz &
    # Stegun 7.1.26 rational approximation (|err| < 1.5e-7) built from
    # exp/mul/add.  Exact division here (only the softmax uses approx recip).
    a1, a2, a3, a4, a5 = 0.254829592, -0.284496736, 1.421413741, -1.453152027, 1.061405429
    p = 0.3275911
    ax = jnp.abs(x)
    t = 1.0 / (1.0 + p * ax)
    poly = ((((a5 * t + a4) * t + a3) * t + a2) * t + a1) * t
    y = 1.0 - poly * jnp.exp(-ax * ax)
    return jnp.where(x >= 0, y, -y)


def _gelu(x):
    # pytorch_pretrained_bert gelu: x * 0.5 * (1 + erf(x / sqrt(2)))
    return 0.5 * x * (1.0 + _erf(x * 0.7071067811865476))


def _layer_norm(x, gamma, beta):
    mu = jnp.mean(x, axis=-1, keepdims=True)
    var = jnp.mean((x - mu) ** 2, axis=-1, keepdims=True)
    return (x - mu) * lax.rsqrt(var + LN_EPS) * gamma + beta


# ---------------------------------------------------------------------------
# Pallas kernel: one full BertLayer for a packed block of nb sequences [nb,S,D]
# ---------------------------------------------------------------------------
def _bert_layer_kernel(x_ref, km_ref, blk_ref,
                       wqkv_ref, bqkv_ref, wo_ref, bo_ref, g1_ref, be1_ref,
                       wi_ref, bi_ref, w2_ref, b2_ref, g2_ref, be2_ref,
                       o_ref, *, num_heads, ffn_tile):
    nb, S, D = x_ref.shape
    M = nb * S
    H = num_heads
    dh = D // H
    recip = lambda v: pl.reciprocal(v, approx=True)    # EUP, off the VALU path

    x_in = x_ref[...].reshape(M, D)
    x2 = x_in.astype(jnp.float32)                      # f32 residual path
    xb = x_in.astype(jnp.bfloat16)                     # single bf16 cast of x

    # Fused QKV projection: one streaming pass of x through the MXU with a
    # 3*D-wide N; 1/sqrt(dh) is already folded into the Q weight columns.
    qkv = jnp.dot(xb, wqkv_ref[...],
                  preferred_element_type=jnp.float32) + bqkv_ref[...]
    qkvb = qkv.astype(jnp.bfloat16)                    # single bf16 cast of q|k|v

    # Combined additive attention mask over the packed block: precomputed
    # block-diagonal bias (-1e9 off-diagonal keeps the nb packed sequences
    # isolated) + per-block key padding mask ({0, -10000}).
    mask2d = blk_ref[...] + km_ref[0]                  # (M, M) + (1, M) -> (M, M)

    # Per-head attention on static dh-wide lane slices of the fused qkv tensor:
    # lane-dense (M, M) scores, no mask multiplies, no redundant full-D score
    # FLOPs.  num_heads is static, so the loop fully unrolls for the scheduler.
    ctx_heads = []
    for h in range(H):
        lo = h * dh
        q_h = qkvb[:, lo:lo + dh]
        k_h = qkvb[:, D + lo:D + lo + dh]
        v_h = qkvb[:, 2 * D + lo:2 * D + lo + dh]
        s = lax.dot_general(q_h, k_h, (((1,), (1,)), ((), ())),
                            preferred_element_type=jnp.float32)   # (M, M)
        s = s + mask2d
        s = s - jnp.max(s, axis=-1, keepdims=True)
        e = jnp.exp(s)
        p = (e * recip(jnp.sum(e, axis=-1, keepdims=True))).astype(jnp.bfloat16)
        ctx_heads.append(jnp.dot(p, v_h, preferred_element_type=jnp.float32))
    ctx = jnp.concatenate(ctx_heads, axis=-1)          # (M, D) f32

    attn = jnp.dot(ctx.astype(jnp.bfloat16), wo_ref[...],
                   preferred_element_type=jnp.float32) + bo_ref[...]
    h1 = _layer_norm(attn + x2, g1_ref[...], be1_ref[...])
    h1b = h1.astype(jnp.bfloat16)

    # FFN tiled over intermediate columns: the full f32 `inter` never
    # materializes; partial w2 products accumulate in f32.
    ffn = wi_ref.shape[1]
    out = jnp.zeros((M, D), jnp.float32)
    for c in range(ffn // ffn_tile):
        cs = c * ffn_tile
        ic = (jnp.dot(h1b, wi_ref[:, cs:cs + ffn_tile],
                      preferred_element_type=jnp.float32)
              + bi_ref[:, cs:cs + ffn_tile])
        out = out + jnp.dot(_gelu(ic).astype(jnp.bfloat16),
                            w2_ref[cs:cs + ffn_tile, :],
                            preferred_element_type=jnp.float32)
    out = out + b2_ref[...]

    y = _layer_norm(out + h1, g2_ref[...], be2_ref[...])
    o_ref[...] = y.reshape(nb, S, D).astype(o_ref.dtype)


def _derive_vmem_limit_bytes(nb, S, D, ffn_tile, weights):
    """Scoped-VMEM budget from the actual footprint (not a hard-coded const)."""
    f32, bf16 = 4, 2
    M = nb * S
    act_block = nb * S * D * f32                       # one (nb, S, D) f32 block
    mask_blocks = M * f32 + M * M * f32                # key mask + block bias
    weight_bytes = sum(int(np.prod(w.shape)) * w.dtype.itemsize for w in weights)
    temps = (M * 3 * D * (f32 + bf16)                  # fused qkv f32 + bf16
             + 3 * M * M * f32                         # mask2d + ~2 live score tensors
             + M * ffn_tile * (f32 + bf16)             # one FFN column chunk
             + 8 * M * D * f32)                        # ctx/h1/out/residual temporaries
    need = 4 * act_block + 2 * mask_blocks + 2 * weight_bytes + temps
    need = int(need * 1.5) + (4 << 20)                 # margin for compiler scratch
    return int(min(max(need, 16 << 20), 48 << 20))


def _layer_call(x, key_mask_blk, block_bias, weights, *, nb, num_heads,
                ffn_tile, out_dtype):
    Np, S, D = x.shape
    G = Np // nb
    M = nb * S

    in_specs = [
        pl.BlockSpec((nb, S, D), lambda i: (i, 0, 0)),   # packed sequence block
        pl.BlockSpec((1, 1, M), lambda i: (i, 0, 0)),    # per-block key mask
        pl.BlockSpec((M, M), lambda i: (0, 0)),          # block-diagonal bias
    ]
    # Grid-invariant weights: full-array blocks with a constant block index
    # (no per-step re-DMA).
    in_specs += [pl.BlockSpec(w.shape, lambda i: (0, 0)) for w in weights]

    return pl.pallas_call(
        functools.partial(_bert_layer_kernel, num_heads=num_heads,
                          ffn_tile=ffn_tile),
        out_shape=jax.ShapeDtypeStruct((Np, S, D), out_dtype),
        grid=(G,),
        in_specs=in_specs,
        out_specs=pl.BlockSpec((nb, S, D), lambda i: (i, 0, 0)),
        compiler_params=pltpu.CompilerParams(
            # Batch axis carries no accumulator -> parallel (v7x dual-TC).
            dimension_semantics=("parallel",),
            vmem_limit_bytes=_derive_vmem_limit_bytes(nb, S, D, ffn_tile, weights),
        ),
    )(x, key_mask_blk, block_bias, *weights)


def bert_layer(x, add_mask, params, *, num_heads=NUM_HEADS, target_rows=512,
               out_dtype=None):
    """x: [N, S, D] f32, add_mask: [N, 1, S] additive ({0,-10000}) -> [N, S, D]."""
    N, S, D = x.shape
    out_dtype = out_dtype or x.dtype
    dh = D // num_heads
    scale = 1.0 / math.sqrt(dh)

    # Pack nb sequences per grid block: aim for M = nb*S >= target_rows rows,
    # but never collapse the grid to a single step when N >= 2 (keeps the
    # BlockSpec DMA/compute pipeline alive and both v7x TensorCores busy).
    nb = max(1, min(N, target_rows // max(S, 1)))
    if nb >= N and N >= 2:
        nb = pl.cdiv(N, 2)
    Np = pl.cdiv(N, nb) * nb
    if Np != N:
        x = jnp.pad(x, ((0, Np - N), (0, 0), (0, 0)))
        # Padded sequences are fully key-masked; their rows are sliced off below.
        add_mask = jnp.pad(add_mask, ((0, Np - N), (0, 0), (0, 0)),
                           constant_values=NEG_PAD)
    G = Np // nb
    M = nb * S
    key_mask_blk = add_mask.astype(jnp.float32).reshape(G, 1, M)

    # Static block-diagonal bias: 0 within a packed sequence, -1e9 across.
    seq_id = jnp.arange(M, dtype=jnp.int32) // S
    block_bias = jnp.where(seq_id[:, None] == seq_id[None, :],
                           0.0, NEG_BLOCK).astype(jnp.float32)

    ffn = params["wi"].shape[1]
    ffn_tile = 1024 if (ffn > 1024 and ffn % 1024 == 0) else ffn

    # Fused QKV weight (1/sqrt(dh) folded into the Q columns; exact for
    # power-of-two head dims).  Matmul weights in bf16, biases/LN params f32.
    wqkv = jnp.concatenate([params["wq"] * scale, params["wk"], params["wv"]],
                           axis=1).astype(jnp.bfloat16)
    bqkv = jnp.concatenate([params["bq"] * scale, params["bk"], params["bv"]],
                           axis=1).astype(jnp.float32)
    weights = (
        wqkv, bqkv,
        params["wo"].astype(jnp.bfloat16), params["bo"],
        params["g1"], params["be1"],
        params["wi"].astype(jnp.bfloat16), params["bi"],
        params["w2"].astype(jnp.bfloat16), params["b2"],
        params["g2"], params["be2"],
    )

    out = _layer_call(x, key_mask_blk, block_bias, weights, nb=nb,
                      num_heads=num_heads, ffn_tile=ffn_tile,
                      out_dtype=out_dtype)
    return out[:N]


# ---------------------------------------------------------------------------
# Pure-JAX reference BertLayer (full f32) for a correctness check
# ---------------------------------------------------------------------------
def bert_layer_ref(x, add_mask, params, *, num_heads=NUM_HEADS):
    N, S, D = x.shape
    dh = D // num_heads

    def lin(inp, w, b):
        return inp @ params[w] + params[b]

    q = lin(x, "wq", "bq").reshape(N, S, num_heads, dh)
    k = lin(x, "wk", "bk").reshape(N, S, num_heads, dh)
    v = lin(x, "wv", "bv").reshape(N, S, num_heads, dh)
    scores = jnp.einsum("nqhd,nkhd->nhqk", q, k) / (dh ** 0.5)
    scores = scores + add_mask[:, None, :, :]
    probs = jax.nn.softmax(scores, axis=-1)
    ctx = jnp.einsum("nhqk,nkhd->nqhd", probs, v).reshape(N, S, D)
    attn_out = ctx @ params["wo"] + params["bo"]
    h1 = _layer_norm(attn_out + x, params["g1"], params["be1"])
    inter = _gelu(h1 @ params["wi"] + params["bi"])
    out = inter @ params["w2"] + params["b2"]
    return _layer_norm(out + h1, params["g2"], params["be2"])


# ---------------------------------------------------------------------------
# Full module forward: chunk gather -> encoder -> scatter back -> encoder2
# ---------------------------------------------------------------------------
def chunk_level_encoder_forward(token_features, chunk_lens, attention_mask,
                                params1, params2, *, max_chunk_number,
                                max_chunk_len, layer_fn=bert_layer):
    B, L, D = token_features.shape
    C, T = max_chunk_number, max_chunk_len
    chunk_lens = chunk_lens.astype(jnp.int32)

    # Chunk start offsets use the FULL (untruncated) lengths, as in the
    # reference's running wordpiece_index.
    starts = jnp.concatenate(
        [jnp.zeros((B, 1), jnp.int32), jnp.cumsum(chunk_lens, axis=1)[:, :-1]], axis=1)
    pos = jnp.arange(T, dtype=jnp.int32)
    tok_idx = starts[:, :, None] + pos[None, None, :]                 # (B, C, T)
    trunc = jnp.minimum(chunk_lens, T)
    valid = pos[None, None, :] < trunc[:, :, None]                    # (B, C, T)

    # Gather token features into chunk slots (feature_for_attention / src_mask).
    gidx = jnp.clip(tok_idx, 0, L - 1)
    gathered = jnp.take_along_axis(
        token_features, gidx.reshape(B, C * T, 1), axis=1).reshape(B, C, T, D)
    feat = jnp.where(valid[..., None], gathered, 0.0)
    src_mask = valid.astype(jnp.float32)
    add_mask1 = ((1.0 - src_mask) * -10000.0).reshape(B * C, 1, T)

    enc1 = layer_fn(feat.reshape(B * C, T, D), add_mask1, params1)
    enc1 = enc1.reshape(B, C, T, D)

    # Scatter adapted chunk features back to token positions
    # (span_adapted_features); untouched positions stay zero.
    scat_idx = jnp.where(valid, tok_idx, L)   # index L => dropped by the scatter
    b_idx = jnp.broadcast_to(jnp.arange(B, dtype=jnp.int32)[:, None, None], (B, C, T))
    span = jnp.zeros((B, L, D), jnp.float32).at[
        b_idx.reshape(-1), scat_idx.reshape(-1)].set(
        enc1.astype(jnp.float32).reshape(-1, D), mode="drop")

    add_mask2 = ((1.0 - attention_mask.astype(jnp.float32)) * -10000.0).reshape(B, 1, L)
    return layer_fn(span, add_mask2, params2)


# ---------------------------------------------------------------------------
# Deterministic synthetic parameters (shapes from BertLayer(hidden, ffn, 8 heads))
# ---------------------------------------------------------------------------
def init_bert_layer_params(key, hidden, intermediate):
    ks = jax.random.split(key, 10)

    def w(k, shape):
        return 0.02 * jax.random.normal(k, shape, jnp.float32)

    return dict(
        wq=w(ks[0], (hidden, hidden)), bq=w(ks[1], (1, hidden)),
        wk=w(ks[2], (hidden, hidden)), bk=w(ks[3], (1, hidden)),
        wv=w(ks[4], (hidden, hidden)), bv=w(ks[5], (1, hidden)),
        wo=w(ks[6], (hidden, hidden)), bo=w(ks[7], (1, hidden)),
        g1=jnp.ones((1, hidden), jnp.float32), be1=jnp.zeros((1, hidden), jnp.float32),
        wi=w(ks[8], (hidden, intermediate)), bi=jnp.zeros((1, intermediate), jnp.float32),
        w2=w(ks[9], (intermediate, hidden)), b2=jnp.zeros((1, hidden), jnp.float32),
        g2=jnp.ones((1, hidden), jnp.float32), be2=jnp.zeros((1, hidden), jnp.float32),
    )


if __name__ == "__main__":
    key = jax.random.PRNGKey(0)
    # Small but lane-dense shapes: hidden multiple of 128 so every vreg/store
    # is fully populated; 8 heads => head dim 16.
    B, L, D, FFN = 2, 16, 128, 256       # batch, max_piece_len, hidden, dim_feedforward
    C, T = 4, 8                           # max_chunk_number, max_chunk_len

    k_feat, k_p1, k_p2 = jax.random.split(key, 3)
    token_level_features = jax.random.normal(k_feat, (B, L, D), jnp.float32)
    # Includes a chunk longer than max_chunk_len (truncation) and an empty chunk.
    chunk_lens = jnp.array([[3, 9, 2, 2], [4, 0, 8, 4]], jnp.int32)
    attention_mask = jnp.array([[1] * 16, [1] * 14 + [0, 0]], jnp.float32)

    params1 = init_bert_layer_params(k_p1, D, FFN)   # self.encoder
    params2 = init_bert_layer_params(k_p2, D, FFN)   # self.encoder2

    out = chunk_level_encoder_forward(
        token_level_features, chunk_lens, attention_mask, params1, params2,
        max_chunk_number=C, max_chunk_len=T, layer_fn=bert_layer)
    out = jax.block_until_ready(out)
    assert out.shape == (B, L, D)

    ref = chunk_level_encoder_forward(
        token_level_features, chunk_lens, attention_mask, params1, params2,
        max_chunk_number=C, max_chunk_len=T, layer_fn=bert_layer_ref)
    # Kernel uses bf16 matmul operands + an approx EUP softmax reciprocal;
    # compare against the full-f32 reference with a bf16-appropriate tolerance.
    np.testing.assert_allclose(np.asarray(out), np.asarray(ref), rtol=2e-2, atol=2e-2)

    print("KERNEL_OK")
</pallas_src>

<mosaic_0001>
module attributes {stable_mosaic.version = 11 : i64} {
  func.func @_bert_layer_kernel(%arg0: i32, %arg1: memref<4x8x128xf32, #tpu.memory_space<vmem>>, %arg2: memref<1x1x32xf32, #tpu.memory_space<vmem>>, %arg3: memref<32x32xf32, #tpu.memory_space<vmem>>, %arg4: memref<128x384xbf16, #tpu.memory_space<vmem>>, %arg5: memref<1x384xf32, #tpu.memory_space<vmem>>, %arg6: memref<128x128xbf16, #tpu.memory_space<vmem>>, %arg7: memref<1x128xf32, #tpu.memory_space<vmem>>, %arg8: memref<1x128xf32, #tpu.memory_space<vmem>>, %arg9: memref<1x128xf32, #tpu.memory_space<vmem>>, %arg10: memref<128x256xbf16, #tpu.memory_space<vmem>>, %arg11: memref<1x256xf32, #tpu.memory_space<vmem>>, %arg12: memref<256x128xbf16, #tpu.memory_space<vmem>>, %arg13: memref<1x128xf32, #tpu.memory_space<vmem>>, %arg14: memref<1x128xf32, #tpu.memory_space<vmem>>, %arg15: memref<1x128xf32, #tpu.memory_space<vmem>>, %arg16: memref<4x8x128xf32, #tpu.memory_space<vmem>>) attributes {dimension_semantics = [#tpu.dimension_semantics<parallel>], iteration_bounds = array<i64: 2>, scalar_prefetch = 0 : i64, scratch_operands = 0 : i64, tpu.core_type = #tpu.core_type<tc>, window_params = [{transform_indices = @transform_0, window_bounds = array<i64: 4, 8, 128>}, {transform_indices = @transform_1, window_bounds = array<i64: 1, 1, 32>}, {pipeline_mode = #tpu.pipeline_mode<synchronous>, transform_indices = @transform_2, window_bounds = array<i64: 32, 32>}, {pipeline_mode = #tpu.pipeline_mode<synchronous>, transform_indices = @transform_3, window_bounds = array<i64: 128, 384>}, {pipeline_mode = #tpu.pipeline_mode<synchronous>, transform_indices = @transform_4, window_bounds = array<i64: 1, 384>}, {pipeline_mode = #tpu.pipeline_mode<synchronous>, transform_indices = @transform_5, window_bounds = array<i64: 128, 128>}, {pipeline_mode = #tpu.pipeline_mode<synchronous>, transform_indices = @transform_6, window_bounds = array<i64: 1, 128>}, {pipeline_mode = #tpu.pipeline_mode<synchronous>, transform_indices = @transform_7, window_bounds = array<i64: 1, 128>}, {pipeline_mode = #tpu.pipeline_mode<synchronous>, transform_indices = @transform_8, window_bounds = array<i64: 1, 128>}, {pipeline_mode = #tpu.pipeline_mode<synchronous>, transform_indices = @transform_9, window_bounds = array<i64: 128, 256>}, {pipeline_mode = #tpu.pipeline_mode<synchronous>, transform_indices = @transform_10, window_bounds = array<i64: 1, 256>}, {pipeline_mode = #tpu.pipeline_mode<synchronous>, transform_indices = @transform_11, window_bounds = array<i64: 256, 128>}, {pipeline_mode = #tpu.pipeline_mode<synchronous>, transform_indices = @transform_12, window_bounds = array<i64: 1, 128>}, {pipeline_mode = #tpu.pipeline_mode<synchronous>, transform_indices = @transform_13, window_bounds = array<i64: 1, 128>}, {pipeline_mode = #tpu.pipeline_mode<synchronous>, transform_indices = @transform_14, window_bounds = array<i64: 1, 128>}, {transform_indices = @transform_15, window_bounds = array<i64: 4, 8, 128>}]} {
    %c0 = arith.constant 0 : index
    %c0_0 = arith.constant 0 : index
    %c0_1 = arith.constant 0 : index
    %0 = vector.load %arg1[%c0, %c0_0, %c0_1] : memref<4x8x128xf32, #tpu.memory_space<vmem>>, vector<4x8x128xf32>
    %1 = vector.shape_cast %0 : vector<4x8x128xf32> to vector<32x128xf32>
    %2 = arith.truncf %1 : vector<32x128xf32> to vector<32x128xbf16>
    %c0_2 = arith.constant 0 : index
    %c0_3 = arith.constant 0 : index
    %3 = vector.load %arg4[%c0_2, %c0_3] : memref<128x384xbf16, #tpu.memory_space<vmem>>, vector<128x384xbf16>
    %cst = arith.constant dense<0.000000e+00> : vector<32x384xf32>
    %4 = tpu.matmul %2, %3, %cst {dimension_numbers = #tpu.dot_dimension_numbers<[1], [0], [0], [1], [0, 0, 1, 1], [], []>} : vector<32x128xbf16>, vector<128x384xbf16>, vector<32x384xf32> -> vector<32x384xf32>
    %c0_4 = arith.constant 0 : index
    %c0_5 = arith.constant 0 : index
    %5 = vector.load %arg5[%c0_4, %c0_5] : memref<1x384xf32, #tpu.memory_space<vmem>>, vector<1x384xf32>
    %6 = vector.broadcast %5 : vector<1x384xf32> to vector<32x384xf32>
    %7 = arith.addf %4, %6 : vector<32x384xf32>
    %8 = arith.truncf %7 : vector<32x384xf32> to vector<32x384xbf16>
    %c0_6 = arith.constant 0 : index
    %c0_7 = arith.constant 0 : index
    %9 = vector.load %arg3[%c0_6, %c0_7] : memref<32x32xf32, #tpu.memory_space<vmem>>, vector<32x32xf32>
    %c0_8 = arith.constant 0 : index
    %c0_9 = arith.constant 0 : index
    %c0_10 = arith.constant 0 : index
    %10 = vector.load %arg2[%c0_8, %c0_9, %c0_10] : memref<1x1x32xf32, #tpu.memory_space<vmem>>, vector<1x1x32xf32>
    %11 = vector.shape_cast %10 : vector<1x1x32xf32> to vector<1x32xf32>
    %12 = vector.broadcast %11 : vector<1x32xf32> to vector<32x32xf32>
    %13 = arith.addf %9, %12 : vector<32x32xf32>
    %14 = vector.extract_strided_slice %8 {offsets = [0, 0], sizes = [32, 16], strides = [1, 1]} : vector<32x384xbf16> to vector<32x16xbf16>
    %15 = vector.extract_strided_slice %8 {offsets = [0, 128], sizes = [32, 16], strides = [1, 1]} : vector<32x384xbf16> to vector<32x16xbf16>
    %16 = vector.extract_strided_slice %8 {offsets = [0, 256], sizes = [32, 16], strides = [1, 1]} : vector<32x384xbf16> to vector<32x16xbf16>
    %cst_11 = arith.constant dense<0.000000e+00> : vector<32x32xf32>
    %17 = tpu.matmul %14, %15, %cst_11 {dimension_numbers = #tpu.dot_dimension_numbers<[1], [1], [0], [0], [0, 0, 1, 0], [], []>} : vector<32x16xbf16>, vector<32x16xbf16>, vector<32x32xf32> -> vector<32x32xf32>
    %18 = arith.addf %17, %13 : vector<32x32xf32>
    %cst_12 = arith.constant dense<0xFF800000> : vector<32xf32>
    %19 = vector.multi_reduction <maximumf>, %18, %cst_12 [1] : vector<32x32xf32> to vector<32xf32>
    %20 = vector.shape_cast %19 : vector<32xf32> to vector<32x1xf32>
    %21 = vector.broadcast %20 : vector<32x1xf32> to vector<32x32xf32>
    %22 = arith.subf %18, %21 : vector<32x32xf32>
    %23 = math.exp %22 : vector<32x32xf32>
    %cst_13 = arith.constant dense<0.000000e+00> : vector<32xf32>
    %24 = vector.multi_reduction <add>, %23, %cst_13 [1] : vector<32x32xf32> to vector<32xf32>
    %25 = vector.shape_cast %24 : vector<32xf32> to vector<32x1xf32>
    %26 = tpu.reciprocal %25 {approx = true} : vector<32x1xf32> -> vector<32x1xf32>
    %27 = vector.broadcast %26 : vector<32x1xf32> to vector<32x32xf32>
    %28 = arith.mulf %23, %27 : vector<32x32xf32>
    %29 = arith.truncf %28 : vector<32x32xf32> to vector<32x32xbf16>
    %cst_14 = arith.constant dense<0.000000e+00> : vector<32x16xf32>
    %30 = tpu.matmul %29, %16, %cst_14 {dimension_numbers = #tpu.dot_dimension_numbers<[1], [0], [0], [1], [0, 0, 1, 1], [], []>} : vector<32x32xbf16>, vector<32x16xbf16>, vector<32x16xf32> -> vector<32x16xf32>
    %31 = vector.extract_strided_slice %8 {offsets = [0, 16], sizes = [32, 16], strides = [1, 1]} : vector<32x384xbf16> to vector<32x16xbf16>
    %32 = vector.extract_strided_slice %8 {offsets = [0, 144], sizes = [32, 16], strides = [1, 1]} : vector<32x384xbf16> to vector<32x16xbf16>
    %33 = vector.extract_strided_slice %8 {offsets = [0, 272], sizes = [32, 16], strides = [1, 1]} : vector<32x384xbf16> to vector<32x16xbf16>
    %cst_15 = arith.constant dense<0.000000e+00> : vector<32x32xf32>
    %34 = tpu.matmul %31, %32, %cst_15 {dimension_numbers = #tpu.dot_dimension_numbers<[1], [1], [0], [0], [0, 0, 1, 0], [], []>} : vector<32x16xbf16>, vector<32x16xbf16>, vector<32x32xf32> -> vector<32x32xf32>
    %35 = arith.addf %34, %13 : vector<32x32xf32>
    %cst_16 = arith.constant dense<0xFF800000> : vector<32xf32>
    %36 = vector.multi_reduction <maximumf>, %35, %cst_16 [1] : vector<32x32xf32> to vector<32xf32>
    %37 = vector.shape_cast %36 : vector<32xf32> to vector<32x1xf32>
    %38 = vector.broadcast %37 : vector<32x1xf32> to vector<32x32xf32>
    %39 = arith.subf %35, %38 : vector<32x32xf32>
    %40 = math.exp %39 : vector<32x32xf32>
    %cst_17 = arith.constant dense<0.000000e+00> : vector<32xf32>
    %41 = vector.multi_reduction <add>, %40, %cst_17 [1] : vector<32x32xf32> to vector<32xf32>
    %42 = vector.shape_cast %41 : vector<32xf32> to vector<32x1xf32>
    %43 = tpu.reciprocal %42 {approx = true} : vector<32x1xf32> -> vector<32x1xf32>
    %44 = vector.broadcast %43 : vector<32x1xf32> to vector<32x32xf32>
    %45 = arith.mulf %40, %44 : vector<32x32xf32>
    %46 = arith.truncf %45 : vector<32x32xf32> to vector<32x32xbf16>
    %cst_18 = arith.constant dense<0.000000e+00> : vector<32x16xf32>
    %47 = tpu.matmul %46, %33, %cst_18 {dimension_numbers = #tpu.dot_dimension_numbers<[1], [0], [0], [1], [0, 0, 1, 1], [], []>} : vector<32x32xbf16>, vector<32x16xbf16>, vector<32x16xf32> -> vector<32x16xf32>
    %48 = vector.extract_strided_slice %8 {offsets = [0, 32], sizes = [32, 16], strides = [1, 1]} : vector<32x384xbf16> to vector<32x16xbf16>
    %49 = vector.extract_strided_slice %8 {offsets = [0, 160], sizes = [32, 16], strides = [1, 1]} : vector<32x384xbf16> to vector<32x16xbf16>
    %50 = vector.extract_strided_slice %8 {offsets = [0, 288], sizes = [32, 16], strides = [1, 1]} : vector<32x384xbf16> to vector<32x16xbf16>
    %cst_19 = arith.constant dense<0.000000e+00> : vector<32x32xf32>
    %51 = tpu.matmul %48, %49, %cst_19 {dimension_numbers = #tpu.dot_dimension_numbers<[1], [1], [0], [0], [0, 0, 1, 0], [], []>} : vector<32x16xbf16>, vector<32x16xbf16>, vector<32x32xf32> -> vector<32x32xf32>
    %52 = arith.addf %51, %13 : vector<32x32xf32>
    %cst_20 = arith.constant dense<0xFF800000> : vector<32xf32>
    %53 = vector.multi_reduction <maximumf>, %52, %cst_20 [1] : vector<32x32xf32> to vector<32xf32>
    %54 = vector.shape_cast %53 : vector<32xf32> to vector<32x1xf32>
    %55 = vector.broadcast %54 : vector<32x1xf32> to vector<32x32xf32>
    %56 = arith.subf %52, %55 : vector<32x32xf32>
    %57 = math.exp %56 : vector<32x32xf32>
    %cst_21 = arith.constant dense<0.000000e+00> : vector<32xf32>
    %58 = vector.multi_reduction <add>, %57, %cst_21 [1] : vector<32x32xf32> to vector<32xf32>
    %59 = vector.shape_cast %58 : vector<32xf32> to vector<32x1xf32>
    %60 = tpu.reciprocal %59 {approx = true} : vector<32x1xf32> -> vector<32x1xf32>
    %61 = vector.broadcast %60 : vector<32x1xf32> to vector<32x32xf32>
    %62 = arith.mulf %57, %61 : vector<32x32xf32>
    %63 = arith.truncf %62 : vector<32x32xf32> to vector<32x32xbf16>
    %cst_22 = arith.constant dense<0.000000e+00> : vector<32x16xf32>
    %64 = tpu.matmul %63, %50, %cst_22 {dimension_numbers = #tpu.dot_dimension_numbers<[1], [0], [0], [1], [0, 0, 1, 1], [], []>} : vector<32x32xbf16>, vector<32x16xbf16>, vector<32x16xf32> -> vector<32x16xf32>
    %65 = vector.extract_strided_slice %8 {offsets = [0, 48], sizes = [32, 16], strides = [1, 1]} : vector<32x384xbf16> to vector<32x16xbf16>
    %66 = vector.extract_strided_slice %8 {offsets = [0, 176], sizes = [32, 16], strides = [1, 1]} : vector<32x384xbf16> to vector<32x16xbf16>
    %67 = vector.extract_strided_slice %8 {offsets = [0, 304], sizes = [32, 16], strides = [1, 1]} : vector<32x384xbf16> to vector<32x16xbf16>
    %cst_23 = arith.constant dense<0.000000e+00> : vector<32x32xf32>
    %68 = tpu.matmul %65, %66, %cst_23 {dimension_numbers = #tpu.dot_dimension_numbers<[1], [1], [0], [0], [0, 0, 1, 0], [], []>} : vector<32x16xbf16>, vector<32x16xbf16>, vector<32x32xf32> -> vector<32x32xf32>
    %69 = arith.addf %68, %13 : vector<32x32xf32>
    %cst_24 = arith.constant dense<0xFF800000> : vector<32xf32>
    %70 = vector.multi_reduction <maximumf>, %69, %cst_24 [1] : vector<32x32xf32> to vector<32xf32>
    %71 = vector.shape_cast %70 : vector<32xf32> to vector<32x1xf32>
    %72 = vector.broadcast %71 : vector<32x1xf32> to vector<32x32xf32>
    %73 = arith.subf %69, %72 : vector<32x32xf32>
    %74 = math.exp %73 : vector<32x32xf32>
    %cst_25 = arith.constant dense<0.000000e+00> : vector<32xf32>
    %75 = vector.multi_reduction <add>, %74, %cst_25 [1] : vector<32x32xf32> to vector<32xf32>
    %76 = vector.shape_cast %75 : vector<32xf32> to vector<32x1xf32>
    %77 = tpu.reciprocal %76 {approx = true} : vector<32x1xf32> -> vector<32x1xf32>
    %78 = vector.broadcast %77 : vector<32x1xf32> to vector<32x32xf32>
    %79 = arith.mulf %74, %78 : vector<32x32xf32>
    %80 = arith.truncf %79 : vector<32x32xf32> to vector<32x32xbf16>
    %cst_26 = arith.constant dense<0.000000e+00> : vector<32x16xf32>
    %81 = tpu.matmul %80, %67, %cst_26 {dimension_numbers = #tpu.dot_dimension_numbers<[1], [0], [0], [1], [0, 0, 1, 1], [], []>} : vector<32x32xbf16>, vector<32x16xbf16>, vector<32x16xf32> -> vector<32x16xf32>
    %82 = vector.extract_strided_slice %8 {offsets = [0, 64], sizes = [32, 16], strides = [1, 1]} : vector<32x384xbf16> to vector<32x16xbf16>
    %83 = vector.extract_strided_slice %8 {offsets = [0, 192], sizes = [32, 16], strides = [1, 1]} : vector<32x384xbf16> to vector<32x16xbf16>
    %84 = vector.extract_strided_slice %8 {offsets = [0, 320], sizes = [32, 16], strides = [1, 1]} : vector<32x384xbf16> to vector<32x16xbf16>
    %cst_27 = arith.constant dense<0.000000e+00> : vector<32x32xf32>
    %85 = tpu.matmul %82, %83, %cst_27 {dimension_numbers = #tpu.dot_dimension_numbers<[1], [1], [0], [0], [0, 0, 1, 0], [], []>} : vector<32x16xbf16>, vector<32x16xbf16>, vector<32x32xf32> -> vector<32x32xf32>
    %86 = arith.addf %85, %13 : vector<32x32xf32>
    %cst_28 = arith.constant dense<0xFF800000> : vector<32xf32>
    %87 = vector.multi_reduction <maximumf>, %86, %cst_28 [1] : vector<32x32xf32> to vector<32xf32>
    %88 = vector.shape_cast %87 : vector<32xf32> to vector<32x1xf32>
    %89 = vector.broadcast %88 : vector<32x1xf32> to vector<32x32xf32>
    %90 = arith.subf %86, %89 : vector<32x32xf32>
    %91 = math.exp %90 : vector<32x32xf32>
    %cst_29 = arith.constant dense<0.000000e+00> : vector<32xf32>
    %92 = vector.multi_reduction <add>, %91, %cst_29 [1] : vector<32x32xf32> to vector<32xf32>
    %93 = vector.shape_cast %92 : vector<32xf32> to vector<32x1xf32>
    %94 = tpu.reciprocal %93 {approx = true} : vector<32x1xf32> -> vector<32x1xf32>
    %95 = vector.broadcast %94 : vector<32x1xf32> to vector<32x32xf32>
    %96 = arith.mulf %91, %95 : vector<32x32xf32>
    %97 = arith.truncf %96 : vector<32x32xf32> to vector<32x32xbf16>
    %cst_30 = arith.constant dense<0.000000e+00> : vector<32x16xf32>
    %98 = tpu.matmul %97, %84, %cst_30 {dimension_numbers = #tpu.dot_dimension_numbers<[1], [0], [0], [1], [0, 0, 1, 1], [], []>} : vector<32x32xbf16>, vector<32x16xbf16>, vector<32x16xf32> -> vector<32x16xf32>
    %99 = vector.extract_strided_slice %8 {offsets = [0, 80], sizes = [32, 16], strides = [1, 1]} : vector<32x384xbf16> to vector<32x16xbf16>
    %100 = vector.extract_strided_slice %8 {offsets = [0, 208], sizes = [32, 16], strides = [1, 1]} : vector<32x384xbf16> to vector<32x16xbf16>
    %101 = vector.extract_strided_slice %8 {offsets = [0, 336], sizes = [32, 16], strides = [1, 1]} : vector<32x384xbf16> to vector<32x16xbf16>
    %cst_31 = arith.constant dense<0.000000e+00> : vector<32x32xf32>
    %102 = tpu.matmul %99, %100, %cst_31 {dimension_numbers = #tpu.dot_dimension_numbers<[1], [1], [0], [0], [0, 0, 1, 0], [], []>} : vector<32x16xbf16>, vector<32x16xbf16>, vector<32x32xf32> -> vector<32x32xf32>
    %103 = arith.addf %102, %13 : vector<32x32xf32>
    %cst_32 = arith.constant dense<0xFF800000> : vector<32xf32>
    %104 = vector.multi_reduction <maximumf>, %103, %cst_32 [1] : vector<32x32xf32> to vector<32xf32>
    %105 = vector.shape_cast %104 : vector<32xf32> to vector<32x1xf32>
    %106 = vector.broadcast %105 : vector<32x1xf32> to vector<32x32xf32>
    %107 = arith.subf %103, %106 : vector<32x32xf32>
    %108 = math.exp %107 : vector<32x32xf32>
    %cst_33 = arith.constant dense<0.000000e+00> : vector<32xf32>
    %109 = vector.multi_reduction <add>, %108, %cst_33 [1] : vector<32x32xf32> to vector<32xf32>
    %110 = vector.shape_cast %109 : vector<32xf32> to vector<32x1xf32>
    %111 = tpu.reciprocal %110 {approx = true} : vector<32x1xf32> -> vector<32x1xf32>
    %112 = vector.broadcast %111 : vector<32x1xf32> to vector<32x32xf32>
    %113 = arith.mulf %108, %112 : vector<32x32xf32>
    %114 = arith.truncf %113 : vector<32x32xf32> to vector<32x32xbf16>
    %cst_34 = arith.constant dense<0.000000e+00> : vector<32x16xf32>
    %115 = tpu.matmul %114, %101, %cst_34 {dimension_numbers = #tpu.dot_dimension_numbers<[1], [0], [0], [1], [0, 0, 1, 1], [], []>} : vector<32x32xbf16>, vector<32x16xbf16>, vector<32x16xf32> -> vector<32x16xf32>
    %116 = vector.extract_strided_slice %8 {offsets = [0, 96], sizes = [32, 16], strides = [1, 1]} : vector<32x384xbf16> to vector<32x16xbf16>
    %117 = vector.extract_strided_slice %8 {offsets = [0, 224], sizes = [32, 16], strides = [1, 1]} : vector<32x384xbf16> to vector<32x16xbf16>
    %118 = vector.extract_strided_slice %8 {offsets = [0, 352], sizes = [32, 16], strides = [1, 1]} : vector<32x384xbf16> to vector<32x16xbf16>
    %cst_35 = arith.constant dense<0.000000e+00> : vector<32x32xf32>
    %119 = tpu.matmul %116, %117, %cst_35 {dimension_numbers = #tpu.dot_dimension_numbers<[1], [1], [0], [0], [0, 0, 1, 0], [], []>} : vector<32x16xbf16>, vector<32x16xbf16>, vector<32x32xf32> -> vector<32x32xf32>
    %120 = arith.addf %119, %13 : vector<32x32xf32>
    %cst_36 = arith.constant dense<0xFF800000> : vector<32xf32>
    %121 = vector.multi_reduction <maximumf>, %120, %cst_36 [1] : vector<32x32xf32> to vector<32xf32>
    %122 = vector.shape_cast %121 : vector<32xf32> to vector<32x1xf32>
    %123 = vector.broadcast %122 : vector<32x1xf32> to vector<32x32xf32>
    %124 = arith.subf %120, %123 : vector<32x32xf32>
    %125 = math.exp %124 : vector<32x32xf32>
    %cst_37 = arith.constant dense<0.000000e+00> : vector<32xf32>
    %126 = vector.multi_reduction <add>, %125, %cst_37 [1] : vector<32x32xf32> to vector<32xf32>
    %127 = vector.shape_cast %126 : vector<32xf32> to vector<32x1xf32>
    %128 = tpu.reciprocal %127 {approx = true} : vector<32x1xf32> -> vector<32x1xf32>
    %129 = vector.broadcast %128 : vector<32x1xf32> to vector<32x32xf32>
    %130 = arith.mulf %125, %129 : vector<32x32xf32>
    %131 = arith.truncf %130 : vector<32x32xf32> to vector<32x32xbf16>
    %cst_38 = arith.constant dense<0.000000e+00> : vector<32x16xf32>
    %132 = tpu.matmul %131, %118, %cst_38 {dimension_numbers = #tpu.dot_dimension_numbers<[1], [0], [0], [1], [0, 0, 1, 1], [], []>} : vector<32x32xbf16>, vector<32x16xbf16>, vector<32x16xf32> -> vector<32x16xf32>
    %133 = vector.extract_strided_slice %8 {offsets = [0, 112], sizes = [32, 16], strides = [1, 1]} : vector<32x384xbf16> to vector<32x16xbf16>
    %134 = vector.extract_strided_slice %8 {offsets = [0, 240], sizes = [32, 16], strides = [1, 1]} : vector<32x384xbf16> to vector<32x16xbf16>
    %135 = vector.extract_strided_slice %8 {offsets = [0, 368], sizes = [32, 16], strides = [1, 1]} : vector<32x384xbf16> to vector<32x16xbf16>
    %cst_39 = arith.constant dense<0.000000e+00> : vector<32x32xf32>
    %136 = tpu.matmul %133, %134, %cst_39 {dimension_numbers = #tpu.dot_dimension_numbers<[1], [1], [0], [0], [0, 0, 1, 0], [], []>} : vector<32x16xbf16>, vector<32x16xbf16>, vector<32x32xf32> -> vector<32x32xf32>
    %137 = arith.addf %136, %13 : vector<32x32xf32>
    %cst_40 = arith.constant dense<0xFF800000> : vector<32xf32>
    %138 = vector.multi_reduction <maximumf>, %137, %cst_40 [1] : vector<32x32xf32> to vector<32xf32>
    %139 = vector.shape_cast %138 : vector<32xf32> to vector<32x1xf32>
    %140 = vector.broadcast %139 : vector<32x1xf32> to vector<32x32xf32>
    %141 = arith.subf %137, %140 : vector<32x32xf32>
    %142 = math.exp %141 : vector<32x32xf32>
    %cst_41 = arith.constant dense<0.000000e+00> : vector<32xf32>
    %143 = vector.multi_reduction <add>, %142, %cst_41 [1] : vector<32x32xf32> to vector<32xf32>
    %144 = vector.shape_cast %143 : vector<32xf32> to vector<32x1xf32>
    %145 = tpu.reciprocal %144 {approx = true} : vector<32x1xf32> -> vector<32x1xf32>
    %146 = vector.broadcast %145 : vector<32x1xf32> to vector<32x32xf32>
    %147 = arith.mulf %142, %146 : vector<32x32xf32>
    %148 = arith.truncf %147 : vector<32x32xf32> to vector<32x32xbf16>
    %cst_42 = arith.constant dense<0.000000e+00> : vector<32x16xf32>
    %149 = tpu.matmul %148, %135, %cst_42 {dimension_numbers = #tpu.dot_dimension_numbers<[1], [0], [0], [1], [0, 0, 1, 1], [], []>} : vector<32x32xbf16>, vector<32x16xbf16>, vector<32x16xf32> -> vector<32x16xf32>
    %150 = tpu.concatenate %30, %47, %64, %81, %98, %115, %132, %149 in 1 : vector<32x16xf32>, vector<32x16xf32>, vector<32x16xf32>, vector<32x16xf32>, vector<32x16xf32>, vector<32x16xf32>, vector<32x16xf32>, vector<32x16xf32> -> vector<32x128xf32>
    %151 = arith.truncf %150 : vector<32x128xf32> to vector<32x128xbf16>
    %c0_43 = arith.constant 0 : index
    %c0_44 = arith.constant 0 : index
    %152 = vector.load %arg6[%c0_43, %c0_44] : memref<128x128xbf16, #tpu.memory_space<vmem>>, vector<128x128xbf16>
    %cst_45 = arith.constant dense<0.000000e+00> : vector<32x128xf32>
    %153 = tpu.matmul %151, %152, %cst_45 {dimension_numbers = #tpu.dot_dimension_numbers<[1], [0], [0], [1], [0, 0, 1, 1], [], []>} : vector<32x128xbf16>, vector<128x128xbf16>, vector<32x128xf32> -> vector<32x128xf32>
    %c0_46 = arith.constant 0 : index
    %c0_47 = arith.constant 0 : index
    %154 = vector.load %arg7[%c0_46, %c0_47] : memref<1x128xf32, #tpu.memory_space<vmem>>, vector<1x128xf32>
    %155 = vector.broadcast %154 : vector<1x128xf32> to vector<32x128xf32>
    %156 = arith.addf %153, %155 : vector<32x128xf32>
    %157 = arith.addf %156, %1 : vector<32x128xf32>
    %c0_48 = arith.constant 0 : index
    %c0_49 = arith.constant 0 : index
    %158 = vector.load %arg8[%c0_48, %c0_49] : memref<1x128xf32, #tpu.memory_space<vmem>>, vector<1x128xf32>
    %c0_50 = arith.constant 0 : index
    %c0_51 = arith.constant 0 : index
    %159 = vector.load %arg9[%c0_50, %c0_51] : memref<1x128xf32, #tpu.memory_space<vmem>>, vector<1x128xf32>
    %cst_52 = arith.constant dense<0.000000e+00> : vector<32xf32>
    %160 = vector.multi_reduction <add>, %157, %cst_52 [1] : vector<32x128xf32> to vector<32xf32>
    %161 = vector.shape_cast %160 : vector<32xf32> to vector<32x1xf32>
    %cst_53 = arith.constant 1.280000e+02 : f32
    %162 = vector.broadcast %cst_53 : f32 to vector<32x1xf32>
    %163 = arith.divf %161, %162 : vector<32x1xf32>
    %164 = vector.broadcast %163 : vector<32x1xf32> to vector<32x128xf32>
    %165 = arith.subf %157, %164 : vector<32x128xf32>
    %166 = arith.mulf %165, %165 : vector<32x128xf32>
    %cst_54 = arith.constant dense<0.000000e+00> : vector<32xf32>
    %167 = vector.multi_reduction <add>, %166, %cst_54 [1] : vector<32x128xf32> to vector<32xf32>
    %168 = vector.shape_cast %167 : vector<32xf32> to vector<32x1xf32>
    %cst_55 = arith.constant 1.280000e+02 : f32
    %169 = vector.broadcast %cst_55 : f32 to vector<32x1xf32>
    %170 = arith.divf %168, %169 : vector<32x1xf32>
    %171 = vector.broadcast %163 : vector<32x1xf32> to vector<32x128xf32>
    %172 = arith.subf %157, %171 : vector<32x128xf32>
    %cst_56 = arith.constant 9.99999996E-13 : f32
    %173 = vector.broadcast %cst_56 : f32 to vector<32x1xf32>
    %174 = arith.addf %170, %173 : vector<32x1xf32>
    %175 = math.rsqrt %174 : vector<32x1xf32>
    %176 = vector.broadcast %175 : vector<32x1xf32> to vector<32x128xf32>
    %177 = arith.mulf %172, %176 : vector<32x128xf32>
    %178 = vector.broadcast %158 : vector<1x128xf32> to vector<32x128xf32>
    %179 = arith.mulf %177, %178 : vector<32x128xf32>
    %180 = vector.broadcast %159 : vector<1x128xf32> to vector<32x128xf32>
    %181 = arith.addf %179, %180 : vector<32x128xf32>
    %182 = arith.truncf %181 : vector<32x128xf32> to vector<32x128xbf16>
    %cst_57 = arith.constant 0.000000e+00 : f32
    %183 = vector.broadcast %cst_57 : f32 to vector<32x128xf32>
    %c0_58 = arith.constant 0 : index
    %c0_59 = arith.constant 0 : index
    %184 = vector.load %arg10[%c0_58, %c0_59] : memref<128x256xbf16, #tpu.memory_space<vmem>>, vector<128x256xbf16>
    %cst_60 = arith.constant dense<0.000000e+00> : vector<32x256xf32>
    %185 = tpu.matmul %182, %184, %cst_60 {dimension_numbers = #tpu.dot_dimension_numbers<[1], [0], [0], [1], [0, 0, 1, 1], [], []>} : vector<32x128xbf16>, vector<128x256xbf16>, vector<32x256xf32> -> vector<32x256xf32>
    %c0_61 = arith.constant 0 : index
    %c0_62 = arith.constant 0 : index
    %186 = vector.load %arg11[%c0_61, %c0_62] : memref<1x256xf32, #tpu.memory_space<vmem>>, vector<1x256xf32>
    %187 = vector.broadcast %186 : vector<1x256xf32> to vector<32x256xf32>
    %188 = arith.addf %185, %187 : vector<32x256xf32>
    %cst_63 = arith.constant 5.000000e-01 : f32
    %189 = vector.broadcast %cst_63 : f32 to vector<32x256xf32>
    %190 = arith.mulf %189, %188 : vector<32x256xf32>
    %cst_64 = arith.constant 0.707106769 : f32
    %191 = vector.broadcast %cst_64 : f32 to vector<32x256xf32>
    %192 = arith.mulf %188, %191 : vector<32x256xf32>
    %193 = math.absf %192 : vector<32x256xf32>
    %cst_65 = arith.constant 0.327591091 : f32
    %194 = vector.broadcast %cst_65 : f32 to vector<32x256xf32>
    %195 = arith.mulf %194, %193 : vector<32x256xf32>
    %cst_66 = arith.constant 1.000000e+00 : f32
    %196 = vector.broadcast %cst_66 : f32 to vector<32x256xf32>
    %197 = arith.addf %196, %195 : vector<32x256xf32>
    %cst_67 = arith.constant 1.000000e+00 : f32
    %198 = vector.broadcast %cst_67 : f32 to vector<32x256xf32>
    %199 = arith.divf %198, %197 : vector<32x256xf32>
    %cst_68 = arith.constant 1.06140542 : f32
    %200 = vector.broadcast %cst_68 : f32 to vector<32x256xf32>
    %201 = arith.mulf %200, %199 : vector<32x256xf32>
    %cst_69 = arith.constant -1.45315206 : f32
    %202 = vector.broadcast %cst_69 : f32 to vector<32x256xf32>
    %203 = arith.addf %201, %202 : vector<32x256xf32>
    %204 = arith.mulf %203, %199 : vector<32x256xf32>
    %cst_70 = arith.constant 1.42141378 : f32
    %205 = vector.broadcast %cst_70 : f32 to vector<32x256xf32>
    %206 = arith.addf %204, %205 : vector<32x256xf32>
    %207 = arith.mulf %206, %199 : vector<32x256xf32>
    %cst_71 = arith.constant -0.284496725 : f32
    %208 = vector.broadcast %cst_71 : f32 to vector<32x256xf32>
    %209 = arith.addf %207, %208 : vector<32x256xf32>
    %210 = arith.mulf %209, %199 : vector<32x256xf32>
    %cst_72 = arith.constant 0.254829586 : f32
    %211 = vector.broadcast %cst_72 : f32 to vector<32x256xf32>
    %212 = arith.addf %210, %211 : vector<32x256xf32>
    %213 = arith.mulf %212, %199 : vector<32x256xf32>
    %cst_73 = arith.constant 0.000000e+00 : f32
    %214 = vector.broadcast %cst_73 : f32 to vector<32x256xf32>
    %215 = arith.subf %214, %193 : vector<32x256xf32>
    %216 = arith.mulf %215, %193 : vector<32x256xf32>
    %217 = math.exp %216 : vector<32x256xf32>
    %218 = arith.mulf %213, %217 : vector<32x256xf32>
    %cst_74 = arith.constant 1.000000e+00 : f32
    %219 = vector.broadcast %cst_74 : f32 to vector<32x256xf32>
    %220 = arith.subf %219, %218 : vector<32x256xf32>
    %cst_75 = arith.constant 0.000000e+00 : f32
    %221 = vector.broadcast %cst_75 : f32 to vector<32x256xf32>
    %222 = arith.cmpf oge, %192, %221 : vector<32x256xf32>
    %cst_76 = arith.constant 0.000000e+00 : f32
    %223 = vector.broadcast %cst_76 : f32 to vector<32x256xf32>
    %224 = arith.subf %223, %220 : vector<32x256xf32>
    %225 = arith.select %222, %220, %224 : vector<32x256xi1>, vector<32x256xf32>
    %cst_77 = arith.constant 1.000000e+00 : f32
    %226 = vector.broadcast %cst_77 : f32 to vector<32x256xf32>
    %227 = arith.addf %226, %225 : vector<32x256xf32>
    %228 = arith.mulf %190, %227 : vector<32x256xf32>
    %229 = arith.truncf %228 : vector<32x256xf32> to vector<32x256xbf16>
    %c0_78 = arith.constant 0 : index
    %c0_79 = arith.constant 0 : index
    %230 = vector.load %arg12[%c0_78, %c0_79] : memref<256x128xbf16, #tpu.memory_space<vmem>>, vector<256x128xbf16>
    %cst_80 = arith.constant dense<0.000000e+00> : vector<32x128xf32>
    %231 = tpu.matmul %229, %230, %cst_80 {dimension_numbers = #tpu.dot_dimension_numbers<[1], [0], [0], [1], [0, 0, 1, 1], [], []>} : vector<32x256xbf16>, vector<256x128xbf16>, vector<32x128xf32> -> vector<32x128xf32>
    %232 = arith.addf %183, %231 : vector<32x128xf32>
    %c0_81 = arith.constant 0 : index
    %c0_82 = arith.constant 0 : index
    %233 = vector.load %arg13[%c0_81, %c0_82] : memref<1x128xf32, #tpu.memory_space<vmem>>, vector<1x128xf32>
    %234 = vector.broadcast %233 : vector<1x128xf32> to vector<32x128xf32>
    %235 = arith.addf %232, %234 : vector<32x128xf32>
    %236 = arith.addf %235, %181 : vector<32x128xf32>
    %c0_83 = arith.constant 0 : index
    %c0_84 = arith.constant 0 : index
    %237 = vector.load %arg14[%c0_83, %c0_84] : memref<1x128xf32, #tpu.memory_space<vmem>>, vector<1x128xf32>
    %c0_85 = arith.constant 0 : index
    %c0_86 = arith.constant 0 : index
    %238 = vector.load %arg15[%c0_85, %c0_86] : memref<1x128xf32, #tpu.memory_space<vmem>>, vector<1x128xf32>
    %cst_87 = arith.constant dense<0.000000e+00> : vector<32xf32>
    %239 = vector.multi_reduction <add>, %236, %cst_87 [1] : vector<32x128xf32> to vector<32xf32>
    %240 = vector.shape_cast %239 : vector<32xf32> to vector<32x1xf32>
    %cst_88 = arith.constant 1.280000e+02 : f32
    %241 = vector.broadcast %cst_88 : f32 to vector<32x1xf32>
    %242 = arith.divf %240, %241 : vector<32x1xf32>
    %243 = vector.broadcast %242 : vector<32x1xf32> to vector<32x128xf32>
    %244 = arith.subf %236, %243 : vector<32x128xf32>
    %245 = arith.mulf %244, %244 : vector<32x128xf32>
    %cst_89 = arith.constant dense<0.000000e+00> : vector<32xf32>
    %246 = vector.multi_reduction <add>, %245, %cst_89 [1] : vector<32x128xf32> to vector<32xf32>
    %247 = vector.shape_cast %246 : vector<32xf32> to vector<32x1xf32>
    %cst_90 = arith.constant 1.280000e+02 : f32
    %248 = vector.broadcast %cst_90 : f32 to vector<32x1xf32>
    %249 = arith.divf %247, %248 : vector<32x1xf32>
    %250 = vector.broadcast %242 : vector<32x1xf32> to vector<32x128xf32>
    %251 = arith.subf %236, %250 : vector<32x128xf32>
    %cst_91 = arith.constant 9.99999996E-13 : f32
    %252 = vector.broadcast %cst_91 : f32 to vector<32x1xf32>
    %253 = arith.addf %249, %252 : vector<32x1xf32>
    %254 = math.rsqrt %253 : vector<32x1xf32>
    %255 = vector.broadcast %254 : vector<32x1xf32> to vector<32x128xf32>
    %256 = arith.mulf %251, %255 : vector<32x128xf32>
    %257 = vector.broadcast %237 : vector<1x128xf32> to vector<32x128xf32>
    %258 = arith.mulf %256, %257 : vector<32x128xf32>
    %259 = vector.broadcast %238 : vector<1x128xf32> to vector<32x128xf32>
    %260 = arith.addf %258, %259 : vector<32x128xf32>
    %261 = vector.shape_cast %260 : vector<32x128xf32> to vector<4x8x128xf32>
    %c0_92 = arith.constant 0 : index
    %c0_93 = arith.constant 0 : index
    %c0_94 = arith.constant 0 : index
    %262 = vector.load %arg16[%c0_92, %c0_93, %c0_94] : memref<4x8x128xf32, #tpu.memory_space<vmem>>, vector<4x8x128xf32>
    tpu.vector_store %arg16[%c0_92, %c0_93, %c0_94], %261 {strides = array<i32>} : memref<4x8x128xf32, #tpu.memory_space<vmem>>, vector<4x8x128xf32>,
    return
  }
  func.func @transform_0(%arg0: i32) -> (i32, i32, i32) {
    %c0_i32 = arith.constant 0 : i32
    %c0_i32_0 = arith.constant 0 : i32
    %c0_i32_1 = arith.constant 0 : i32
    return %arg0, %c0_i32, %c0_i32_0 : i32, i32, i32
  }
  func.func @transform_1(%arg0: i32) -> (i32, i32, i32) {
    %c0_i32 = arith.constant 0 : i32
    %c0_i32_0 = arith.constant 0 : i32
    %c0_i32_1 = arith.constant 0 : i32
    return %arg0, %c0_i32, %c0_i32_0 : i32, i32, i32
  }
  func.func @transform_2(%arg0: i32) -> (i32, i32) {
    %c0_i32 = arith.constant 0 : i32
    %c0_i32_0 = arith.constant 0 : i32
    %c0_i32_1 = arith.constant 0 : i32
    return %c0_i32, %c0_i32_0 : i32, i32
  }
  func.func @transform_3(%arg0: i32) -> (i32, i32) {
    %c0_i32 = arith.constant 0 : i32
    %c0_i32_0 = arith.constant 0 : i32
    %c0_i32_1 = arith.constant 0 : i32
    return %c0_i32, %c0_i32_0 : i32, i32
  }
  func.func @transform_4(%arg0: i32) -> (i32, i32) {
    %c0_i32 = arith.constant 0 : i32
    %c0_i32_0 = arith.constant 0 : i32
    %c0_i32_1 = arith.constant 0 : i32
    return %c0_i32, %c0_i32_0 : i32, i32
  }
  func.func @transform_5(%arg0: i32) -> (i32, i32) {
    %c0_i32 = arith.constant 0 : i32
    %c0_i32_0 = arith.constant 0 : i32
    %c0_i32_1 = arith.constant 0 : i32
    return %c0_i32, %c0_i32_0 : i32, i32
  }
  func.func @transform_6(%arg0: i32) -> (i32, i32) {
    %c0_i32 = arith.constant 0 : i32
    %c0_i32_0 = arith.constant 0 : i32
    %c0_i32_1 = arith.constant 0 : i32
    return %c0_i32, %c0_i32_0 : i32, i32
  }
  func.func @transform_7(%arg0: i32) -> (i32, i32) {
    %c0_i32 = arith.constant 0 : i32
    %c0_i32_0 = arith.constant 0 : i32
    %c0_i32_1 = arith.constant 0 : i32
    return %c0_i32, %c0_i32_0 : i32, i32
  }
  func.func @transform_8(%arg0: i32) -> (i32, i32) {
    %c0_i32 = arith.constant 0 : i32
    %c0_i32_0 = arith.constant 0 : i32
    %c0_i32_1 = arith.constant 0 : i32
    return %c0_i32, %c0_i32_0 : i32, i32
  }
  func.func @transform_9(%arg0: i32) -> (i32, i32) {
    %c0_i32 = arith.constant 0 : i32
    %c0_i32_0 = arith.constant 0 : i32
    %c0_i32_1 = arith.constant 0 : i32
    return %c0_i32, %c0_i32_0 : i32, i32
  }
  func.func @transform_10(%arg0: i32) -> (i32, i32) {
    %c0_i32 = arith.constant 0 : i32
    %c0_i32_0 = arith.constant 0 : i32
    %c0_i32_1 = arith.constant 0 : i32
    return %c0_i32, %c0_i32_0 : i32, i32
  }
  func.func @transform_11(%arg0: i32) -> (i32, i32) {
    %c0_i32 = arith.constant 0 : i32
    %c0_i32_0 = arith.constant 0 : i32
    %c0_i32_1 = arith.constant 0 : i32
    return %c0_i32, %c0_i32_0 : i32, i32
  }
  func.func @transform_12(%arg0: i32) -> (i32, i32) {
    %c0_i32 = arith.constant 0 : i32
    %c0_i32_0 = arith.constant 0 : i32
    %c0_i32_1 = arith.constant 0 : i32
    return %c0_i32, %c0_i32_0 : i32, i32
  }
  func.func @transform_13(%arg0: i32) -> (i32, i32) {
    %c0_i32 = arith.constant 0 : i32
    %c0_i32_0 = arith.constant 0 : i32
    %c0_i32_1 = arith.constant 0 : i32
    return %c0_i32, %c0_i32_0 : i32, i32
  }
  func.func @transform_14(%arg0: i32) -> (i32, i32) {
    %c0_i32 = arith.constant 0 : i32
    %c0_i32_0 = arith.constant 0 : i32
    %c0_i32_1 = arith.constant 0 : i32
    return %c0_i32, %c0_i32_0 : i32, i32
  }
  func.func @transform_15(%arg0: i32) -> (i32, i32, i32) {
    %c0_i32 = arith.constant 0 : i32
    %c0_i32_0 = arith.constant 0 : i32
    %c0_i32_1 = arith.constant 0 : i32
    return %arg0, %c0_i32, %c0_i32_0 : i32, i32, i32
  }
}

</mosaic_0001>

<llo_original>
// kernel: tpu_custom_call.1
$region0: #{tpu_custom_call.1}
  #allocation0 [shape = 'u32[]', space=smem, size = 0x4, offset = 0x4, fixed_abs, tag = 'smem constant byte address 0x4 - core index']
  #allocation1 [shape = 'u32[144,128]{1,0:T(1,128)}', space=vmem, size = 0x12000, scoped, tag = 'internal scratch']
  %s0 = inlined_call_operand.hbm [shape: f32[8,8,128], index: 0, kind: input, shape index: {}]
  %s1 = inlined_call_operand.hbm [shape: f32[2,1,32], index: 1, kind: input, shape index: {}]
  %s2 = inlined_call_operand.hbm [shape: f32[32,32], index: 2, kind: input, shape index: {}]
  %s3 = inlined_call_operand.hbm [shape: bf16[128,384], index: 3, kind: input, shape index: {}]
  %s4 = inlined_call_operand.vmem [shape: f32[1,384], index: 4, kind: input, shape index: {}]
  %s5 = inlined_call_operand.hbm [shape: bf16[128,128], index: 5, kind: input, shape index: {}]
  %s6 = inlined_call_operand.vmem [shape: f32[1,128], index: 6, kind: input, shape index: {}]
  %s7 = inlined_call_operand.vmem [shape: f32[1,128], index: 7, kind: input, shape index: {}]
  %s8 = inlined_call_operand.vmem [shape: f32[1,128], index: 8, kind: input, shape index: {}]
  %s9 = inlined_call_operand.hbm [shape: bf16[128,256], index: 9, kind: input, shape index: {}]
  %s10 = inlined_call_operand.vmem [shape: f32[1,256], index: 10, kind: input, shape index: {}]
  %s11 = inlined_call_operand.hbm [shape: bf16[256,128], index: 11, kind: input, shape index: {}]
  %s12 = inlined_call_operand.vmem [shape: f32[1,128], index: 12, kind: input, shape index: {}]
  %s13 = inlined_call_operand.vmem [shape: f32[1,128], index: 13, kind: input, shape index: {}]
  %s14 = inlined_call_operand.vmem [shape: f32[1,128], index: 14, kind: input, shape index: {}]
  %s15 = inlined_call_operand.hbm [shape: f32[8,8,128], index: 15, kind: output, shape index: {}]
  %s16 = sld [smem:[#allocation0]]
  $region121: #{tpu_custom_call.1} parent=0
    _
  %s18 = ssub.s32 1, %s16
  %s19 = scalar_select 0, %s18, %s16
  $region1: #{tpu_custom_call.1} parent=0
    #allocation2 [shape = 'u8[32768]{0}', space=vmem, size = 0x8000, scoped, tag = 'input window, operand 0']
    #allocation3 [shape = 's32[2]{0}', space=sflag, size = 0x8, scoped, tag = 'scoped memory for tpu_custom_call.1']
    #allocation4 [shape = 's32[2]{0}', space=sflag, size = 0x8, scoped, tag = 'scoped memory for tpu_custom_call.1']
    #allocation5 [shape = 'u8[1024]{0}', space=vmem, size = 0x400, scoped, tag = 'input window, operand 1']
    #allocation6 [shape = 's32[2]{0}', space=sflag, size = 0x8, scoped, tag = 'scoped memory for tpu_custom_call.1']
    #allocation7 [shape = 'u8[16384]{0}', space=vmem, size = 0x4000, scoped, tag = 'input window, operand 2, single buffered']
    #allocation8 [shape = 'u8[98304]{0}', space=vmem, size = 0x18000, scoped, tag = 'input window, operand 3, single buffered']
    #allocation9 [shape = 's32[1]{0}', space=sflag, size = 0x4, scoped, tag = 'scoped memory for tpu_custom_call.1']
    #allocation10 [shape = 'u8[32768]{0}', space=vmem, size = 0x8000, scoped, tag = 'input window, operand 5, single buffered']
    #allocation11 [shape = 'u8[65536]{0}', space=vmem, size = 0x10000, scoped, tag = 'input window, operand 9, single buffered']
    #allocation12 [shape = 's32[1]{0}', space=sflag, size = 0x4, scoped, tag = 'scoped memory for tpu_custom_call.1']
    #allocation13 [shape = 'u8[65536]{0}', space=vmem, size = 0x10000, scoped, tag = 'input window, operand 11, single buffered']
    #allocation14 [shape = 'u8[32768]{0}', space=vmem, size = 0x8000, scoped, tag = 'output window, operand 0']
    %20 = vsyncpa [#allocation3], 0
    %s21 = scalar_lea.sflag [#allocation3], 1
    %22 = vsyncpa %s21, 0
    %23 = vsyncpa [#allocation6], 0
    %s24 = scalar_lea.sflag [#allocation6], 1
    %25 = vsyncpa %s24, 0
    %26 = vsyncpa [#allocation9], 0
    %27 = vsyncpa [#allocation12], 0
    %28 = vsyncpa [#allocation4], 0
    %s29 = scalar_lea.sflag [#allocation4], 1
    %30 = vsyncpa %s29, 0
    loop: start=0, step=1, limit=4
    $region2: #{tpu_custom_call.1} parent=1 // loop_pre_header
      _
    $region3: #{tpu_custom_call.1} parent=1 // loop_header
      %s32 = sphi 0, %s36
      %p33 = scmp.ge.s32.totalorder %s32, 4
      %s42 = sphi 0, %s44
      %s45 = sphi 0, %s42
      %s46 = sphi 0, %s45
      %s62 = sphi 0, %s46
      %s68 = sphi 0, %s70
      %s71 = sphi 0, %s68
      %s72 = sphi 0, %s71
      %s88 = sphi 0, %s72
      %s92 = sphi 0, %s92
      %s94 = sphi 0, %s92
      %s95 = sphi 0, %s94
      %s109 = sphi 0, %s95
      %s113 = sphi 0, %s113
      %s115 = sphi 0, %s113
      %s116 = sphi 0, %s115
      %s130 = sphi 0, %s116
      %s134 = sphi 0, %s134
      %s136 = sphi 0, %s134
      %s137 = sphi 0, %s136
      %s151 = sphi 0, %s137
      %s155 = sphi 0, %s155
      %s157 = sphi 0, %s155
      %s158 = sphi 0, %s157
      %s172 = sphi 0, %s158
      %s176 = sphi 0, %s176
      %s178 = sphi 0, %s176
      %s179 = sphi 0, %s178
      %s193 = sphi 0, %s179
      %s197 = sphi 0, %s197
      %s199 = sphi 0, %s197
      %s200 = sphi 0, %s199
      %s214 = sphi 0, %s200
      %s218 = sphi 0, %s218
      %s220 = sphi 0, %s218
      %s221 = sphi 0, %s220
      %s235 = sphi 0, %s221
      %s239 = sphi 0, %s239
      %s241 = sphi 0, %s239
      %s242 = sphi 0, %s241
      %s256 = sphi 0, %s242
      %s260 = sphi 0, %s260
      %s262 = sphi 0, %s260
      %s263 = sphi 0, %s262
      %s277 = sphi 0, %s263
      %s281 = sphi 0, %s281
      %s283 = sphi 0, %s281
      %s284 = sphi 0, %s283
      %s298 = sphi 0, %s284
      %s302 = sphi 0, %s302
      %s304 = sphi 0, %s302
      %s305 = sphi 0, %s304
      %s319 = sphi 0, %s305
      %s323 = sphi 0, %s323
      %s325 = sphi 0, %s323
      %s326 = sphi 0, %s325
      %s340 = sphi 0, %s326
      %s344 = sphi 0, %s344
      %s346 = sphi 0, %s344
      %s347 = sphi 0, %s346
      %s361 = sphi 0, %s347
      %s367 = sphi 0, %s369
      %s370 = sphi 0, %s367
      %s371 = sphi 0, %s370
      %s387 = sphi 0, %s371
    $region4: #{tpu_custom_call.1} parent=1 // loop_header_branch
      %35 = sbr.rel (%p33) target = $region8
    $region5: #{tpu_custom_call.1} parent=1 // loop_body
      %s37 = ssub.s32 %s32, 1
      %s38 = ssub.s32 %s32, 2
      %s39 = sadd.s32 %s32, 1
      %s40 = ssub.s32 %s32, %s39
      %p41 = scmp.eq.s32.totalorder %s40, 0
      %s43 = sadd.s32 %s42, 1
      %s44 = scalar_select %p41, %s42, %s43
      %p47 = pneg %p41
      %p48 = scmp.eq.s32.totalorder %s32, 1
      %p49 = por %p47, %p48
      %p50 = scmp.ne.s32.totalorder %s42, %s45
      %p51 = scmp.eq.s32.totalorder %s32, 0
      %p52 = por %p50, %p51
      %p53 = scmp.ne.s32.totalorder %s42, %s45
      %p54 = scmp.eq.s32.totalorder %s37, 1
      %p55 = por %p53, %p54
      %p56 = scmp.ne.s32.totalorder %s45, %s46
      %p57 = scmp.eq.s32.totalorder %s37, 0
      %p58 = por %p56, %p57
      %p59 = scmp.ne.s32.totalorder %s45, %s46
      %p60 = scmp.eq.s32.totalorder %s38, 1
      %p61 = por %p59, %p60
      %p63 = scmp.ne.s32.totalorder %s46, %s62
      %p64 = scmp.eq.s32.totalorder %s38, 0
      %p65 = por %p63, %p64
      %s66 = ssub.s32 %s32, %s39
      %p67 = scmp.eq.s32.totalorder %s66, 0
      %s69 = sadd.s32 %s68, 1
      %s70 = scalar_select %p67, %s68, %s69
      %p73 = pneg %p67
      %p74 = scmp.eq.s32.totalorder %s32, 1
      %p75 = por %p73, %p74
      %p76 = scmp.ne.s32.totalorder %s68, %s71
      %p77 = scmp.eq.s32.totalorder %s32, 0
      %p78 = por %p76, %p77
      %p79 = scmp.ne.s32.totalorder %s68, %s71
      %p80 = scmp.eq.s32.totalorder %s37, 1
      %p81 = por %p79, %p80
      %p82 = scmp.ne.s32.totalorder %s71, %s72
      %p83 = scmp.eq.s32.totalorder %s37, 0
      %p84 = por %p82, %p83
      %p85 = scmp.ne.s32.totalorder %s71, %s72
      %p86 = scmp.eq.s32.totalorder %s38, 1
      %p87 = por %p85, %p86
      %p89 = scmp.ne.s32.totalorder %s72, %s88
      %p90 = scmp.eq.s32.totalorder %s38, 0
      %p91 = por %p89, %p90
      %s93 = sadd.s32 %s92, 1
      %p96 = scmp.eq.s32.totalorder %s32, 1
      %p97 = scmp.ne.s32.totalorder %s92, %s94
      %p98 = scmp.eq.s32.totalorder %s32, 0
      %p99 = por %p97, %p98
      %p100 = scmp.ne.s32.totalorder %s92, %s94
      %p101 = scmp.eq.s32.totalorder %s37, 1
      %p102 = por %p100, %p101
      %p103 = scmp.ne.s32.totalorder %s94, %s95
      %p104 = scmp.eq.s32.totalorder %s37, 0
      %p105 = por %p103, %p104
      %p106 = scmp.ne.s32.totalorder %s94, %s95
      %p107 = scmp.eq.s32.totalorder %s38, 1
      %p108 = por %p106, %p107
      %p110 = scmp.ne.s32.totalorder %s95, %s109
      %p111 = scmp.eq.s32.totalorder %s38, 0
      %p112 = por %p110, %p111
      %s114 = sadd.s32 %s113, 1
      %p117 = scmp.eq.s32.totalorder %s32, 1
      %p118 = scmp.ne.s32.totalorder %s113, %s115
      %p119 = scmp.eq.s32.totalorder %s32, 0
      %p120 = por %p118, %p119
      %p121 = scmp.ne.s32.totalorder %s113, %s115
      %p122 = scmp.eq.s32.totalorder %s37, 1
      %p123 = por %p121, %p122
      %p124 = scmp.ne.s32.totalorder %s115, %s116
      %p125 = scmp.eq.s32.totalorder %s37, 0
      %p126 = por %p124, %p125
      %p127 = scmp.ne.s32.totalorder %s115, %s116
      %p128 = scmp.eq.s32.totalorder %s38, 1
      %p129 = por %p127, %p128
      %p131 = scmp.ne.s32.totalorder %s116, %s130
      %p132 = scmp.eq.s32.totalorder %s38, 0
      %p133 = por %p131, %p132
      %s135 = sadd.s32 %s134, 1
      %p138 = scmp.eq.s32.totalorder %s32, 1
      %p139 = scmp.ne.s32.totalorder %s134, %s136
      %p140 = scmp.eq.s32.totalorder %s32, 0
      %p141 = por %p139, %p140
      %p142 = scmp.ne.s32.totalorder %s134, %s136
      %p143 = scmp.eq.s32.totalorder %s37, 1
      %p144 = por %p142, %p143
      %p145 = scmp.ne.s32.totalorder %s136, %s137
      %p146 = scmp.eq.s32.totalorder %s37, 0
      %p147 = por %p145, %p146
      %p148 = scmp.ne.s32.totalorder %s136, %s137
      %p149 = scmp.eq.s32.totalorder %s38, 1
      %p150 = por %p148, %p149
      %p152 = scmp.ne.s32.totalorder %s137, %s151
      %p153 = scmp.eq.s32.totalorder %s38, 0
      %p154 = por %p152, %p153
      %s156 = sadd.s32 %s155, 1
      %p159 = scmp.eq.s32.totalorder %s32, 1
      %p160 = scmp.ne.s32.totalorder %s155, %s157
      %p161 = scmp.eq.s32.totalorder %s32, 0
      %p162 = por %p160, %p161
      %p163 = scmp.ne.s32.totalorder %s155, %s157
      %p164 = scmp.eq.s32.totalorder %s37, 1
      %p165 = por %p163, %p164
      %p166 = scmp.ne.s32.totalorder %s157, %s158
      %p167 = scmp.eq.s32.totalorder %s37, 0
      %p168 = por %p166, %p167
      %p169 = scmp.ne.s32.totalorder %s157, %s158
      %p170 = scmp.eq.s32.totalorder %s38, 1
      %p171 = por %p169, %p170
      %p173 = scmp.ne.s32.totalorder %s158, %s172
      %p174 = scmp.eq.s32.totalorder %s38, 0
      %p175 = por %p173, %p174
      %s177 = sadd.s32 %s176, 1
      %p180 = scmp.eq.s32.totalorder %s32, 1
      %p181 = scmp.ne.s32.totalorder %s176, %s178
      %p182 = scmp.eq.s32.totalorder %s32, 0
      %p183 = por %p181, %p182
      %p184 = scmp.ne.s32.totalorder %s176, %s178
      %p185 = scmp.eq.s32.totalorder %s37, 1
      %p186 = por %p184, %p185
      %p187 = scmp.ne.s32.totalorder %s178, %s179
      %p188 = scmp.eq.s32.totalorder %s37, 0
      %p189 = por %p187, %p188
      %p190 = scmp.ne.s32.totalorder %s178, %s179
      %p191 = scmp.eq.s32.totalorder %s38, 1
      %p192 = por %p190, %p191
      %p194 = scmp.ne.s32.totalorder %s179, %s193
      %p195 = scmp.eq.s32.totalorder %s38, 0
      %p196 = por %p194, %p195
      %s198 = sadd.s32 %s197, 1
      %p201 = scmp.eq.s32.totalorder %s32, 1
      %p202 = scmp.ne.s32.totalorder %s197, %s199
      %p203 = scmp.eq.s32.totalorder %s32, 0
      %p204 = por %p202, %p203
      %p205 = scmp.ne.s32.totalorder %s197, %s199
      %p206 = scmp.eq.s32.totalorder %s37, 1
      %p207 = por %p205, %p206
      %p208 = scmp.ne.s32.totalorder %s199, %s200
      %p209 = scmp.eq.s32.totalorder %s37, 0
      %p210 = por %p208, %p209
      %p211 = scmp.ne.s32.totalorder %s199, %s200
      %p212 = scmp.eq.s32.totalorder %s38, 1
      %p213 = por %p211, %p212
      %p215 = scmp.ne.s32.totalorder %s200, %s214
      %p216 = scmp.eq.s32.totalorder %s38, 0
      %p217 = por %p215, %p216
      %s219 = sadd.s32 %s218, 1
      %p222 = scmp.eq.s32.totalorder %s32, 1
      %p223 = scmp.ne.s32.totalorder %s218, %s220
      %p224 = scmp.eq.s32.totalorder %s32, 0
      %p225 = por %p223, %p224
      %p226 = scmp.ne.s32.totalorder %s218, %s220
      %p227 = scmp.eq.s32.totalorder %s37, 1
      %p228 = por %p226, %p227
      %p229 = scmp.ne.s32.totalorder %s220, %s221
      %p230 = scmp.eq.s32.totalorder %s37, 0
      %p231 = por %p229, %p230
      %p232 = scmp.ne.s32.totalorder %s220, %s221
      %p233 = scmp.eq.s32.totalorder %s38, 1
      %p234 = por %p232, %p233
      %p236 = scmp.ne.s32.totalorder %s221, %s235
      %p237 = scmp.eq.s32.totalorder %s38, 0
      %p238 = por %p236, %p237
      %s240 = sadd.s32 %s239, 1
      %p243 = scmp.eq.s32.totalorder %s32, 1
      %p244 = scmp.ne.s32.totalorder %s239, %s241
      %p245 = scmp.eq.s32.totalorder %s32, 0
      %p246 = por %p244, %p245
      %p247 = scmp.ne.s32.totalorder %s239, %s241
      %p248 = scmp.eq.s32.totalorder %s37, 1
      %p249 = por %p247, %p248
      %p250 = scmp.ne.s32.totalorder %s241, %s242
      %p251 = scmp.eq.s32.totalorder %s37, 0
      %p252 = por %p250, %p251
      %p253 = scmp.ne.s32.totalorder %s241, %s242
      %p254 = scmp.eq.s32.totalorder %s38, 1
      %p255 = por %p253, %p254
      %p257 = scmp.ne.s32.totalorder %s242, %s256
      %p258 = scmp.eq.s32.totalorder %s38, 0
      %p259 = por %p257, %p258
      %s261 = sadd.s32 %s260, 1
      %p264 = scmp.eq.s32.totalorder %s32, 1
      %p265 = scmp.ne.s32.totalorder %s260, %s262
      %p266 = scmp.eq.s32.totalorder %s32, 0
      %p267 = por %p265, %p266
      %p268 = scmp.ne.s32.totalorder %s260, %s262
      %p269 = scmp.eq.s32.totalorder %s37, 1
      %p270 = por %p268, %p269
      %p271 = scmp.ne.s32.totalorder %s262, %s263
      %p272 = scmp.eq.s32.totalorder %s37, 0
      %p273 = por %p271, %p272
      %p274 = scmp.ne.s32.totalorder %s262, %s263
      %p275 = scmp.eq.s32.totalorder %s38, 1
      %p276 = por %p274, %p275
      %p278 = scmp.ne.s32.totalorder %s263, %s277
      %p279 = scmp.eq.s32.totalorder %s38, 0
      %p280 = por %p278, %p279
      %s282 = sadd.s32 %s281, 1
      %p285 = scmp.eq.s32.totalorder %s32, 1
      %p286 = scmp.ne.s32.totalorder %s281, %s283
      %p287 = scmp.eq.s32.totalorder %s32, 0
      %p288 = por %p286, %p287
      %p289 = scmp.ne.s32.totalorder %s281, %s283
      %p290 = scmp.eq.s32.totalorder %s37, 1
      %p291 = por %p289, %p290
      %p292 = scmp.ne.s32.totalorder %s283, %s284
      %p293 = scmp.eq.s32.totalorder %s37, 0
      %p294 = por %p292, %p293
      %p295 = scmp.ne.s32.totalorder %s283, %s284
      %p296 = scmp.eq.s32.totalorder %s38, 1
      %p297 = por %p295, %p296
      %p299 = scmp.ne.s32.totalorder %s284, %s298
      %p300 = scmp.eq.s32.totalorder %s38, 0
      %p301 = por %p299, %p300
      %s303 = sadd.s32 %s302, 1
      %p306 = scmp.eq.s32.totalorder %s32, 1
      %p307 = scmp.ne.s32.totalorder %s302, %s304
      %p308 = scmp.eq.s32.totalorder %s32, 0
      %p309 = por %p307, %p308
      %p310 = scmp.ne.s32.totalorder %s302, %s304
      %p311 = scmp.eq.s32.totalorder %s37, 1
      %p312 = por %p310, %p311
      %p313 = scmp.ne.s32.totalorder %s304, %s305
      %p314 = scmp.eq.s32.totalorder %s37, 0
      %p315 = por %p313, %p314
      %p316 = scmp.ne.s32.totalorder %s304, %s305
      %p317 = scmp.eq.s32.totalorder %s38, 1
      %p318 = por %p316, %p317
      %p320 = scmp.ne.s32.totalorder %s305, %s319
      %p321 = scmp.eq.s32.totalorder %s38, 0
      %p322 = por %p320, %p321
      %s324 = sadd.s32 %s323, 1
      %p327 = scmp.eq.s32.totalorder %s32, 1
      %p328 = scmp.ne.s32.totalorder %s323, %s325
      %p329 = scmp.eq.s32.totalorder %s32, 0
      %p330 = por %p328, %p329
      %p331 = scmp.ne.s32.totalorder %s323, %s325
      %p332 = scmp.eq.s32.totalorder %s37, 1
      %p333 = por %p331, %p332
      %p334 = scmp.ne.s32.totalorder %s325, %s326
      %p335 = scmp.eq.s32.totalorder %s37, 0
      %p336 = por %p334, %p335
      %p337 = scmp.ne.s32.totalorder %s325, %s326
      %p338 = scmp.eq.s32.totalorder %s38, 1
      %p339 = por %p337, %p338
      %p341 = scmp.ne.s32.totalorder %s326, %s340
      %p342 = scmp.eq.s32.totalorder %s38, 0
      %p343 = por %p341, %p342
      %s345 = sadd.s32 %s344, 1
      %p348 = scmp.eq.s32.totalorder %s32, 1
      %p349 = scmp.ne.s32.totalorder %s344, %s346
      %p350 = scmp.eq.s32.totalorder %s32, 0
      %p351 = por %p349, %p350
      %p352 = scmp.ne.s32.totalorder %s344, %s346
      %p353 = scmp.eq.s32.totalorder %s37, 1
      %p354 = por %p352, %p353
      %p355 = scmp.ne.s32.totalorder %s346, %s347
      %p356 = scmp.eq.s32.totalorder %s37, 0
      %p357 = por %p355, %p356
      %p358 = scmp.ne.s32.totalorder %s346, %s347
      %p359 = scmp.eq.s32.totalorder %s38, 1
      %p360 = por %p358, %p359
      %p362 = scmp.ne.s32.totalorder %s347, %s361
      %p363 = scmp.eq.s32.totalorder %s38, 0
      %p364 = por %p362, %p363
      %s365 = ssub.s32 %s32, %s39
      %p366 = scmp.eq.s32.totalorder %s365, 0
      %s368 = sadd.s32 %s367, 1
      %s369 = scalar_select %p366, %s367, %s368
      %p372 = pneg %p366
      %p373 = scmp.eq.s32.totalorder %s32, 1
      %p374 = por %p372, %p373
      %p375 = scmp.ne.s32.totalorder %s367, %s370
      %p376 = scmp.eq.s32.totalorder %s32, 0
      %p377 = por %p375, %p376
      %p378 = scmp.ne.s32.totalorder %s367, %s370
      %p379 = scmp.eq.s32.totalorder %s37, 1
      %p380 = por %p378, %p379
      %p381 = scmp.ne.s32.totalorder %s370, %s371
      %p382 = scmp.eq.s32.totalorder %s37, 0
      %p383 = por %p381, %p382
      %p384 = scmp.ne.s32.totalorder %s370, %s371
      %p385 = scmp.eq.s32.totalorder %s38, 1
      %p386 = por %p384, %p385
      %p388 = scmp.ne.s32.totalorder %s371, %s387
      %p389 = scmp.eq.s32.totalorder %s38, 0
      %p390 = por %p388, %p389
      %p391 = scmp.le.s32.totalorder 1, %s32
      %p392 = scmp.lt.s32.totalorder %s32, 3
      %p393 = pnand %p391, %p392
      %p394 = pneg %p393
      // Predicated region
      $region9: #{tpu_custom_call.1} parent=5 // pred_check
        _
      $region10: #{tpu_custom_call.1} parent=5 // pred_check_branch
        %396 = sbr.rel (%p393) target = $region12
      $region11: #{tpu_custom_call.1} parent=5 // pred_region
        %s397 = ssub.s32 %s32, 1
        // Predicated region
        $region13: #{tpu_custom_call.1} parent=11 // pred_check
          %p398 = pneg %p105
        $region14: #{tpu_custom_call.1} parent=11 // pred_check_branch
          %400 = sbr.rel (%p398) target = $region16
        $region15: #{tpu_custom_call.1} parent=11 // pred_region
          %s402 = ssub.s32 512, 512
          %403 = vsyncadd [#allocation6], %s402
          %s404 = sshll.u32 [#allocation7], 4
          %s405 = int_to_ptr.vmem [resolvable:$true] %s404
          %410 = dma.hbm_to_vmem [thread:$0]  %s2, 512, %s405, [#allocation6], 128, 128, 8
        $region16: #{tpu_custom_call.1} parent=11 // pred_fallthru
          _
        // Predicated region
        $region17: #{tpu_custom_call.1} parent=11 // pred_check
          %p411 = pneg %p126
        $region18: #{tpu_custom_call.1} parent=11 // pred_check_branch
          %413 = sbr.rel (%p411) target = $region20
        $region19: #{tpu_custom_call.1} parent=11 // pred_region
          %s415 = ssub.s32 3072, 3072
          %416 = vsyncadd [#allocation9], %s415
          %s417 = sshll.u32 [#allocation8], 4
          %s418 = int_to_ptr.vmem [resolvable:$true] %s417
          %423 = dma.hbm_to_vmem [thread:$0]  %s3, 3072, %s418, [#allocation9], 192, 192, 12
        $region20: #{tpu_custom_call.1} parent=11 // pred_fallthru
          _
        // Predicated region
        $region21: #{tpu_custom_call.1} parent=11 // pred_check
          %p424 = pneg %p147
        $region22: #{tpu_custom_call.1} parent=11 // pred_check_branch
          %426 = sbr.rel (%p424) target = $region24
        $region23: #{tpu_custom_call.1} parent=11 // pred_region
          _
        $region24: #{tpu_custom_call.1} parent=11 // pred_fallthru
          _
        // Predicated region
        $region25: #{tpu_custom_call.1} parent=11 // pred_check
          %p427 = pneg %p168
        $region26: #{tpu_custom_call.1} parent=11 // pred_check_branch
          %429 = sbr.rel (%p427) target = $region28
        $region27: #{tpu_custom_call.1} parent=11 // pred_region
          %s431 = ssub.s32 1024, 1024
          %432 = vsyncadd [#allocation9], %s431
          %s433 = sshll.u32 [#allocation10], 4
          %s434 = int_to_ptr.vmem [resolvable:$true] %s433
          %439 = dma.hbm_to_vmem [thread:$0]  %s5, 1024, %s434, [#allocation9], 64, 64, 4
        $region28: #{tpu_custom_call.1} parent=11 // pred_fallthru
          _
        // Predicated region
        $region29: #{tpu_custom_call.1} parent=11 // pred_check
          %p440 = pneg %p189
        $region30: #{tpu_custom_call.1} parent=11 // pred_check_branch
          %442 = sbr.rel (%p440) target = $region32
        $region31: #{tpu_custom_call.1} parent=11 // pred_region
          _
        $region32: #{tpu_custom_call.1} parent=11 // pred_fallthru
          _
        // Predicated region
        $region33: #{tpu_custom_call.1} parent=11 // pred_check
          %p443 = pneg %p210
        $region34: #{tpu_custom_call.1} parent=11 // pred_check_branch
          %445 = sbr.rel (%p443) target = $region36
        $region35: #{tpu_custom_call.1} parent=11 // pred_region
          _
        $region36: #{tpu_custom_call.1} parent=11 // pred_fallthru
          _
        // Predicated region
        $region37: #{tpu_custom_call.1} parent=11 // pred_check
          %p446 = pneg %p231
        $region38: #{tpu_custom_call.1} parent=11 // pred_check_branch
          %448 = sbr.rel (%p446) target = $region40
        $region39: #{tpu_custom_call.1} parent=11 // pred_region
          _
        $region40: #{tpu_custom_call.1} parent=11 // pred_fallthru
          _
        // Predicated region
        $region41: #{tpu_custom_call.1} parent=11 // pred_check
          %p449 = pneg %p252
        $region42: #{tpu_custom_call.1} parent=11 // pred_check_branch
          %451 = sbr.rel (%p449) target = $region44
        $region43: #{tpu_custom_call.1} parent=11 // pred_region
          %s453 = ssub.s32 2048, 2048
          %454 = vsyncadd [#allocation12], %s453
          %s455 = sshll.u32 [#allocation11], 4
          %s456 = int_to_ptr.vmem [resolvable:$true] %s455
          %461 = dma.hbm_to_vmem [thread:$0]  %s9, 2048, %s456, [#allocation12], 128, 128, 8
        $region44: #{tpu_custom_call.1} parent=11 // pred_fallthru
          _
        // Predicated region
        $region45: #{tpu_custom_call.1} parent=11 // pred_check
          %p462 = pneg %p273
        $region46: #{tpu_custom_call.1} parent=11 // pred_check_branch
          %464 = sbr.rel (%p462) target = $region48
        $region47: #{tpu_custom_call.1} parent=11 // pred_region
          _
        $region48: #{tpu_custom_call.1} parent=11 // pred_fallthru
          _
        // Predicated region
        $region49: #{tpu_custom_call.1} parent=11 // pred_check
          %p465 = pneg %p294
        $region50: #{tpu_custom_call.1} parent=11 // pred_check_branch
          %467 = sbr.rel (%p465) target = $region52
        $region51: #{tpu_custom_call.1} parent=11 // pred_region
          %s469 = ssub.s32 2048, 2048
          %470 = vsyncadd [#allocation12], %s469
          %s471 = sshll.u32 [#allocation13], 4
          %s472 = int_to_ptr.vmem [resolvable:$true] %s471
          %477 = dma.hbm_to_vmem [thread:$0]  %s11, 2048, %s472, [#allocation12], 64, 64, 4
        $region52: #{tpu_custom_call.1} parent=11 // pred_fallthru
          _
        // Predicated region
        $region53: #{tpu_custom_call.1} parent=11 // pred_check
          %p478 = pneg %p315
        $region54: #{tpu_custom_call.1} parent=11 // pred_check_branch
          %480 = sbr.rel (%p478) target = $region56
        $region55: #{tpu_custom_call.1} parent=11 // pred_region
          _
        $region56: #{tpu_custom_call.1} parent=11 // pred_fallthru
          _
        // Predicated region
        $region57: #{tpu_custom_call.1} parent=11 // pred_check
          %p481 = pneg %p336
        $region58: #{tpu_custom_call.1} parent=11 // pred_check_branch
          %483 = sbr.rel (%p481) target = $region60
        $region59: #{tpu_custom_call.1} parent=11 // pred_region
          _
        $region60: #{tpu_custom_call.1} parent=11 // pred_fallthru
          _
        // Predicated region
        $region61: #{tpu_custom_call.1} parent=11 // pred_check
          %p484 = pneg %p357
        $region62: #{tpu_custom_call.1} parent=11 // pred_check_branch
          %486 = sbr.rel (%p484) target = $region64
        $region63: #{tpu_custom_call.1} parent=11 // pred_region
          _
        $region64: #{tpu_custom_call.1} parent=11 // pred_fallthru
          _
      $region12: #{tpu_custom_call.1} parent=5 // pred_fallthru
        _
      %p487 = scmp.lt.s32.totalorder %s32, 2
      // Predicated region
      $region65: #{tpu_custom_call.1} parent=5 // pred_check
        %p488 = pneg %p487
      $region66: #{tpu_custom_call.1} parent=5 // pred_check_branch
        %490 = sbr.rel (%p488) target = $region68
      $region67: #{tpu_custom_call.1} parent=5 // pred_region
        // Predicated region
        $region69: #{tpu_custom_call.1} parent=67 // pred_check
          %p491 = pneg %p52
        $region70: #{tpu_custom_call.1} parent=67 // pred_check_branch
          %493 = sbr.rel (%p491) target = $region72
        $region71: #{tpu_custom_call.1} parent=67 // pred_region
          %s494 = sand.u32 %s42, 1
          %s495 = scalar_lea.sflag [#allocation3], %s494
          %s496 = sand.u32 %s42, 1
          %s497 = smul.addr %s496, 32
          %s498 = scalar_lea.vmem [#allocation2], %s497
          %s499 = smul.u32 4, %s32
          %s501 = ssub.s32 512, 512
          %502 = vsyncadd %s495, %s501
          %s503 = smul.addr %s499, 128
          %s504 = scalar_lea.hbm %s0, %s503
          %s505 = sshll.u32 %s498, 4
          %s506 = int_to_ptr.vmem [resolvable:$true] %s505
          %511 = dma.hbm_to_vmem [thread:$0]  %s504, 512, %s506, %s495, 128, 128, 8
        $region72: #{tpu_custom_call.1} parent=67 // pred_fallthru
          _
        // Predicated region
        $region73: #{tpu_custom_call.1} parent=67 // pred_check
          %p512 = pneg %p78
        $region74: #{tpu_custom_call.1} parent=67 // pred_check_branch
          %514 = sbr.rel (%p512) target = $region76
        $region75: #{tpu_custom_call.1} parent=67 // pred_region
          %s515 = sand.u32 %s32, 1
          %s516 = scalar_lea.sflag [#allocation6], %s515
          %s517 = sand.u32 %s68, 1
          %s518 = scalar_lea.vmem [#allocation5], %s517
          %s520 = ssub.s32 16, 16
          %521 = vsyncadd %s516, %s520
          %s522 = smul.addr %s32, 16
          %s523 = scalar_lea.hbm %s1, %s522
          %s525 = sshll.u32 %s518, 4
          %s526 = int_to_ptr.vmem [resolvable:$true] %s525
          %528 = dma.hbm_to_vmem [thread:$0]  %s523, 16, %s526, %s516
        $region76: #{tpu_custom_call.1} parent=67 // pred_fallthru
          _
      $region68: #{tpu_custom_call.1} parent=5 // pred_fallthru
        _
      %p529 = scmp.le.s32.totalorder 1, %s32
      %p530 = scmp.lt.s32.totalorder %s32, 3
      %p531 = pnand %p529, %p530
      %p532 = pneg %p531
      // Predicated region
      $region77: #{tpu_custom_call.1} parent=5 // pred_check
        _
      $region78: #{tpu_custom_call.1} parent=5 // pred_check_branch
        %534 = sbr.rel (%p531) target = $region80
      $region79: #{tpu_custom_call.1} parent=5 // pred_region
        %s535 = ssub.s32 %s32, 1
        %s536 = sand.u32 %s45, 1
        %s537 = scalar_lea.sflag [#allocation3], %s536
        %s538 = sand.u32 %s45, 1
        %s539 = smul.addr %s538, 32
        %s540 = scalar_lea.vmem [#allocation2], %s539
        // Predicated region
        $region81: #{tpu_custom_call.1} parent=79 // pred_check
          %p541 = pneg %p58
        $region82: #{tpu_custom_call.1} parent=79 // pred_check_branch
          %543 = sbr.rel (%p541) target = $region84
        $region83: #{tpu_custom_call.1} parent=79 // pred_region
          %544 = dma.done %s537, 512
        $region84: #{tpu_custom_call.1} parent=79 // pred_fallthru
          _
        %s545 = sand.u32 %s37, 1
        %s546 = scalar_lea.sflag [#allocation6], %s545
        %s547 = sand.u32 %s71, 1
        %s548 = scalar_lea.vmem [#allocation5], %s547
        // Predicated region
        $region85: #{tpu_custom_call.1} parent=79 // pred_check
          %p549 = pneg %p84
        $region86: #{tpu_custom_call.1} parent=79 // pred_check_branch
          %551 = sbr.rel (%p549) target = $region88
        $region87: #{tpu_custom_call.1} parent=79 // pred_region
          %552 = dma.done %s546, 16
        $region88: #{tpu_custom_call.1} parent=79 // pred_fallthru
          _
        // Predicated region
        $region89: #{tpu_custom_call.1} parent=79 // pred_check
          %p553 = pneg %p105
        $region90: #{tpu_custom_call.1} parent=79 // pred_check_branch
          %555 = sbr.rel (%p553) target = $region92
        $region91: #{tpu_custom_call.1} parent=79 // pred_region
          %556 = dma.done [#allocation6], 512
        $region92: #{tpu_custom_call.1} parent=79 // pred_fallthru
          _
        // Predicated region
        $region93: #{tpu_custom_call.1} parent=79 // pred_check
          %p557 = pneg %p126
        $region94: #{tpu_custom_call.1} parent=79 // pred_check_branch
          %559 = sbr.rel (%p557) target = $region96
        $region95: #{tpu_custom_call.1} parent=79 // pred_region
          %560 = dma.done [#allocation9], 3072
        $region96: #{tpu_custom_call.1} parent=79 // pred_fallthru
          _
        // Predicated region
        $region97: #{tpu_custom_call.1} parent=79 // pred_check
          %p561 = pneg %p168
        $region98: #{tpu_custom_call.1} parent=79 // pred_check_branch
          %563 = sbr.rel (%p561) target = $region100
        $region99: #{tpu_custom_call.1} parent=79 // pred_region
          %564 = dma.done [#allocation9], 1024
        $region100: #{tpu_custom_call.1} parent=79 // pred_fallthru
          _
        // Predicated region
        $region101: #{tpu_custom_call.1} parent=79 // pred_check
          %p565 = pneg %p252
        $region102: #{tpu_custom_call.1} parent=79 // pred_check_branch
          %567 = sbr.rel (%p565) target = $region104
        $region103: #{tpu_custom_call.1} parent=79 // pred_region
          %568 = dma.done [#allocation12], 2048
        $region104: #{tpu_custom_call.1} parent=79 // pred_fallthru
          _
        // Predicated region
        $region105: #{tpu_custom_call.1} parent=79 // pred_check
          %p569 = pneg %p294
        $region106: #{tpu_custom_call.1} parent=79 // pred_check_branch
          %571 = sbr.rel (%p569) target = $region108
        $region107: #{tpu_custom_call.1} parent=79 // pred_region
          %572 = dma.done [#allocation12], 2048
        $region108: #{tpu_custom_call.1} parent=79 // pred_fallthru
          _
        %s573 = sand.u32 %s45, 1
        %s574 = scalar_lea.sflag [#allocation3], %s573
        %s575 = sand.u32 %s45, 1
        %s576 = smul.addr %s575, 32
        %s577 = scalar_lea.vmem [#allocation2], %s576
        %p578 = pneg %p58
        %p579 = pneg %p55
        %s580 = sand.u32 %s37, 1
        %s581 = scalar_lea.sflag [#allocation6], %s580
        %s582 = sand.u32 %s71, 1
        %s583 = scalar_lea.vmem [#allocation5], %s582
        %p584 = pneg %p84
        %p585 = pneg %p81
        %p586 = pneg %p105
        %p587 = pneg %p102
        %p588 = pneg %p126
        %p589 = pneg %p123
        %p590 = pneg %p147
        %p591 = pneg %p144
        %p592 = pneg %p168
        %p593 = pneg %p165
        %p594 = pneg %p189
        %p595 = pneg %p186
        %p596 = pneg %p210
        %p597 = pneg %p207
        %p598 = pneg %p231
        %p599 = pneg %p228
        %p600 = pneg %p252
        %p601 = pneg %p249
        %p602 = pneg %p273
        %p603 = pneg %p270
        %p604 = pneg %p294
        %p605 = pneg %p291
        %p606 = pneg %p315
        %p607 = pneg %p312
        %p608 = pneg %p336
        %p609 = pneg %p333
        %p610 = pneg %p357
        %p611 = pneg %p354
        %p612 = pneg %p383
        %p613 = pneg %p380
        %s614 = sand.u32 %s370, 1
        %s615 = scalar_lea.sflag [#allocation4], %s614
        %s616 = sand.u32 %s370, 1
        %s617 = smul.addr %s616, 32
        %s618 = scalar_lea.vmem [#allocation14], %s617
        %s619 = smul.u32 4, %s37
        %s620 = smul.u32 4, %s37
        %v622 = vld [vmem:[%s540] sm:$0xff]
        %v623 = vld [vmem:[%s540 + $0x8] sm:$0xff]
        %v624 = vld [vmem:[%s540 + $0x10] sm:$0xff]
        %v625 = vld [vmem:[%s540 + $0x18] sm:$0xff]
        %v626 = vpack.c.bf16 %v623, %v622
        %v627 = vpack.c.bf16 %v625, %v624
        %v628 = vld [vmem:[#allocation8] sm:$0xff]
        %v629 = vld [vmem:[#allocation8 + $0x8] sm:$0xf]
        %v630 = vld [vmem:[#allocation8 + $0xc] sm:$0xff]
        %v631 = vld [vmem:[#allocation8 + $0x14] sm:$0xf]
        %v632 = vld [vmem:[#allocation8 + $0x18] sm:$0xff]
        %v633 = vld [vmem:[#allocation8 + $0x20] sm:$0xf]
        %v634 = vld [vmem:[#allocation8 + $0x24] sm:$0xff]
        %v635 = vld [vmem:[#allocation8 + $0x2c] sm:$0xf]
        %v636 = vld [vmem:[#allocation8 + $0x30] sm:$0xff]
        %v637 = vld [vmem:[#allocation8 + $0x38] sm:$0xf]
        %v638 = vld [vmem:[#allocation8 + $0x3c] sm:$0xff]
        %v639 = vld [vmem:[#allocation8 + $0x44] sm:$0xf]
        %v640 = vld [vmem:[#allocation8 + $0x48] sm:$0xff]
        %v641 = vld [vmem:[#allocation8 + $0x50] sm:$0xf]
        %v642 = vld [vmem:[#allocation8 + $0x54] sm:$0xff]
        %v643 = vld [vmem:[#allocation8 + $0x5c] sm:$0xf]
        %v644 = vld [vmem:[#allocation8 + $0x60] sm:$0xff]
        %v645 = vld [vmem:[#allocation8 + $0x68] sm:$0xf]
        %v646 = vld [vmem:[#allocation8 + $0x6c] sm:$0xff]
        %v647 = vld [vmem:[#allocation8 + $0x74] sm:$0xf]
        %v648 = vld [vmem:[#allocation8 + $0x78] sm:$0xff]
        %v649 = vld [vmem:[#allocation8 + $0x80] sm:$0xf]
        %v650 = vld [vmem:[#allocation8 + $0x84] sm:$0xff]
        %v651 = vld [vmem:[#allocation8 + $0x8c] sm:$0xf]
        %v652 = vld [vmem:[#allocation8 + $0x90] sm:$0xff]
        %v653 = vld [vmem:[#allocation8 + $0x98] sm:$0xf]
        %v654 = vld [vmem:[#allocation8 + $0x9c] sm:$0xff]
        %v655 = vld [vmem:[#allocation8 + $0xa4] sm:$0xf]
        %v656 = vld [vmem:[#allocation8 + $0xa8] sm:$0xff]
        %v657 = vld [vmem:[#allocation8 + $0xb0] sm:$0xf]
        %v658 = vld [vmem:[#allocation8 + $0xb4] sm:$0xff]
        %v659 = vld [vmem:[#allocation8 + $0xbc] sm:$0xf]
        %v660 = vld [vmem:[%s4] sm:$0x7]
        %v662 = vlaneseq
        %v663 = vshrl.u32 %v662, 7
        %v664 = vsub.s32 0, %v663
        %v665 = vrot.slane %v660, %v664
        %v666 = vlaneseq
        %v667 = vshrl.u32 %v666, 7
        %v668 = vsub.s32 1, %v667
        %v669 = vrot.slane %v660, %v668
        %v670 = vlaneseq
        %v671 = vshrl.u32 %v670, 7
        %v672 = vsub.s32 2, %v671
        %v673 = vrot.slane %v660, %v672
        %v709 = vunpack.c.l.b16 %v628
        %v710 = vunpack.c.h.b16 %v628
        %v711 = vunpack.c.l.b16 %v629
        %v712 = vunpack.c.l.b16 %v630
        %v713 = vunpack.c.h.b16 %v630
        %v714 = vunpack.c.l.b16 %v631
        %v715 = vunpack.c.l.b16 %v632
        %v716 = vunpack.c.h.b16 %v632
        %v717 = vunpack.c.l.b16 %v633
        %v718 = vunpack.c.l.b16 %v634
        %v719 = vunpack.c.h.b16 %v634
        %v720 = vunpack.c.l.b16 %v635
        %v721 = vunpack.c.l.b16 %v636
        %v722 = vunpack.c.h.b16 %v636
        %v723 = vunpack.c.l.b16 %v637
        %v724 = vunpack.c.l.b16 %v638
        %v725 = vunpack.c.h.b16 %v638
        %v726 = vunpack.c.l.b16 %v639
        %v727 = vunpack.c.l.b16 %v640
        %v728 = vunpack.c.h.b16 %v640
        %v729 = vunpack.c.l.b16 %v641
        %v730 = vunpack.c.l.b16 %v642
        %v731 = vunpack.c.h.b16 %v642
        %v732 = vunpack.c.l.b16 %v643
        %v733 = vunpack.c.l.b16 %v644
        %v734 = vunpack.c.h.b16 %v644
        %v735 = vunpack.c.l.b16 %v645
        %v736 = vunpack.c.l.b16 %v646
        %v737 = vunpack.c.h.b16 %v646
        %v738 = vunpack.c.l.b16 %v647
        %v739 = vunpack.c.l.b16 %v648
        %v740 = vunpack.c.h.b16 %v648
        %v741 = vunpack.c.l.b16 %v649
        %v742 = vunpack.c.l.b16 %v650
        %v743 = vunpack.c.h.b16 %v650
        %v744 = vunpack.c.l.b16 %v651
        %v745 = vunpack.c.l.b16 %v652
        %v746 = vunpack.c.h.b16 %v652
        %v747 = vunpack.c.l.b16 %v653
        %v748 = vunpack.c.l.b16 %v654
        %v749 = vunpack.c.h.b16 %v654
        %v750 = vunpack.c.l.b16 %v655
        %v751 = vunpack.c.l.b16 %v656
        %v752 = vunpack.c.h.b16 %v656
        %v753 = vunpack.c.l.b16 %v657
        %v754 = vunpack.c.l.b16 %v658
        %v755 = vunpack.c.h.b16 %v658
        %v756 = vunpack.c.l.b16 %v659
        %v757 = vpack.c.b16 %v712, %v709
        %v758 = vpack.c.b16 %v713, %v710
        %v759 = vpack.c.b16 %v714, %v711
        %v760 = vpack.c.b16 %v718, %v715
        %v761 = vpack.c.b16 %v719, %v716
        %v762 = vpack.c.b16 %v720, %v717
        %v763 = vpack.c.b16 %v724, %v721
        %v764 = vpack.c.b16 %v725, %v722
        %v765 = vpack.c.b16 %v726, %v723
        %v766 = vpack.c.b16 %v730, %v727
        %v767 = vpack.c.b16 %v731, %v728
        %v768 = vpack.c.b16 %v732, %v729
        %v769 = vpack.c.b16 %v736, %v733
        %v770 = vpack.c.b16 %v737, %v734
        %v771 = vpack.c.b16 %v738, %v735
        %v772 = vpack.c.b16 %v742, %v739
        %v773 = vpack.c.b16 %v743, %v740
        %v774 = vpack.c.b16 %v744, %v741
        %v775 = vpack.c.b16 %v748, %v745
        %v776 = vpack.c.b16 %v749, %v746
        %v777 = vpack.c.b16 %v750, %v747
        %v778 = vpack.c.b16 %v754, %v751
        %v779 = vpack.c.b16 %v755, %v752
        %v780 = vpack.c.b16 %v756, %v753
        %805 = vmatprep.subr.bf16.mxu0 %v779
        %806 = vmatpush1.bf16.msra.mxu0 %v778
        %807 = vmatprep.subr.bf16.mxu0 %v776
        %808 = vmatpush1.bf16.msra.mxu0 %v775
        %809 = vmatprep.subr.bf16.mxu0 %v773
        %810 = vmatpush1.bf16.msra.mxu0 %v772
        %811 = vmatprep.subr.bf16.mxu0 %v770
        %812 = vmatpush1.bf16.msra.mxu0 %v769
        %813 = vmatprep.subr.bf16.mxu0 %v767
        %814 = vmatpush1.bf16.msra.mxu0 %v766
        %815 = vmatprep.subr.bf16.mxu0 %v764
        %816 = vmatpush1.bf16.msra.mxu0 %v763
        %817 = vmatprep.subr.bf16.mxu0 %v761
        %818 = vmatpush1.bf16.msra.mxu0 %v760
        %819 = vmatprep.subr.bf16.mxu0 %v758
        %820 = vmatpush1.bf16.msra.mxu0 %v757
        %821 = vmatprep.subr.bf16.mxu0 0
        %822 = vmatpush2.bf16.msra.mxu0 0
        %823 = vmatprep.subr.bf16.mxu0 0
        %824 = vmatpush2.bf16.msra.mxu0 0
        %825 = vmatprep.subr.bf16.mxu0 0
        %826 = vmatpush2.bf16.msra.mxu0 0
        %827 = vmatprep.subr.bf16.mxu0 0
        %828 = vmatpush2.bf16.msra.mxu0 0
        %829 = vmatprep.subr.bf16.mxu0 0
        %830 = vmatpush2.bf16.msra.mxu0 0
        %831 = vmatprep.subr.bf16.mxu0 0
        %832 = vmatpush2.bf16.msra.mxu0 0
        %833 = vmatprep.subr.bf16.mxu0 0
        %834 = vmatpush2.bf16.msra.mxu0 0
        %835 = vmatprep.subr.bf16.mxu0 0
        %836 = vmatpush2.bf16.msra.mxu0 0
        %837 = vmatprep.mubr.bf16.mxu0 0
        %838 = vmatmul.mubr.bf16.gmra.mxu0 %v626
        %v839 = vpop.f32.mrf.mxu0
        %v840 = vadd.f32 %v665, %v839
        %v841 = vpop.f32.mrf.mxu0
        %v842 = vadd.f32 %v669, %v841
        %v843 = vpop.f32.mrf.mxu0
        %v844 = vadd.f32 %v665, %v843
        %v845 = vpop.f32.mrf.mxu0
        %v846 = vadd.f32 %v669, %v845
        %847 = vmatprep.mubr.bf16.mxu0 0
        %848 = vmatmul.mubr.bf16.gmra.mxu0 %v627
        %v849 = vpop.f32.mrf.mxu0
        %v850 = vadd.f32 %v665, %v849
        %v851 = vpop.f32.mrf.mxu0
        %v852 = vadd.f32 %v669, %v851
        %v853 = vpop.f32.mrf.mxu0
        %v854 = vadd.f32 %v665, %v853
        %v855 = vpop.f32.mrf.mxu0
        %v856 = vadd.f32 %v669, %v855
        %857 = vdwg.mxu0
        %858 = vmatprep.subr.bf16.mxu0 0
        %859 = vmatpush1.bf16.msra.mxu0 %v780
        %860 = vmatprep.subr.bf16.mxu0 0
        %861 = vmatpush1.bf16.msra.mxu0 %v777
        %862 = vmatprep.subr.bf16.mxu0 0
        %863 = vmatpush1.bf16.msra.mxu0 %v774
        %864 = vmatprep.subr.bf16.mxu0 0
        %865 = vmatpush1.bf16.msra.mxu0 %v771
        %866 = vmatprep.subr.bf16.mxu0 0
        %867 = vmatpush1.bf16.msra.mxu0 %v768
        %868 = vmatprep.subr.bf16.mxu0 0
        %869 = vmatpush1.bf16.msra.mxu0 %v765
        %870 = vmatprep.subr.bf16.mxu0 0
        %871 = vmatpush1.bf16.msra.mxu0 %v762
        %872 = vmatprep.subr.bf16.mxu0 0
        %873 = vmatpush1.bf16.msra.mxu0 %v759
        %874 = vmatprep.subr.bf16.mxu0 0
        %875 = vmatpush2.bf16.msra.mxu0 0
        %876 = vmatprep.subr.bf16.mxu0 0
        %877 = vmatpush2.bf16.msra.mxu0 0
        %878 = vmatprep.subr.bf16.mxu0 0
        %879 = vmatpush2.bf16.msra.mxu0 0
        %880 = vmatprep.subr.bf16.mxu0 0
        %881 = vmatpush2.bf16.msra.mxu0 0
        %882 = vmatprep.subr.bf16.mxu0 0
        %883 = vmatpush2.bf16.msra.mxu0 0
        %884 = vmatprep.subr.bf16.mxu0 0
        %885 = vmatpush2.bf16.msra.mxu0 0
        %886 = vmatprep.subr.bf16.mxu0 0
        %887 = vmatpush2.bf16.msra.mxu0 0
        %888 = vmatprep.subr.bf16.mxu0 0
        %889 = vmatpush2.bf16.msra.mxu0 0
        %890 = vmatprep.mubr.bf16.mxu0 0
        %891 = vmatmul.mubr.bf16.gmra.mxu0 %v626
        %v892 = vpop.f32.mrf.mxu0
        %v893 = vadd.f32 %v673, %v892
        %v894 = vpop.f32.mrf.mxu0
        %v895 = vpop.f32.mrf.mxu0
        %v896 = vadd.f32 %v673, %v895
        %v897 = vpop.f32.mrf.mxu0
        %898 = vmatprep.mubr.bf16.mxu0 0
        %899 = vmatmul.mubr.bf16.gmra.mxu0 %v627
        %v900 = vpop.f32.mrf.mxu0
        %v901 = vadd.f32 %v673, %v900
        %v902 = vpop.f32.mrf.mxu0
        %v903 = vpop.f32.mrf.mxu0
        %v904 = vadd.f32 %v673, %v903
        %v905 = vpop.f32.mrf.mxu0
        %906 = vdwg.mxu0
        %v907 = vpack.c.bf16 %v844, %v840
        %v908 = vpack.c.bf16 %v846, %v842
        %v909 = vpack.c.bf16 %v896, %v893
        %v910 = vpack.c.bf16 %v854, %v850
        %v911 = vpack.c.bf16 %v856, %v852
        %v912 = vpack.c.bf16 %v904, %v901
        %v913 = vld [vmem:[#allocation7] sm:$0xff]
        %v914 = vld [vmem:[#allocation7 + $0x8] sm:$0xff]
        %v915 = vld [vmem:[#allocation7 + $0x10] sm:$0xff]
        %v916 = vld [vmem:[#allocation7 + $0x18] sm:$0xff]
        %v917 = vld [vmem:[%s548] sm:$0x1]
        %v919 = vlaneseq
        %v920 = vshrl.u32 %v919, 7
        %v921 = vsub.s32 0, %v920
        %v922 = vrot.slane %v917, %v921
        %v924 = vadd.f32 %v913, %v922
        %v925 = vadd.f32 %v914, %v922
        %v926 = vadd.f32 %v915, %v922
        %v927 = vadd.f32 %v916, %v922
        %vm928 = vcmask 130048
        %v930 = vsel %vm928, %v907, 0
        %v933 = vsel %vm928, %v910, 0
        %v936 = vsel %vm928, %v908, 0
        %v939 = vsel %vm928, %v911, 0
        %941 = vmatprep.subr.bf16.mxu0 0
        %942 = vmatpush1.bf16.xpose.msra.mxu0 0
        %943 = vmatprep.subr.bf16.mxu0 0
        %944 = vmatpush1.bf16.xpose.msra.mxu0 0
        %945 = vmatprep.subr.bf16.mxu0 0
        %946 = vmatpush1.bf16.xpose.msra.mxu0 0
        %947 = vmatprep.subr.bf16.mxu0 0
        %948 = vmatpush1.bf16.xpose.msra.mxu0 0
        %949 = vmatprep.subr.bf16.mxu0 0
        %950 = vmatpush1.bf16.xpose.msra.mxu0 0
        %951 = vmatprep.subr.bf16.mxu0 0
        %952 = vmatpush1.bf16.xpose.msra.mxu0 0
        %953 = vmatprep.subr.bf16.mxu0 0
        %954 = vmatpush1.bf16.xpose.msra.mxu0 %v939
        %955 = vmatprep.subr.bf16.mxu0 0
        %956 = vmatpush1.bf16.xpose.msra.mxu0 %v936
        %957 = vmatprep.subr.bf16.mxu0 0
        %958 = vmatpush2.bf16.xpose.msra.mxu0 0
        %959 = vmatprep.subr.bf16.mxu0 0
        %960 = vmatpush2.bf16.xpose.msra.mxu0 0
        %961 = vmatprep.subr.bf16.mxu0 0
        %962 = vmatpush2.bf16.xpose.msra.mxu0 0
        %963 = vmatprep.subr.bf16.mxu0 0
        %964 = vmatpush2.bf16.xpose.msra.mxu0 0
        %965 = vmatprep.subr.bf16.mxu0 0
        %966 = vmatpush2.bf16.xpose.msra.mxu0 0
        %967 = vmatprep.subr.bf16.mxu0 0
        %968 = vmatpush2.bf16.xpose.msra.mxu0 0
        %969 = vmatprep.subr.bf16.mxu0 0
        %970 = vmatpush2.bf16.xpose.msra.mxu0 0
        %971 = vmatprep.subr.bf16.mxu0 0
        %972 = vmatpush2.bf16.xpose.msra.mxu0 0
        %973 = vmatprep.mubr.bf16.mxu0 0
        %974 = vmatmul.mubr.bf16.gmra.mxu0 %v930
        %v975 = vpop.f32.mrf.mxu0
        %v976 = vadd.f32 %v924, %v975
        %v977 = vpop.f32.mrf.mxu0
        %v978 = vpop.f32.mrf.mxu0
        %v979 = vadd.f32 %v925, %v978
        %v980 = vpop.f32.mrf.mxu0
        %981 = vmatprep.mubr.bf16.mxu0 0
        %982 = vmatmul.mubr.bf16.gmra.mxu0 %v933
        %v983 = vpop.f32.mrf.mxu0
        %v984 = vadd.f32 %v926, %v983
        %v985 = vpop.f32.mrf.mxu0
        %v986 = vpop.f32.mrf.mxu0
        %v987 = vadd.f32 %v927, %v986
        %v988 = vpop.f32.mrf.mxu0
        %989 = vdwg.mxu0
        %vm990 = vcmask 261120
        %v991 = vsel %vm990, %v976, -inf
        %992 = vmax.xlane.f32.xlu0 %v991
        %v993 = vpop.xlane.xlu0 %992
        %v994 = vsel %vm990, %v979, -inf
        %995 = vmax.xlane.f32.xlu0 %v994
        %v996 = vpop.xlane.xlu0 %995
        %v997 = vsel %vm990, %v984, -inf
        %998 = vmax.xlane.f32.xlu0 %v997
        %v999 = vpop.xlane.xlu0 %998
        %v1000 = vsel %vm990, %v987, -inf
        %1001 = vmax.xlane.f32.xlu0 %v1000
        %v1002 = vpop.xlane.xlu0 %1001
        %v1003 = vsub.f32 %v976, %v993
        %v1004 = vsub.f32 %v979, %v996
        %v1005 = vsub.f32 %v984, %v999
        %v1006 = vsub.f32 %v987, %v1002
        %v1007 = vmul.f32 %v1003, 1.442695
        %v1008 = vpow.pop %v1007
        %v1009 = vmul.f32 %v1004, 1.442695
        %v1010 = vpow.pop %v1009
        %v1011 = vmul.f32 %v1005, 1.442695
        %v1012 = vpow.pop %v1011
        %v1013 = vmul.f32 %v1006, 1.442695
        %v1014 = vpow.pop %v1013
        %v1015 = vsel %vm990, %v1008, 0.0
        %1016 = vadd.xlane.f32.xlu0 %v1015
        %v1017 = vpop.xlane.xlu0 %1016
        %v1018 = vsel %vm990, %v1010, 0.0
        %1019 = vadd.xlane.f32.xlu0 %v1018
        %v1020 = vpop.xlane.xlu0 %1019
        %v1021 = vsel %vm990, %v1012, 0.0
        %1022 = vadd.xlane.f32.xlu0 %v1021
        %v1023 = vpop.xlane.xlu0 %1022
        %v1024 = vsel %vm990, %v1014, 0.0
        %1025 = vadd.xlane.f32.xlu0 %v1024
        %v1026 = vpop.xlane.xlu0 %1025
        %v1027 = vrcp.pop %v1017
        %v1028 = vrcp.pop %v1020
        %v1029 = vrcp.pop %v1023
        %v1030 = vrcp.pop %v1026
        %v1031 = vmul.f32 %v1008, %v1027
        %v1032 = vmul.f32 %v1010, %v1028
        %v1033 = vmul.f32 %v1012, %v1029
        %v1034 = vmul.f32 %v1014, %v1030
        %v1035 = vpack.c.bf16 %v1032, %v1031
        %v1036 = vpack.c.bf16 %v1034, %v1033
        %v1038 = vsel %vm990, %v1035, 0
        %v1041 = vsel %vm990, %v1036, 0
        %1043 = vmatprep.subr.bf16.mxu0 0
        %1044 = vmatpush1.bf16.msra.mxu0 0
        %1045 = vmatprep.subr.bf16.mxu0 0
        %1046 = vmatpush1.bf16.msra.mxu0 0
        %1047 = vmatprep.subr.bf16.mxu0 0
        %1048 = vmatpush1.bf16.msra.mxu0 0
        %1049 = vmatprep.subr.bf16.mxu0 0
        %1050 = vmatpush1.bf16.msra.mxu0 0
        %1051 = vmatprep.subr.bf16.mxu0 0
        %1052 = vmatpush1.bf16.msra.mxu0 0
        %1053 = vmatprep.subr.bf16.mxu0 0
        %1054 = vmatpush1.bf16.msra.mxu0 0
        %1055 = vmatprep.subr.bf16.mxu0 0
        %1056 = vmatpush1.bf16.msra.mxu0 %v912
        %1057 = vmatprep.subr.bf16.mxu0 0
        %1058 = vmatpush1.bf16.msra.mxu0 %v909
        %1059 = vmatprep.subr.bf16.mxu0 0
        %1060 = vmatpush2.bf16.msra.mxu0 0
        %1061 = vmatprep.subr.bf16.mxu0 0
        %1062 = vmatpush2.bf16.msra.mxu0 0
        %1063 = vmatprep.subr.bf16.mxu0 0
        %1064 = vmatpush2.bf16.msra.mxu0 0
        %1065 = vmatprep.subr.bf16.mxu0 0
        %1066 = vmatpush2.bf16.msra.mxu0 0
        %1067 = vmatprep.subr.bf16.mxu0 0
        %1068 = vmatpush2.bf16.msra.mxu0 0
        %1069 = vmatprep.subr.bf16.mxu0 0
        %1070 = vmatpush2.bf16.msra.mxu0 0
        %1071 = vmatprep.subr.bf16.mxu0 0
        %1072 = vmatpush2.bf16.msra.mxu0 0
        %1073 = vmatprep.subr.bf16.mxu0 0
        %1074 = vmatpush2.bf16.msra.mxu0 0
        %1075 = vmatprep.mubr.bf16.mxu0 0
        %1076 = vmatmul.mubr.bf16.gmra.mxu0 %v1038
        %v1077 = vpop.f32.mrf.mxu0
        %v1078 = vadd.f32 0.0, %v1077
        %v1079 = vpop.f32.mrf.mxu0
        %v1080 = vpop.f32.mrf.mxu0
        %v1081 = vadd.f32 0.0, %v1080
        %v1082 = vpop.f32.mrf.mxu0
        %1083 = vmatprep.mubr.bf16.mxu0 0
        %1084 = vmatmul.mubr.bf16.gmra.mxu0 %v1041
        %v1085 = vpop.f32.mrf.mxu0
        %v1086 = vadd.f32 0.0, %v1085
        %v1087 = vpop.f32.mrf.mxu0
        %v1088 = vpop.f32.mrf.mxu0
        %v1089 = vadd.f32 0.0, %v1088
        %v1090 = vpop.f32.mrf.mxu0
        %1091 = vdwg.mxu0
        %1094 = vrot.lane.b32.xlu0 %v907, 112
        %v1095 = vpop.permute.xlu0 %1094
        %1096 = vrot.lane.b32.xlu0 %v910, 112
        %v1097 = vpop.permute.xlu0 %1096
        %1100 = vrot.lane.b32.xlu0 %v908, 112
        %v1101 = vpop.permute.xlu0 %1100
        %1102 = vrot.lane.b32.xlu0 %v911, 112
        %v1103 = vpop.permute.xlu0 %1102
        %v1105 = vsel %vm928, %v1095, 0
        %v1108 = vsel %vm928, %v1097, 0
        %v1111 = vsel %vm928, %v1101, 0
        %v1114 = vsel %vm928, %v1103, 0
        %1116 = vmatprep.subr.bf16.mxu0 0
        %1117 = vmatpush1.bf16.xpose.msra.mxu0 0
        %1118 = vmatprep.subr.bf16.mxu0 0
        %1119 = vmatpush1.bf16.xpose.msra.mxu0 0
        %1120 = vmatprep.subr.bf16.mxu0 0
        %1121 = vmatpush1.bf16.xpose.msra.mxu0 0
        %1122 = vmatprep.subr.bf16.mxu0 0
        %1123 = vmatpush1.bf16.xpose.msra.mxu0 0
        %1124 = vmatprep.subr.bf16.mxu0 0
        %1125 = vmatpush1.bf16.xpose.msra.mxu0 0
        %1126 = vmatprep.subr.bf16.mxu0 0
        %1127 = vmatpush1.bf16.xpose.msra.mxu0 0
        %1128 = vmatprep.subr.bf16.mxu0 0
        %1129 = vmatpush1.bf16.xpose.msra.mxu0 %v1114
        %1130 = vmatprep.subr.bf16.mxu0 0
        %1131 = vmatpush1.bf16.xpose.msra.mxu0 %v1111
        %1132 = vmatprep.subr.bf16.mxu0 0
        %1133 = vmatpush2.bf16.xpose.msra.mxu0 0
        %1134 = vmatprep.subr.bf16.mxu0 0
        %1135 = vmatpush2.bf16.xpose.msra.mxu0 0
        %1136 = vmatprep.subr.bf16.mxu0 0
        %1137 = vmatpush2.bf16.xpose.msra.mxu0 0
        %1138 = vmatprep.subr.bf16.mxu0 0
        %1139 = vmatpush2.bf16.xpose.msra.mxu0 0
        %1140 = vmatprep.subr.bf16.mxu0 0
        %1141 = vmatpush2.bf16.xpose.msra.mxu0 0
        %1142 = vmatprep.subr.bf16.mxu0 0
        %1143 = vmatpush2.bf16.xpose.msra.mxu0 0
        %1144 = vmatprep.subr.bf16.mxu0 0
        %1145 = vmatpush2.bf16.xpose.msra.mxu0 0
        %1146 = vmatprep.subr.bf16.mxu0 0
        %1147 = vmatpush2.bf16.xpose.msra.mxu0 0
        %1148 = vmatprep.mubr.bf16.mxu0 0
        %1149 = vmatmul.mubr.bf16.gmra.mxu0 %v1105
        %v1150 = vpop.f32.mrf.mxu0
        %v1151 = vadd.f32 %v924, %v1150
        %v1152 = vpop.f32.mrf.mxu0
        %v1153 = vpop.f32.mrf.mxu0
        %v1154 = vadd.f32 %v925, %v1153
        %v1155 = vpop.f32.mrf.mxu0
        %1156 = vmatprep.mubr.bf16.mxu0 0
        %1157 = vmatmul.mubr.bf16.gmra.mxu0 %v1108
        %v1158 = vpop.f32.mrf.mxu0
        %v1159 = vadd.f32 %v926, %v1158
        %v1160 = vpop.f32.mrf.mxu0
        %v1161 = vpop.f32.mrf.mxu0
        %v1162 = vadd.f32 %v927, %v1161
        %v1163 = vpop.f32.mrf.mxu0
        %1164 = vdwg.mxu0
        %v1165 = vsel %vm990, %v1151, -inf
        %1166 = vmax.xlane.f32.xlu0 %v1165
        %v1167 = vpop.xlane.xlu0 %1166
        %v1168 = vsel %vm990, %v1154, -inf
        %1169 = vmax.xlane.f32.xlu0 %v1168
        %v1170 = vpop.xlane.xlu0 %1169
        %v1171 = vsel %vm990, %v1159, -inf
        %1172 = vmax.xlane.f32.xlu0 %v1171
        %v1173 = vpop.xlane.xlu0 %1172
        %v1174 = vsel %vm990, %v1162, -inf
        %1175 = vmax.xlane.f32.xlu0 %v1174
        %v1176 = vpop.xlane.xlu0 %1175
        %v1177 = vsub.f32 %v1151, %v1167
        %v1178 = vsub.f32 %v1154, %v1170
        %v1179 = vsub.f32 %v1159, %v1173
        %v1180 = vsub.f32 %v1162, %v1176
        %v1181 = vmul.f32 %v1177, 1.442695
        %v1182 = vpow.pop %v1181
        %v1183 = vmul.f32 %v1178, 1.442695
        %v1184 = vpow.pop %v1183
        %v1185 = vmul.f32 %v1179, 1.442695
        %v1186 = vpow.pop %v1185
        %v1187 = vmul.f32 %v1180, 1.442695
        %v1188 = vpow.pop %v1187
        %v1189 = vsel %vm990, %v1182, 0.0
        %1190 = vadd.xlane.f32.xlu0 %v1189
        %v1191 = vpop.xlane.xlu0 %1190
        %v1192 = vsel %vm990, %v1184, 0.0
        %1193 = vadd.xlane.f32.xlu0 %v1192
        %v1194 = vpop.xlane.xlu0 %1193
        %v1195 = vsel %vm990, %v1186, 0.0
        %1196 = vadd.xlane.f32.xlu0 %v1195
        %v1197 = vpop.xlane.xlu0 %1196
        %v1198 = vsel %vm990, %v1188, 0.0
        %1199 = vadd.xlane.f32.xlu0 %v1198
        %v1200 = vpop.xlane.xlu0 %1199
        %v1201 = vrcp.pop %v1191
        %v1202 = vrcp.pop %v1194
        %v1203 = vrcp.pop %v1197
        %v1204 = vrcp.pop %v1200
        %v1205 = vmul.f32 %v1182, %v1201
        %v1206 = vmul.f32 %v1184, %v1202
        %v1207 = vmul.f32 %v1186, %v1203
        %v1208 = vmul.f32 %v1188, %v1204
        %v1209 = vpack.c.bf16 %v1206, %v1205
        %v1210 = vpack.c.bf16 %v1208, %v1207
        %1213 = vrot.lane.b32.xlu0 %v909, 112
        %v1214 = vpop.permute.xlu0 %1213
        %1215 = vrot.lane.b32.xlu0 %v912, 112
        %v1216 = vpop.permute.xlu0 %1215
        %v1220 = vsel %vm990, %v1209, 0
        %v1223 = vsel %vm990, %v1210, 0
        %1225 = vmatprep.subr.bf16.mxu0 0
        %1226 = vmatpush1.bf16.msra.mxu0 0
        %1227 = vmatprep.subr.bf16.mxu0 0
        %1228 = vmatpush1.bf16.msra.mxu0 0
        %1229 = vmatprep.subr.bf16.mxu0 0
        %1230 = vmatpush1.bf16.msra.mxu0 0
        %1231 = vmatprep.subr.bf16.mxu0 0
        %1232 = vmatpush1.bf16.msra.mxu0 0
        %1233 = vmatprep.subr.bf16.mxu0 0
        %1234 = vmatpush1.bf16.msra.mxu0 0
        %1235 = vmatprep.subr.bf16.mxu0 0
        %1236 = vmatpush1.bf16.msra.mxu0 0
        %1237 = vmatprep.subr.bf16.mxu0 0
        %1238 = vmatpush1.bf16.msra.mxu0 %v1216
        %1239 = vmatprep.subr.bf16.mxu0 0
        %1240 = vmatpush1.bf16.msra.mxu0 %v1214
        %1241 = vmatprep.subr.bf16.mxu0 0
        %1242 = vmatpush2.bf16.msra.mxu0 0
        %1243 = vmatprep.subr.bf16.mxu0 0
        %1244 = vmatpush2.bf16.msra.mxu0 0
        %1245 = vmatprep.subr.bf16.mxu0 0
        %1246 = vmatpush2.bf16.msra.mxu0 0
        %1247 = vmatprep.subr.bf16.mxu0 0
        %1248 = vmatpush2.bf16.msra.mxu0 0
        %1249 = vmatprep.subr.bf16.mxu0 0
        %1250 = vmatpush2.bf16.msra.mxu0 0
        %1251 = vmatprep.subr.bf16.mxu0 0
        %1252 = vmatpush2.bf16.msra.mxu0 0
        %1253 = vmatprep.subr.bf16.mxu0 0
        %1254 = vmatpush2.bf16.msra.mxu0 0
        %1255 = vmatprep.subr.bf16.mxu0 0
        %1256 = vmatpush2.bf16.msra.mxu0 0
        %1257 = vmatprep.mubr.bf16.mxu0 0
        %1258 = vmatmul.mubr.bf16.gmra.mxu0 %v1220
        %v1259 = vpop.f32.mrf.mxu0
        %v1260 = vadd.f32 0.0, %v1259
        %v1261 = vpop.f32.mrf.mxu0
        %v1262 = vpop.f32.mrf.mxu0
        %v1263 = vadd.f32 0.0, %v1262
        %v1264 = vpop.f32.mrf.mxu0
        %1265 = vmatprep.mubr.bf16.mxu0 0
        %1266 = vmatmul.mubr.bf16.gmra.mxu0 %v1223
        %v1267 = vpop.f32.mrf.mxu0
        %v1268 = vadd.f32 0.0, %v1267
        %v1269 = vpop.f32.mrf.mxu0
        %v1270 = vpop.f32.mrf.mxu0
        %v1271 = vadd.f32 0.0, %v1270
        %v1272 = vpop.f32.mrf.mxu0
        %1273 = vdwg.mxu0
        %1274 = vrot.lane.b32.xlu0 %v907, 96
        %v1275 = vpop.permute.xlu0 %1274
        %1276 = vrot.lane.b32.xlu0 %v910, 96
        %v1277 = vpop.permute.xlu0 %1276
        %1278 = vrot.lane.b32.xlu0 %v908, 96
        %v1279 = vpop.permute.xlu0 %1278
        %1280 = vrot.lane.b32.xlu0 %v911, 96
        %v1281 = vpop.permute.xlu0 %1280
        %v1283 = vsel %vm928, %v1275, 0
        %v1286 = vsel %vm928, %v1277, 0
        %v1289 = vsel %vm928, %v1279, 0
        %v1292 = vsel %vm928, %v1281, 0
        %1294 = vmatprep.subr.bf16.mxu0 0
        %1295 = vmatpush1.bf16.xpose.msra.mxu0 0
        %1296 = vmatprep.subr.bf16.mxu0 0
        %1297 = vmatpush1.bf16.xpose.msra.mxu0 0
        %1298 = vmatprep.subr.bf16.mxu0 0
        %1299 = vmatpush1.bf16.xpose.msra.mxu0 0
        %1300 = vmatprep.subr.bf16.mxu0 0
        %1301 = vmatpush1.bf16.xpose.msra.mxu0 0
        %1302 = vmatprep.subr.bf16.mxu0 0
        %1303 = vmatpush1.bf16.xpose.msra.mxu0 0
        %1304 = vmatprep.subr.bf16.mxu0 0
        %1305 = vmatpush1.bf16.xpose.msra.mxu0 0
        %1306 = vmatprep.subr.bf16.mxu0 0
        %1307 = vmatpush1.bf16.xpose.msra.mxu0 %v1292
        %1308 = vmatprep.subr.bf16.mxu0 0
        %1309 = vmatpush1.bf16.xpose.msra.mxu0 %v1289
        %1310 = vmatprep.subr.bf16.mxu0 0
        %1311 = vmatpush2.bf16.xpose.msra.mxu0 0
        %1312 = vmatprep.subr.bf16.mxu0 0
        %1313 = vmatpush2.bf16.xpose.msra.mxu0 0
        %1314 = vmatprep.subr.bf16.mxu0 0
        %1315 = vmatpush2.bf16.xpose.msra.mxu0 0
        %1316 = vmatprep.subr.bf16.mxu0 0
        %1317 = vmatpush2.bf16.xpose.msra.mxu0 0
        %1318 = vmatprep.subr.bf16.mxu0 0
        %1319 = vmatpush2.bf16.xpose.msra.mxu0 0
        %1320 = vmatprep.subr.bf16.mxu0 0
        %1321 = vmatpush2.bf16.xpose.msra.mxu0 0
        %1322 = vmatprep.subr.bf16.mxu0 0
        %1323 = vmatpush2.bf16.xpose.msra.mxu0 0
        %1324 = vmatprep.subr.bf16.mxu0 0
        %1325 = vmatpush2.bf16.xpose.msra.mxu0 0
        %1326 = vmatprep.mubr.bf16.mxu0 0
        %1327 = vmatmul.mubr.bf16.gmra.mxu0 %v1283
        %v1328 = vpop.f32.mrf.mxu0
        %v1329 = vadd.f32 %v924, %v1328
        %v1330 = vpop.f32.mrf.mxu0
        %v1331 = vpop.f32.mrf.mxu0
        %v1332 = vadd.f32 %v925, %v1331
        %v1333 = vpop.f32.mrf.mxu0
        %1334 = vmatprep.mubr.bf16.mxu0 0
        %1335 = vmatmul.mubr.bf16.gmra.mxu0 %v1286
        %v1336 = vpop.f32.mrf.mxu0
        %v1337 = vadd.f32 %v926, %v1336
        %v1338 = vpop.f32.mrf.mxu0
        %v1339 = vpop.f32.mrf.mxu0
        %v1340 = vadd.f32 %v927, %v1339
        %v1341 = vpop.f32.mrf.mxu0
        %1342 = vdwg.mxu0
        %v1343 = vsel %vm990, %v1329, -inf
        %1344 = vmax.xlane.f32.xlu0 %v1343
        %v1345 = vpop.xlane.xlu0 %1344
        %v1346 = vsel %vm990, %v1332, -inf
        %1347 = vmax.xlane.f32.xlu0 %v1346
        %v1348 = vpop.xlane.xlu0 %1347
        %v1349 = vsel %vm990, %v1337, -inf
        %1350 = vmax.xlane.f32.xlu0 %v1349
        %v1351 = vpop.xlane.xlu0 %1350
        %v1352 = vsel %vm990, %v1340, -inf
        %1353 = vmax.xlane.f32.xlu0 %v1352
        %v1354 = vpop.xlane.xlu0 %1353
        %v1355 = vsub.f32 %v1329, %v1345
        %v1356 = vsub.f32 %v1332, %v1348
        %v1357 = vsub.f32 %v1337, %v1351
        %v1358 = vsub.f32 %v1340, %v1354
        %v1359 = vmul.f32 %v1355, 1.442695
        %v1360 = vpow.pop %v1359
        %v1361 = vmul.f32 %v1356, 1.442695
        %v1362 = vpow.pop %v1361
        %v1363 = vmul.f32 %v1357, 1.442695
        %v1364 = vpow.pop %v1363
        %v1365 = vmul.f32 %v1358, 1.442695
        %v1366 = vpow.pop %v1365
        %v1367 = vsel %vm990, %v1360, 0.0
        %1368 = vadd.xlane.f32.xlu0 %v1367
        %v1369 = vpop.xlane.xlu0 %1368
        %v1370 = vsel %vm990, %v1362, 0.0
        %1371 = vadd.xlane.f32.xlu0 %v1370
        %v1372 = vpop.xlane.xlu0 %1371
        %v1373 = vsel %vm990, %v1364, 0.0
        %1374 = vadd.xlane.f32.xlu0 %v1373
        %v1375 = vpop.xlane.xlu0 %1374
        %v1376 = vsel %vm990, %v1366, 0.0
        %1377 = vadd.xlane.f32.xlu0 %v1376
        %v1378 = vpop.xlane.xlu0 %1377
        %v1379 = vrcp.pop %v1369
        %v1380 = vrcp.pop %v1372
        %v1381 = vrcp.pop %v1375
        %v1382 = vrcp.pop %v1378
        %v1383 = vmul.f32 %v1360, %v1379
        %v1384 = vmul.f32 %v1362, %v1380
        %v1385 = vmul.f32 %v1364, %v1381
        %v1386 = vmul.f32 %v1366, %v1382
        %v1387 = vpack.c.bf16 %v1384, %v1383
        %v1388 = vpack.c.bf16 %v1386, %v1385
        %1389 = vrot.lane.b32.xlu0 %v909, 96
        %v1390 = vpop.permute.xlu0 %1389
        %1391 = vrot.lane.b32.xlu0 %v912, 96
        %v1392 = vpop.permute.xlu0 %1391
        %v1396 = vsel %vm990, %v1387, 0
        %v1399 = vsel %vm990, %v1388, 0
        %1401 = vmatprep.subr.bf16.mxu0 0
        %1402 = vmatpush1.bf16.msra.mxu0 0
        %1403 = vmatprep.subr.bf16.mxu0 0
        %1404 = vmatpush1.bf16.msra.mxu0 0
        %1405 = vmatprep.subr.bf16.mxu0 0
        %1406 = vmatpush1.bf16.msra.mxu0 0
        %1407 = vmatprep.subr.bf16.mxu0 0
        %1408 = vmatpush1.bf16.msra.mxu0 0
        %1409 = vmatprep.subr.bf16.mxu0 0
        %1410 = vmatpush1.bf16.msra.mxu0 0
        %1411 = vmatprep.subr.bf16.mxu0 0
        %1412 = vmatpush1.bf16.msra.mxu0 0
        %1413 = vmatprep.subr.bf16.mxu0 0
        %1414 = vmatpush1.bf16.msra.mxu0 %v1392
        %1415 = vmatprep.subr.bf16.mxu0 0
        %1416 = vmatpush1.bf16.msra.mxu0 %v1390
        %1417 = vmatprep.subr.bf16.mxu0 0
        %1418 = vmatpush2.bf16.msra.mxu0 0
        %1419 = vmatprep.subr.bf16.mxu0 0
        %1420 = vmatpush2.bf16.msra.mxu0 0
        %1421 = vmatprep.subr.bf16.mxu0 0
        %1422 = vmatpush2.bf16.msra.mxu0 0
        %1423 = vmatprep.subr.bf16.mxu0 0
        %1424 = vmatpush2.bf16.msra.mxu0 0
        %1425 = vmatprep.subr.bf16.mxu0 0
        %1426 = vmatpush2.bf16.msra.mxu0 0
        %1427 = vmatprep.subr.bf16.mxu0 0
        %1428 = vmatpush2.bf16.msra.mxu0 0
        %1429 = vmatprep.subr.bf16.mxu0 0
        %1430 = vmatpush2.bf16.msra.mxu0 0
        %1431 = vmatprep.subr.bf16.mxu0 0
        %1432 = vmatpush2.bf16.msra.mxu0 0
        %1433 = vmatprep.mubr.bf16.mxu0 0
        %1434 = vmatmul.mubr.bf16.gmra.mxu0 %v1396
        %v1435 = vpop.f32.mrf.mxu0
        %v1436 = vadd.f32 0.0, %v1435
        %v1437 = vpop.f32.mrf.mxu0
        %v1438 = vpop.f32.mrf.mxu0
        %v1439 = vadd.f32 0.0, %v1438
        %v1440 = vpop.f32.mrf.mxu0
        %1441 = vmatprep.mubr.bf16.mxu0 0
        %1442 = vmatmul.mubr.bf16.gmra.mxu0 %v1399
        %v1443 = vpop.f32.mrf.mxu0
        %v1444 = vadd.f32 0.0, %v1443
        %v1445 = vpop.f32.mrf.mxu0
        %v1446 = vpop.f32.mrf.mxu0
        %v1447 = vadd.f32 0.0, %v1446
        %v1448 = vpop.f32.mrf.mxu0
        %1449 = vdwg.mxu0
        %1450 = vrot.lane.b32.xlu0 %v907, 80
        %v1451 = vpop.permute.xlu0 %1450
        %1452 = vrot.lane.b32.xlu0 %v910, 80
        %v1453 = vpop.permute.xlu0 %1452
        %1454 = vrot.lane.b32.xlu0 %v908, 80
        %v1455 = vpop.permute.xlu0 %1454
        %1456 = vrot.lane.b32.xlu0 %v911, 80
        %v1457 = vpop.permute.xlu0 %1456
        %v1459 = vsel %vm928, %v1451, 0
        %v1462 = vsel %vm928, %v1453, 0
        %v1465 = vsel %vm928, %v1455, 0
        %v1468 = vsel %vm928, %v1457, 0
        %1470 = vmatprep.subr.bf16.mxu0 0
        %1471 = vmatpush1.bf16.xpose.msra.mxu0 0
        %1472 = vmatprep.subr.bf16.mxu0 0
        %1473 = vmatpush1.bf16.xpose.msra.mxu0 0
        %1474 = vmatprep.subr.bf16.mxu0 0
        %1475 = vmatpush1.bf16.xpose.msra.mxu0 0
        %1476 = vmatprep.subr.bf16.mxu0 0
        %1477 = vmatpush1.bf16.xpose.msra.mxu0 0
        %1478 = vmatprep.subr.bf16.mxu0 0
        %1479 = vmatpush1.bf16.xpose.msra.mxu0 0
        %1480 = vmatprep.subr.bf16.mxu0 0
        %1481 = vmatpush1.bf16.xpose.msra.mxu0 0
        %1482 = vmatprep.subr.bf16.mxu0 0
        %1483 = vmatpush1.bf16.xpose.msra.mxu0 %v1468
        %1484 = vmatprep.subr.bf16.mxu0 0
        %1485 = vmatpush1.bf16.xpose.msra.mxu0 %v1465
        %1486 = vmatprep.subr.bf16.mxu0 0
        %1487 = vmatpush2.bf16.xpose.msra.mxu0 0
        %1488 = vmatprep.subr.bf16.mxu0 0
        %1489 = vmatpush2.bf16.xpose.msra.mxu0 0
        %1490 = vmatprep.subr.bf16.mxu0 0
        %1491 = vmatpush2.bf16.xpose.msra.mxu0 0
        %1492 = vmatprep.subr.bf16.mxu0 0
        %1493 = vmatpush2.bf16.xpose.msra.mxu0 0
        %1494 = vmatprep.subr.bf16.mxu0 0
        %1495 = vmatpush2.bf16.xpose.msra.mxu0 0
        %1496 = vmatprep.subr.bf16.mxu0 0
        %1497 = vmatpush2.bf16.xpose.msra.mxu0 0
        %1498 = vmatprep.subr.bf16.mxu0 0
        %1499 = vmatpush2.bf16.xpose.msra.mxu0 0
        %1500 = vmatprep.subr.bf16.mxu0 0
        %1501 = vmatpush2.bf16.xpose.msra.mxu0 0
        %1502 = vmatprep.mubr.bf16.mxu0 0
        %1503 = vmatmul.mubr.bf16.gmra.mxu0 %v1459
        %v1504 = vpop.f32.mrf.mxu0
        %v1505 = vadd.f32 %v924, %v1504
        %v1506 = vpop.f32.mrf.mxu0
        %v1507 = vpop.f32.mrf.mxu0
        %v1508 = vadd.f32 %v925, %v1507
        %v1509 = vpop.f32.mrf.mxu0
        %1510 = vmatprep.mubr.bf16.mxu0 0
        %1511 = vmatmul.mubr.bf16.gmra.mxu0 %v1462
        %v1512 = vpop.f32.mrf.mxu0
        %v1513 = vadd.f32 %v926, %v1512
        %v1514 = vpop.f32.mrf.mxu0
        %v1515 = vpop.f32.mrf.mxu0
        %v1516 = vadd.f32 %v927, %v1515
        %v1517 = vpop.f32.mrf.mxu0
        %1518 = vdwg.mxu0
        %v1519 = vsel %vm990, %v1505, -inf
        %1520 = vmax.xlane.f32.xlu0 %v1519
        %v1521 = vpop.xlane.xlu0 %1520
        %v1522 = vsel %vm990, %v1508, -inf
        %1523 = vmax.xlane.f32.xlu0 %v1522
        %v1524 = vpop.xlane.xlu0 %1523
        %v1525 = vsel %vm990, %v1513, -inf
        %1526 = vmax.xlane.f32.xlu0 %v1525
        %v1527 = vpop.xlane.xlu0 %1526
        %v1528 = vsel %vm990, %v1516, -inf
        %1529 = vmax.xlane.f32.xlu0 %v1528
        %v1530 = vpop.xlane.xlu0 %1529
        %v1531 = vsub.f32 %v1505, %v1521
        %v1532 = vsub.f32 %v1508, %v1524
        %v1533 = vsub.f32 %v1513, %v1527
        %v1534 = vsub.f32 %v1516, %v1530
        %v1535 = vmul.f32 %v1531, 1.442695
        %v1536 = vpow.pop %v1535
        %v1537 = vmul.f32 %v1532, 1.442695
        %v1538 = vpow.pop %v1537
        %v1539 = vmul.f32 %v1533, 1.442695
        %v1540 = vpow.pop %v1539
        %v1541 = vmul.f32 %v1534, 1.442695
        %v1542 = vpow.pop %v1541
        %v1543 = vsel %vm990, %v1536, 0.0
        %1544 = vadd.xlane.f32.xlu0 %v1543
        %v1545 = vpop.xlane.xlu0 %1544
        %v1546 = vsel %vm990, %v1538, 0.0
        %1547 = vadd.xlane.f32.xlu0 %v1546
        %v1548 = vpop.xlane.xlu0 %1547
        %v1549 = vsel %vm990, %v1540, 0.0
        %1550 = vadd.xlane.f32.xlu0 %v1549
        %v1551 = vpop.xlane.xlu0 %1550
        %v1552 = vsel %vm990, %v1542, 0.0
        %1553 = vadd.xlane.f32.xlu0 %v1552
        %v1554 = vpop.xlane.xlu0 %1553
        %v1555 = vrcp.pop %v1545
        %v1556 = vrcp.pop %v1548
        %v1557 = vrcp.pop %v1551
        %v1558 = vrcp.pop %v1554
        %v1559 = vmul.f32 %v1536, %v1555
        %v1560 = vmul.f32 %v1538, %v1556
        %v1561 = vmul.f32 %v1540, %v1557
        %v1562 = vmul.f32 %v1542, %v1558
        %v1563 = vpack.c.bf16 %v1560, %v1559
        %v1564 = vpack.c.bf16 %v1562, %v1561
        %1565 = vrot.lane.b32.xlu0 %v909, 80
        %v1566 = vpop.permute.xlu0 %1565
        %1567 = vrot.lane.b32.xlu0 %v912, 80
        %v1568 = vpop.permute.xlu0 %1567
        %v1572 = vsel %vm990, %v1563, 0
        %v1575 = vsel %vm990, %v1564, 0
        %1577 = vmatprep.subr.bf16.mxu0 0
        %1578 = vmatpush1.bf16.msra.mxu0 0
        %1579 = vmatprep.subr.bf16.mxu0 0
        %1580 = vmatpush1.bf16.msra.mxu0 0
        %1581 = vmatprep.subr.bf16.mxu0 0
        %1582 = vmatpush1.bf16.msra.mxu0 0
        %1583 = vmatprep.subr.bf16.mxu0 0
        %1584 = vmatpush1.bf16.msra.mxu0 0
        %1585 = vmatprep.subr.bf16.mxu0 0
        %1586 = vmatpush1.bf16.msra.mxu0 0
        %1587 = vmatprep.subr.bf16.mxu0 0
        %1588 = vmatpush1.bf16.msra.mxu0 0
        %1589 = vmatprep.subr.bf16.mxu0 0
        %1590 = vmatpush1.bf16.msra.mxu0 %v1568
        %1591 = vmatprep.subr.bf16.mxu0 0
        %1592 = vmatpush1.bf16.msra.mxu0 %v1566
        %1593 = vmatprep.subr.bf16.mxu0 0
        %1594 = vmatpush2.bf16.msra.mxu0 0
        %1595 = vmatprep.subr.bf16.mxu0 0
        %1596 = vmatpush2.bf16.msra.mxu0 0
        %1597 = vmatprep.subr.bf16.mxu0 0
        %1598 = vmatpush2.bf16.msra.mxu0 0
        %1599 = vmatprep.subr.bf16.mxu0 0
        %1600 = vmatpush2.bf16.msra.mxu0 0
        %1601 = vmatprep.subr.bf16.mxu0 0
        %1602 = vmatpush2.bf16.msra.mxu0 0
        %1603 = vmatprep.subr.bf16.mxu0 0
        %1604 = vmatpush2.bf16.msra.mxu0 0
        %1605 = vmatprep.subr.bf16.mxu0 0
        %1606 = vmatpush2.bf16.msra.mxu0 0
        %1607 = vmatprep.subr.bf16.mxu0 0
        %1608 = vmatpush2.bf16.msra.mxu0 0
        %1609 = vmatprep.mubr.bf16.mxu0 0
        %1610 = vmatmul.mubr.bf16.gmra.mxu0 %v1572
        %v1611 = vpop.f32.mrf.mxu0
        %v1612 = vadd.f32 0.0, %v1611
        %v1613 = vpop.f32.mrf.mxu0
        %v1614 = vpop.f32.mrf.mxu0
        %v1615 = vadd.f32 0.0, %v1614
        %v1616 = vpop.f32.mrf.mxu0
        %1617 = vmatprep.mubr.bf16.mxu0 0
        %1618 = vmatmul.mubr.bf16.gmra.mxu0 %v1575
        %v1619 = vpop.f32.mrf.mxu0
        %v1620 = vadd.f32 0.0, %v1619
        %v1621 = vpop.f32.mrf.mxu0
        %v1622 = vpop.f32.mrf.mxu0
        %v1623 = vadd.f32 0.0, %v1622
        %v1624 = vpop.f32.mrf.mxu0
        %1625 = vdwg.mxu0
        %1626 = vrot.lane.b32.xlu0 %v907, 64
        %v1627 = vpop.permute.xlu0 %1626
        %1628 = vrot.lane.b32.xlu0 %v910, 64
        %v1629 = vpop.permute.xlu0 %1628
        %1630 = vrot.lane.b32.xlu0 %v908, 64
        %v1631 = vpop.permute.xlu0 %1630
        %1632 = vrot.lane.b32.xlu0 %v911, 64
        %v1633 = vpop.permute.xlu0 %1632
        %v1635 = vsel %vm928, %v1627, 0
        %v1638 = vsel %vm928, %v1629, 0
        %v1641 = vsel %vm928, %v1631, 0
        %v1644 = vsel %vm928, %v1633, 0
        %1646 = vmatprep.subr.bf16.mxu0 0
        %1647 = vmatpush1.bf16.xpose.msra.mxu0 0
        %1648 = vmatprep.subr.bf16.mxu0 0
        %1649 = vmatpush1.bf16.xpose.msra.mxu0 0
        %1650 = vmatprep.subr.bf16.mxu0 0
        %1651 = vmatpush1.bf16.xpose.msra.mxu0 0
        %1652 = vmatprep.subr.bf16.mxu0 0
        %1653 = vmatpush1.bf16.xpose.msra.mxu0 0
        %1654 = vmatprep.subr.bf16.mxu0 0
        %1655 = vmatpush1.bf16.xpose.msra.mxu0 0
        %1656 = vmatprep.subr.bf16.mxu0 0
        %1657 = vmatpush1.bf16.xpose.msra.mxu0 0
        %1658 = vmatprep.subr.bf16.mxu0 0
        %1659 = vmatpush1.bf16.xpose.msra.mxu0 %v1644
        %1660 = vmatprep.subr.bf16.mxu0 0
        %1661 = vmatpush1.bf16.xpose.msra.mxu0 %v1641
        %1662 = vmatprep.subr.bf16.mxu0 0
        %1663 = vmatpush2.bf16.xpose.msra.mxu0 0
        %1664 = vmatprep.subr.bf16.mxu0 0
        %1665 = vmatpush2.bf16.xpose.msra.mxu0 0
        %1666 = vmatprep.subr.bf16.mxu0 0
        %1667 = vmatpush2.bf16.xpose.msra.mxu0 0
        %1668 = vmatprep.subr.bf16.mxu0 0
        %1669 = vmatpush2.bf16.xpose.msra.mxu0 0
        %1670 = vmatprep.subr.bf16.mxu0 0
        %1671 = vmatpush2.bf16.xpose.msra.mxu0 0
        %1672 = vmatprep.subr.bf16.mxu0 0
        %1673 = vmatpush2.bf16.xpose.msra.mxu0 0
        %1674 = vmatprep.subr.bf16.mxu0 0
        %1675 = vmatpush2.bf16.xpose.msra.mxu0 0
        %1676 = vmatprep.subr.bf16.mxu0 0
        %1677 = vmatpush2.bf16.xpose.msra.mxu0 0
        %1678 = vmatprep.mubr.bf16.mxu0 0
        %1679 = vmatmul.mubr.bf16.gmra.mxu0 %v1635
        %v1680 = vpop.f32.mrf.mxu0
        %v1681 = vadd.f32 %v924, %v1680
        %v1682 = vpop.f32.mrf.mxu0
        %v1683 = vpop.f32.mrf.mxu0
        %v1684 = vadd.f32 %v925, %v1683
        %v1685 = vpop.f32.mrf.mxu0
        %1686 = vmatprep.mubr.bf16.mxu0 0
        %1687 = vmatmul.mubr.bf16.gmra.mxu0 %v1638
        %v1688 = vpop.f32.mrf.mxu0
        %v1689 = vadd.f32 %v926, %v1688
        %v1690 = vpop.f32.mrf.mxu0
        %v1691 = vpop.f32.mrf.mxu0
        %v1692 = vadd.f32 %v927, %v1691
        %v1693 = vpop.f32.mrf.mxu0
        %1694 = vdwg.mxu0
        %v1695 = vsel %vm990, %v1681, -inf
        %1696 = vmax.xlane.f32.xlu0 %v1695
        %v1697 = vpop.xlane.xlu0 %1696
        %v1698 = vsel %vm990, %v1684, -inf
        %1699 = vmax.xlane.f32.xlu0 %v1698
        %v1700 = vpop.xlane.xlu0 %1699
        %v1701 = vsel %vm990, %v1689, -inf
        %1702 = vmax.xlane.f32.xlu0 %v1701
        %v1703 = vpop.xlane.xlu0 %1702
        %v1704 = vsel %vm990, %v1692, -inf
        %1705 = vmax.xlane.f32.xlu0 %v1704
        %v1706 = vpop.xlane.xlu0 %1705
        %v1707 = vsub.f32 %v1681, %v1697
        %v1708 = vsub.f32 %v1684, %v1700
        %v1709 = vsub.f32 %v1689, %v1703
        %v1710 = vsub.f32 %v1692, %v1706
        %v1711 = vmul.f32 %v1707, 1.442695
        %v1712 = vpow.pop %v1711
        %v1713 = vmul.f32 %v1708, 1.442695
        %v1714 = vpow.pop %v1713
        %v1715 = vmul.f32 %v1709, 1.442695
        %v1716 = vpow.pop %v1715
        %v1717 = vmul.f32 %v1710, 1.442695
        %v1718 = vpow.pop %v1717
        %v1719 = vsel %vm990, %v1712, 0.0
        %1720 = vadd.xlane.f32.xlu0 %v1719
        %v1721 = vpop.xlane.xlu0 %1720
        %v1722 = vsel %vm990, %v1714, 0.0
        %1723 = vadd.xlane.f32.xlu0 %v1722
        %v1724 = vpop.xlane.xlu0 %1723
        %v1725 = vsel %vm990, %v1716, 0.0
        %1726 = vadd.xlane.f32.xlu0 %v1725
        %v1727 = vpop.xlane.xlu0 %1726
        %v1728 = vsel %vm990, %v1718, 0.0
        %1729 = vadd.xlane.f32.xlu0 %v1728
        %v1730 = vpop.xlane.xlu0 %1729
        %v1731 = vrcp.pop %v1721
        %v1732 = vrcp.pop %v1724
        %v1733 = vrcp.pop %v1727
        %v1734 = vrcp.pop %v1730
        %v1735 = vmul.f32 %v1712, %v1731
        %v1736 = vmul.f32 %v1714, %v1732
        %v1737 = vmul.f32 %v1716, %v1733
        %v1738 = vmul.f32 %v1718, %v1734
        %v1739 = vpack.c.bf16 %v1736, %v1735
        %v1740 = vpack.c.bf16 %v1738, %v1737
        %1741 = vrot.lane.b32.xlu0 %v909, 64
        %v1742 = vpop.permute.xlu0 %1741
        %1743 = vrot.lane.b32.xlu0 %v912, 64
        %v1744 = vpop.permute.xlu0 %1743
        %v1748 = vsel %vm990, %v1739, 0
        %v1751 = vsel %vm990, %v1740, 0
        %1753 = vmatprep.subr.bf16.mxu0 0
        %1754 = vmatpush1.bf16.msra.mxu0 0
        %1755 = vmatprep.subr.bf16.mxu0 0
        %1756 = vmatpush1.bf16.msra.mxu0 0
        %1757 = vmatprep.subr.bf16.mxu0 0
        %1758 = vmatpush1.bf16.msra.mxu0 0
        %1759 = vmatprep.subr.bf16.mxu0 0
        %1760 = vmatpush1.bf16.msra.mxu0 0
        %1761 = vmatprep.subr.bf16.mxu0 0
        %1762 = vmatpush1.bf16.msra.mxu0 0
        %1763 = vmatprep.subr.bf16.mxu0 0
        %1764 = vmatpush1.bf16.msra.mxu0 0
        %1765 = vmatprep.subr.bf16.mxu0 0
        %1766 = vmatpush1.bf16.msra.mxu0 %v1744
        %1767 = vmatprep.subr.bf16.mxu0 0
        %1768 = vmatpush1.bf16.msra.mxu0 %v1742
        %1769 = vmatprep.subr.bf16.mxu0 0
        %1770 = vmatpush2.bf16.msra.mxu0 0
        %1771 = vmatprep.subr.bf16.mxu0 0
        %1772 = vmatpush2.bf16.msra.mxu0 0
        %1773 = vmatprep.subr.bf16.mxu0 0
        %1774 = vmatpush2.bf16.msra.mxu0 0
        %1775 = vmatprep.subr.bf16.mxu0 0
        %1776 = vmatpush2.bf16.msra.mxu0 0
        %1777 = vmatprep.subr.bf16.mxu0 0
        %1778 = vmatpush2.bf16.msra.mxu0 0
        %1779 = vmatprep.subr.bf16.mxu0 0
        %1780 = vmatpush2.bf16.msra.mxu0 0
        %1781 = vmatprep.subr.bf16.mxu0 0
        %1782 = vmatpush2.bf16.msra.mxu0 0
        %1783 = vmatprep.subr.bf16.mxu0 0
        %1784 = vmatpush2.bf16.msra.mxu0 0
        %1785 = vmatprep.mubr.bf16.mxu0 0
        %1786 = vmatmul.mubr.bf16.gmra.mxu0 %v1748
        %v1787 = vpop.f32.mrf.mxu0
        %v1788 = vadd.f32 0.0, %v1787
        %v1789 = vpop.f32.mrf.mxu0
        %v1790 = vpop.f32.mrf.mxu0
        %v1791 = vadd.f32 0.0, %v1790
        %v1792 = vpop.f32.mrf.mxu0
        %1793 = vmatprep.mubr.bf16.mxu0 0
        %1794 = vmatmul.mubr.bf16.gmra.mxu0 %v1751
        %v1795 = vpop.f32.mrf.mxu0
        %v1796 = vadd.f32 0.0, %v1795
        %v1797 = vpop.f32.mrf.mxu0
        %v1798 = vpop.f32.mrf.mxu0
        %v1799 = vadd.f32 0.0, %v1798
        %v1800 = vpop.f32.mrf.mxu0
        %1801 = vdwg.mxu0
        %1802 = vrot.lane.b32.xlu0 %v907, 48
        %v1803 = vpop.permute.xlu0 %1802
        %1804 = vrot.lane.b32.xlu0 %v910, 48
        %v1805 = vpop.permute.xlu0 %1804
        %1806 = vrot.lane.b32.xlu0 %v908, 48
        %v1807 = vpop.permute.xlu0 %1806
        %1808 = vrot.lane.b32.xlu0 %v911, 48
        %v1809 = vpop.permute.xlu0 %1808
        %v1811 = vsel %vm928, %v1803, 0
        %v1814 = vsel %vm928, %v1805, 0
        %v1817 = vsel %vm928, %v1807, 0
        %v1820 = vsel %vm928, %v1809, 0
        %1822 = vmatprep.subr.bf16.mxu0 0
        %1823 = vmatpush1.bf16.xpose.msra.mxu0 0
        %1824 = vmatprep.subr.bf16.mxu0 0
        %1825 = vmatpush1.bf16.xpose.msra.mxu0 0
        %1826 = vmatprep.subr.bf16.mxu0 0
        %1827 = vmatpush1.bf16.xpose.msra.mxu0 0
        %1828 = vmatprep.subr.bf16.mxu0 0
        %1829 = vmatpush1.bf16.xpose.msra.mxu0 0
        %1830 = vmatprep.subr.bf16.mxu0 0
        %1831 = vmatpush1.bf16.xpose.msra.mxu0 0
        %1832 = vmatprep.subr.bf16.mxu0 0
        %1833 = vmatpush1.bf16.xpose.msra.mxu0 0
        %1834 = vmatprep.subr.bf16.mxu0 0
        %1835 = vmatpush1.bf16.xpose.msra.mxu0 %v1820
        %1836 = vmatprep.subr.bf16.mxu0 0
        %1837 = vmatpush1.bf16.xpose.msra.mxu0 %v1817
        %1838 = vmatprep.subr.bf16.mxu0 0
        %1839 = vmatpush2.bf16.xpose.msra.mxu0 0
        %1840 = vmatprep.subr.bf16.mxu0 0
        %1841 = vmatpush2.bf16.xpose.msra.mxu0 0
        %1842 = vmatprep.subr.bf16.mxu0 0
        %1843 = vmatpush2.bf16.xpose.msra.mxu0 0
        %1844 = vmatprep.subr.bf16.mxu0 0
        %1845 = vmatpush2.bf16.xpose.msra.mxu0 0
        %1846 = vmatprep.subr.bf16.mxu0 0
        %1847 = vmatpush2.bf16.xpose.msra.mxu0 0
        %1848 = vmatprep.subr.bf16.mxu0 0
        %1849 = vmatpush2.bf16.xpose.msra.mxu0 0
        %1850 = vmatprep.subr.bf16.mxu0 0
        %1851 = vmatpush2.bf16.xpose.msra.mxu0 0
        %1852 = vmatprep.subr.bf16.mxu0 0
        %1853 = vmatpush2.bf16.xpose.msra.mxu0 0
        %1854 = vmatprep.mubr.bf16.mxu0 0
        %1855 = vmatmul.mubr.bf16.gmra.mxu0 %v1811
        %v1856 = vpop.f32.mrf.mxu0
        %v1857 = vadd.f32 %v924, %v1856
        %v1858 = vpop.f32.mrf.mxu0
        %v1859 = vpop.f32.mrf.mxu0
        %v1860 = vadd.f32 %v925, %v1859
        %v1861 = vpop.f32.mrf.mxu0
        %1862 = vmatprep.mubr.bf16.mxu0 0
        %1863 = vmatmul.mubr.bf16.gmra.mxu0 %v1814
        %v1864 = vpop.f32.mrf.mxu0
        %v1865 = vadd.f32 %v926, %v1864
        %v1866 = vpop.f32.mrf.mxu0
        %v1867 = vpop.f32.mrf.mxu0
        %v1868 = vadd.f32 %v927, %v1867
        %v1869 = vpop.f32.mrf.mxu0
        %1870 = vdwg.mxu0
        %v1871 = vsel %vm990, %v1857, -inf
        %1872 = vmax.xlane.f32.xlu0 %v1871
        %v1873 = vpop.xlane.xlu0 %1872
        %v1874 = vsel %vm990, %v1860, -inf
        %1875 = vmax.xlane.f32.xlu0 %v1874
        %v1876 = vpop.xlane.xlu0 %1875
        %v1877 = vsel %vm990, %v1865, -inf
        %1878 = vmax.xlane.f32.xlu0 %v1877
        %v1879 = vpop.xlane.xlu0 %1878
        %v1880 = vsel %vm990, %v1868, -inf
        %1881 = vmax.xlane.f32.xlu0 %v1880
        %v1882 = vpop.xlane.xlu0 %1881
        %v1883 = vsub.f32 %v1857, %v1873
        %v1884 = vsub.f32 %v1860, %v1876
        %v1885 = vsub.f32 %v1865, %v1879
        %v1886 = vsub.f32 %v1868, %v1882
        %v1887 = vmul.f32 %v1883, 1.442695
        %v1888 = vpow.pop %v1887
        %v1889 = vmul.f32 %v1884, 1.442695
        %v1890 = vpow.pop %v1889
        %v1891 = vmul.f32 %v1885, 1.442695
        %v1892 = vpow.pop %v1891
        %v1893 = vmul.f32 %v1886, 1.442695
        %v1894 = vpow.pop %v1893
        %v1895 = vsel %vm990, %v1888, 0.0
        %1896 = vadd.xlane.f32.xlu0 %v1895
        %v1897 = vpop.xlane.xlu0 %1896
        %v1898 = vsel %vm990, %v1890, 0.0
        %1899 = vadd.xlane.f32.xlu0 %v1898
        %v1900 = vpop.xlane.xlu0 %1899
        %v1901 = vsel %vm990, %v1892, 0.0
        %1902 = vadd.xlane.f32.xlu0 %v1901
        %v1903 = vpop.xlane.xlu0 %1902
        %v1904 = vsel %vm990, %v1894, 0.0
        %1905 = vadd.xlane.f32.xlu0 %v1904
        %v1906 = vpop.xlane.xlu0 %1905
        %v1907 = vrcp.pop %v1897
        %v1908 = vrcp.pop %v1900
        %v1909 = vrcp.pop %v1903
        %v1910 = vrcp.pop %v1906
        %v1911 = vmul.f32 %v1888, %v1907
        %v1912 = vmul.f32 %v1890, %v1908
        %v1913 = vmul.f32 %v1892, %v1909
        %v1914 = vmul.f32 %v1894, %v1910
        %v1915 = vpack.c.bf16 %v1912, %v1911
        %v1916 = vpack.c.bf16 %v1914, %v1913
        %1917 = vrot.lane.b32.xlu0 %v909, 48
        %v1918 = vpop.permute.xlu0 %1917
        %1919 = vrot.lane.b32.xlu0 %v912, 48
        %v1920 = vpop.permute.xlu0 %1919
        %v1924 = vsel %vm990, %v1915, 0
        %v1927 = vsel %vm990, %v1916, 0
        %1929 = vmatprep.subr.bf16.mxu0 0
        %1930 = vmatpush1.bf16.msra.mxu0 0
        %1931 = vmatprep.subr.bf16.mxu0 0
        %1932 = vmatpush1.bf16.msra.mxu0 0
        %1933 = vmatprep.subr.bf16.mxu0 0
        %1934 = vmatpush1.bf16.msra.mxu0 0
        %1935 = vmatprep.subr.bf16.mxu0 0
        %1936 = vmatpush1.bf16.msra.mxu0 0
        %1937 = vmatprep.subr.bf16.mxu0 0
        %1938 = vmatpush1.bf16.msra.mxu0 0
        %1939 = vmatprep.subr.bf16.mxu0 0
        %1940 = vmatpush1.bf16.msra.mxu0 0
        %1941 = vmatprep.subr.bf16.mxu0 0
        %1942 = vmatpush1.bf16.msra.mxu0 %v1920
        %1943 = vmatprep.subr.bf16.mxu0 0
        %1944 = vmatpush1.bf16.msra.mxu0 %v1918
        %1945 = vmatprep.subr.bf16.mxu0 0
        %1946 = vmatpush2.bf16.msra.mxu0 0
        %1947 = vmatprep.subr.bf16.mxu0 0
        %1948 = vmatpush2.bf16.msra.mxu0 0
        %1949 = vmatprep.subr.bf16.mxu0 0
        %1950 = vmatpush2.bf16.msra.mxu0 0
        %1951 = vmatprep.subr.bf16.mxu0 0
        %1952 = vmatpush2.bf16.msra.mxu0 0
        %1953 = vmatprep.subr.bf16.mxu0 0
        %1954 = vmatpush2.bf16.msra.mxu0 0
        %1955 = vmatprep.subr.bf16.mxu0 0
        %1956 = vmatpush2.bf16.msra.mxu0 0
        %1957 = vmatprep.subr.bf16.mxu0 0
        %1958 = vmatpush2.bf16.msra.mxu0 0
        %1959 = vmatprep.subr.bf16.mxu0 0
        %1960 = vmatpush2.bf16.msra.mxu0 0
        %1961 = vmatprep.mubr.bf16.mxu0 0
        %1962 = vmatmul.mubr.bf16.gmra.mxu0 %v1924
        %v1963 = vpop.f32.mrf.mxu0
        %v1964 = vadd.f32 0.0, %v1963
        %v1965 = vpop.f32.mrf.mxu0
        %v1966 = vpop.f32.mrf.mxu0
        %v1967 = vadd.f32 0.0, %v1966
        %v1968 = vpop.f32.mrf.mxu0
        %1969 = vmatprep.mubr.bf16.mxu0 0
        %1970 = vmatmul.mubr.bf16.gmra.mxu0 %v1927
        %v1971 = vpop.f32.mrf.mxu0
        %v1972 = vadd.f32 0.0, %v1971
        %v1973 = vpop.f32.mrf.mxu0
        %v1974 = vpop.f32.mrf.mxu0
        %v1975 = vadd.f32 0.0, %v1974
        %v1976 = vpop.f32.mrf.mxu0
        %1977 = vdwg.mxu0
        %1978 = vrot.lane.b32.xlu0 %v907, 32
        %v1979 = vpop.permute.xlu0 %1978
        %1980 = vrot.lane.b32.xlu0 %v910, 32
        %v1981 = vpop.permute.xlu0 %1980
        %1982 = vrot.lane.b32.xlu0 %v908, 32
        %v1983 = vpop.permute.xlu0 %1982
        %1984 = vrot.lane.b32.xlu0 %v911, 32
        %v1985 = vpop.permute.xlu0 %1984
        %v1987 = vsel %vm928, %v1979, 0
        %v1990 = vsel %vm928, %v1981, 0
        %v1993 = vsel %vm928, %v1983, 0
        %v1996 = vsel %vm928, %v1985, 0
        %1998 = vmatprep.subr.bf16.mxu0 0
        %1999 = vmatpush1.bf16.xpose.msra.mxu0 0
        %2000 = vmatprep.subr.bf16.mxu0 0
        %2001 = vmatpush1.bf16.xpose.msra.mxu0 0
        %2002 = vmatprep.subr.bf16.mxu0 0
        %2003 = vmatpush1.bf16.xpose.msra.mxu0 0
        %2004 = vmatprep.subr.bf16.mxu0 0
        %2005 = vmatpush1.bf16.xpose.msra.mxu0 0
        %2006 = vmatprep.subr.bf16.mxu0 0
        %2007 = vmatpush1.bf16.xpose.msra.mxu0 0
        %2008 = vmatprep.subr.bf16.mxu0 0
        %2009 = vmatpush1.bf16.xpose.msra.mxu0 0
        %2010 = vmatprep.subr.bf16.mxu0 0
        %2011 = vmatpush1.bf16.xpose.msra.mxu0 %v1996
        %2012 = vmatprep.subr.bf16.mxu0 0
        %2013 = vmatpush1.bf16.xpose.msra.mxu0 %v1993
        %2014 = vmatprep.subr.bf16.mxu0 0
        %2015 = vmatpush2.bf16.xpose.msra.mxu0 0
        %2016 = vmatprep.subr.bf16.mxu0 0
        %2017 = vmatpush2.bf16.xpose.msra.mxu0 0
        %2018 = vmatprep.subr.bf16.mxu0 0
        %2019 = vmatpush2.bf16.xpose.msra.mxu0 0
        %2020 = vmatprep.subr.bf16.mxu0 0
        %2021 = vmatpush2.bf16.xpose.msra.mxu0 0
        %2022 = vmatprep.subr.bf16.mxu0 0
        %2023 = vmatpush2.bf16.xpose.msra.mxu0 0
        %2024 = vmatprep.subr.bf16.mxu0 0
        %2025 = vmatpush2.bf16.xpose.msra.mxu0 0
        %2026 = vmatprep.subr.bf16.mxu0 0
        %2027 = vmatpush2.bf16.xpose.msra.mxu0 0
        %2028 = vmatprep.subr.bf16.mxu0 0
        %2029 = vmatpush2.bf16.xpose.msra.mxu0 0
        %2030 = vmatprep.mubr.bf16.mxu0 0
        %2031 = vmatmul.mubr.bf16.gmra.mxu0 %v1987
        %v2032 = vpop.f32.mrf.mxu0
        %v2033 = vadd.f32 %v924, %v2032
        %v2034 = vpop.f32.mrf.mxu0
        %v2035 = vpop.f32.mrf.mxu0
        %v2036 = vadd.f32 %v925, %v2035
        %v2037 = vpop.f32.mrf.mxu0
        %2038 = vmatprep.mubr.bf16.mxu0 0
        %2039 = vmatmul.mubr.bf16.gmra.mxu0 %v1990
        %v2040 = vpop.f32.mrf.mxu0
        %v2041 = vadd.f32 %v926, %v2040
        %v2042 = vpop.f32.mrf.mxu0
        %v2043 = vpop.f32.mrf.mxu0
        %v2044 = vadd.f32 %v927, %v2043
        %v2045 = vpop.f32.mrf.mxu0
        %2046 = vdwg.mxu0
        %v2047 = vsel %vm990, %v2033, -inf
        %2048 = vmax.xlane.f32.xlu0 %v2047
        %v2049 = vpop.xlane.xlu0 %2048
        %v2050 = vsel %vm990, %v2036, -inf
        %2051 = vmax.xlane.f32.xlu0 %v2050
        %v2052 = vpop.xlane.xlu0 %2051
        %v2053 = vsel %vm990, %v2041, -inf
        %2054 = vmax.xlane.f32.xlu0 %v2053
        %v2055 = vpop.xlane.xlu0 %2054
        %v2056 = vsel %vm990, %v2044, -inf
        %2057 = vmax.xlane.f32.xlu0 %v2056
        %v2058 = vpop.xlane.xlu0 %2057
        %v2059 = vsub.f32 %v2033, %v2049
        %v2060 = vsub.f32 %v2036, %v2052
        %v2061 = vsub.f32 %v2041, %v2055
        %v2062 = vsub.f32 %v2044, %v2058
        %v2063 = vmul.f32 %v2059, 1.442695
        %v2064 = vpow.pop %v2063
        %v2065 = vmul.f32 %v2060, 1.442695
        %v2066 = vpow.pop %v2065
        %v2067 = vmul.f32 %v2061, 1.442695
        %v2068 = vpow.pop %v2067
        %v2069 = vmul.f32 %v2062, 1.442695
        %v2070 = vpow.pop %v2069
        %v2071 = vsel %vm990, %v2064, 0.0
        %2072 = vadd.xlane.f32.xlu0 %v2071
        %v2073 = vpop.xlane.xlu0 %2072
        %v2074 = vsel %vm990, %v2066, 0.0
        %2075 = vadd.xlane.f32.xlu0 %v2074
        %v2076 = vpop.xlane.xlu0 %2075
        %v2077 = vsel %vm990, %v2068, 0.0
        %2078 = vadd.xlane.f32.xlu0 %v2077
        %v2079 = vpop.xlane.xlu0 %2078
        %v2080 = vsel %vm990, %v2070, 0.0
        %2081 = vadd.xlane.f32.xlu0 %v2080
        %v2082 = vpop.xlane.xlu0 %2081
        %v2083 = vrcp.pop %v2073
        %v2084 = vrcp.pop %v2076
        %v2085 = vrcp.pop %v2079
        %v2086 = vrcp.pop %v2082
        %v2087 = vmul.f32 %v2064, %v2083
        %v2088 = vmul.f32 %v2066, %v2084
        %v2089 = vmul.f32 %v2068, %v2085
        %v2090 = vmul.f32 %v2070, %v2086
        %v2091 = vpack.c.bf16 %v2088, %v2087
        %v2092 = vpack.c.bf16 %v2090, %v2089
        %2093 = vrot.lane.b32.xlu0 %v909, 32
        %v2094 = vpop.permute.xlu0 %2093
        %2095 = vrot.lane.b32.xlu0 %v912, 32
        %v2096 = vpop.permute.xlu0 %2095
        %v2100 = vsel %vm990, %v2091, 0
        %v2103 = vsel %vm990, %v2092, 0
        %2105 = vmatprep.subr.bf16.mxu0 0
        %2106 = vmatpush1.bf16.msra.mxu0 0
        %2107 = vmatprep.subr.bf16.mxu0 0
        %2108 = vmatpush1.bf16.msra.mxu0 0
        %2109 = vmatprep.subr.bf16.mxu0 0
        %2110 = vmatpush1.bf16.msra.mxu0 0
        %2111 = vmatprep.subr.bf16.mxu0 0
        %2112 = vmatpush1.bf16.msra.mxu0 0
        %2113 = vmatprep.subr.bf16.mxu0 0
        %2114 = vmatpush1.bf16.msra.mxu0 0
        %2115 = vmatprep.subr.bf16.mxu0 0
        %2116 = vmatpush1.bf16.msra.mxu0 0
        %2117 = vmatprep.subr.bf16.mxu0 0
        %2118 = vmatpush1.bf16.msra.mxu0 %v2096
        %2119 = vmatprep.subr.bf16.mxu0 0
        %2120 = vmatpush1.bf16.msra.mxu0 %v2094
        %2121 = vmatprep.subr.bf16.mxu0 0
        %2122 = vmatpush2.bf16.msra.mxu0 0
        %2123 = vmatprep.subr.bf16.mxu0 0
        %2124 = vmatpush2.bf16.msra.mxu0 0
        %2125 = vmatprep.subr.bf16.mxu0 0
        %2126 = vmatpush2.bf16.msra.mxu0 0
        %2127 = vmatprep.subr.bf16.mxu0 0
        %2128 = vmatpush2.bf16.msra.mxu0 0
        %2129 = vmatprep.subr.bf16.mxu0 0
        %2130 = vmatpush2.bf16.msra.mxu0 0
        %2131 = vmatprep.subr.bf16.mxu0 0
        %2132 = vmatpush2.bf16.msra.mxu0 0
        %2133 = vmatprep.subr.bf16.mxu0 0
        %2134 = vmatpush2.bf16.msra.mxu0 0
        %2135 = vmatprep.subr.bf16.mxu0 0
        %2136 = vmatpush2.bf16.msra.mxu0 0
        %2137 = vmatprep.mubr.bf16.mxu0 0
        %2138 = vmatmul.mubr.bf16.gmra.mxu0 %v2100
        %v2139 = vpop.f32.mrf.mxu0
        %v2140 = vadd.f32 0.0, %v2139
        %v2141 = vpop.f32.mrf.mxu0
        %v2142 = vpop.f32.mrf.mxu0
        %v2143 = vadd.f32 0.0, %v2142
        %v2144 = vpop.f32.mrf.mxu0
        %2145 = vmatprep.mubr.bf16.mxu0 0
        %2146 = vmatmul.mubr.bf16.gmra.mxu0 %v2103
        %v2147 = vpop.f32.mrf.mxu0
        %v2148 = vadd.f32 0.0, %v2147
        %v2149 = vpop.f32.mrf.mxu0
        %v2150 = vpop.f32.mrf.mxu0
        %v2151 = vadd.f32 0.0, %v2150
        %v2152 = vpop.f32.mrf.mxu0
        %2153 = vdwg.mxu0
        %2154 = vrot.lane.b32.xlu0 %v907, 16
        %v2155 = vpop.permute.xlu0 %2154
        %2156 = vrot.lane.b32.xlu0 %v910, 16
        %v2157 = vpop.permute.xlu0 %2156
        %2158 = vrot.lane.b32.xlu0 %v908, 16
        %v2159 = vpop.permute.xlu0 %2158
        %2160 = vrot.lane.b32.xlu0 %v911, 16
        %v2161 = vpop.permute.xlu0 %2160
        %v2163 = vsel %vm928, %v2155, 0
        %v2166 = vsel %vm928, %v2157, 0
        %v2169 = vsel %vm928, %v2159, 0
        %v2172 = vsel %vm928, %v2161, 0
        %2174 = vmatprep.subr.bf16.mxu0 0
        %2175 = vmatpush1.bf16.xpose.msra.mxu0 0
        %2176 = vmatprep.subr.bf16.mxu0 0
        %2177 = vmatpush1.bf16.xpose.msra.mxu0 0
        %2178 = vmatprep.subr.bf16.mxu0 0
        %2179 = vmatpush1.bf16.xpose.msra.mxu0 0
        %2180 = vmatprep.subr.bf16.mxu0 0
        %2181 = vmatpush1.bf16.xpose.msra.mxu0 0
        %2182 = vmatprep.subr.bf16.mxu0 0
        %2183 = vmatpush1.bf16.xpose.msra.mxu0 0
        %2184 = vmatprep.subr.bf16.mxu0 0
        %2185 = vmatpush1.bf16.xpose.msra.mxu0 0
        %2186 = vmatprep.subr.bf16.mxu0 0
        %2187 = vmatpush1.bf16.xpose.msra.mxu0 %v2172
        %2188 = vmatprep.subr.bf16.mxu0 0
        %2189 = vmatpush1.bf16.xpose.msra.mxu0 %v2169
        %2190 = vmatprep.subr.bf16.mxu0 0
        %2191 = vmatpush2.bf16.xpose.msra.mxu0 0
        %2192 = vmatprep.subr.bf16.mxu0 0
        %2193 = vmatpush2.bf16.xpose.msra.mxu0 0
        %2194 = vmatprep.subr.bf16.mxu0 0
        %2195 = vmatpush2.bf16.xpose.msra.mxu0 0
        %2196 = vmatprep.subr.bf16.mxu0 0
        %2197 = vmatpush2.bf16.xpose.msra.mxu0 0
        %2198 = vmatprep.subr.bf16.mxu0 0
        %2199 = vmatpush2.bf16.xpose.msra.mxu0 0
        %2200 = vmatprep.subr.bf16.mxu0 0
        %2201 = vmatpush2.bf16.xpose.msra.mxu0 0
        %2202 = vmatprep.subr.bf16.mxu0 0
        %2203 = vmatpush2.bf16.xpose.msra.mxu0 0
        %2204 = vmatprep.subr.bf16.mxu0 0
        %2205 = vmatpush2.bf16.xpose.msra.mxu0 0
        %2206 = vmatprep.mubr.bf16.mxu0 0
        %2207 = vmatmul.mubr.bf16.gmra.mxu0 %v2163
        %v2208 = vpop.f32.mrf.mxu0
        %v2209 = vadd.f32 %v924, %v2208
        %v2210 = vpop.f32.mrf.mxu0
        %v2211 = vpop.f32.mrf.mxu0
        %v2212 = vadd.f32 %v925, %v2211
        %v2213 = vpop.f32.mrf.mxu0
        %2214 = vmatprep.mubr.bf16.mxu0 0
        %2215 = vmatmul.mubr.bf16.gmra.mxu0 %v2166
        %v2216 = vpop.f32.mrf.mxu0
        %v2217 = vadd.f32 %v926, %v2216
        %v2218 = vpop.f32.mrf.mxu0
        %v2219 = vpop.f32.mrf.mxu0
        %v2220 = vadd.f32 %v927, %v2219
        %v2221 = vpop.f32.mrf.mxu0
        %2222 = vdwg.mxu0
        %v2223 = vsel %vm990, %v2209, -inf
        %2224 = vmax.xlane.f32.xlu0 %v2223
        %v2225 = vpop.xlane.xlu0 %2224
        %v2226 = vsel %vm990, %v2212, -inf
        %2227 = vmax.xlane.f32.xlu0 %v2226
        %v2228 = vpop.xlane.xlu0 %2227
        %v2229 = vsel %vm990, %v2217, -inf
        %2230 = vmax.xlane.f32.xlu0 %v2229
        %v2231 = vpop.xlane.xlu0 %2230
        %v2232 = vsel %vm990, %v2220, -inf
        %2233 = vmax.xlane.f32.xlu0 %v2232
        %v2234 = vpop.xlane.xlu0 %2233
        %v2235 = vsub.f32 %v2209, %v2225
        %v2236 = vsub.f32 %v2212, %v2228
        %v2237 = vsub.f32 %v2217, %v2231
        %v2238 = vsub.f32 %v2220, %v2234
        %v2239 = vmul.f32 %v2235, 1.442695
        %v2240 = vpow.pop %v2239
        %v2241 = vmul.f32 %v2236, 1.442695
        %v2242 = vpow.pop %v2241
        %v2243 = vmul.f32 %v2237, 1.442695
        %v2244 = vpow.pop %v2243
        %v2245 = vmul.f32 %v2238, 1.442695
        %v2246 = vpow.pop %v2245
        %v2247 = vsel %vm990, %v2240, 0.0
        %2248 = vadd.xlane.f32.xlu0 %v2247
        %v2249 = vpop.xlane.xlu0 %2248
        %v2250 = vsel %vm990, %v2242, 0.0
        %2251 = vadd.xlane.f32.xlu0 %v2250
        %v2252 = vpop.xlane.xlu0 %2251
        %v2253 = vsel %vm990, %v2244, 0.0
        %2254 = vadd.xlane.f32.xlu0 %v2253
        %v2255 = vpop.xlane.xlu0 %2254
        %v2256 = vsel %vm990, %v2246, 0.0
        %2257 = vadd.xlane.f32.xlu0 %v2256
        %v2258 = vpop.xlane.xlu0 %2257
        %v2259 = vrcp.pop %v2249
        %v2260 = vrcp.pop %v2252
        %v2261 = vrcp.pop %v2255
        %v2262 = vrcp.pop %v2258
        %v2263 = vmul.f32 %v2240, %v2259
        %v2264 = vmul.f32 %v2242, %v2260
        %v2265 = vmul.f32 %v2244, %v2261
        %v2266 = vmul.f32 %v2246, %v2262
        %v2267 = vpack.c.bf16 %v2264, %v2263
        %v2268 = vpack.c.bf16 %v2266, %v2265
        %2269 = vrot.lane.b32.xlu0 %v909, 16
        %v2270 = vpop.permute.xlu0 %2269
        %2271 = vrot.lane.b32.xlu0 %v912, 16
        %v2272 = vpop.permute.xlu0 %2271
        %v2276 = vsel %vm990, %v2267, 0
        %v2279 = vsel %vm990, %v2268, 0
        %2281 = vmatprep.subr.bf16.mxu0 0
        %2282 = vmatpush1.bf16.msra.mxu0 0
        %2283 = vmatprep.subr.bf16.mxu0 0
        %2284 = vmatpush1.bf16.msra.mxu0 0
        %2285 = vmatprep.subr.bf16.mxu0 0
        %2286 = vmatpush1.bf16.msra.mxu0 0
        %2287 = vmatprep.subr.bf16.mxu0 0
        %2288 = vmatpush1.bf16.msra.mxu0 0
        %2289 = vmatprep.subr.bf16.mxu0 0
        %2290 = vmatpush1.bf16.msra.mxu0 0
        %2291 = vmatprep.subr.bf16.mxu0 0
        %2292 = vmatpush1.bf16.msra.mxu0 0
        %2293 = vmatprep.subr.bf16.mxu0 0
        %2294 = vmatpush1.bf16.msra.mxu0 %v2272
        %2295 = vmatprep.subr.bf16.mxu0 0
        %2296 = vmatpush1.bf16.msra.mxu0 %v2270
        %2297 = vmatprep.subr.bf16.mxu0 0
        %2298 = vmatpush2.bf16.msra.mxu0 0
        %2299 = vmatprep.subr.bf16.mxu0 0
        %2300 = vmatpush2.bf16.msra.mxu0 0
        %2301 = vmatprep.subr.bf16.mxu0 0
        %2302 = vmatpush2.bf16.msra.mxu0 0
        %2303 = vmatprep.subr.bf16.mxu0 0
        %2304 = vmatpush2.bf16.msra.mxu0 0
        %2305 = vmatprep.subr.bf16.mxu0 0
        %2306 = vmatpush2.bf16.msra.mxu0 0
        %2307 = vmatprep.subr.bf16.mxu0 0
        %2308 = vmatpush2.bf16.msra.mxu0 0
        %2309 = vmatprep.subr.bf16.mxu0 0
        %2310 = vmatpush2.bf16.msra.mxu0 0
        %2311 = vmatprep.subr.bf16.mxu0 0
        %2312 = vmatpush2.bf16.msra.mxu0 0
        %2313 = vmatprep.mubr.bf16.mxu0 0
        %2314 = vmatmul.mubr.bf16.gmra.mxu0 %v2276
        %v2315 = vpop.f32.mrf.mxu0
        %v2316 = vadd.f32 0.0, %v2315
        %v2317 = vpop.f32.mrf.mxu0
        %v2318 = vpop.f32.mrf.mxu0
        %v2319 = vadd.f32 0.0, %v2318
        %v2320 = vpop.f32.mrf.mxu0
        %2321 = vmatprep.mubr.bf16.mxu0 0
        %2322 = vmatmul.mubr.bf16.gmra.mxu0 %v2279
        %v2323 = vpop.f32.mrf.mxu0
        %v2324 = vadd.f32 0.0, %v2323
        %v2325 = vpop.f32.mrf.mxu0
        %v2326 = vpop.f32.mrf.mxu0
        %v2327 = vadd.f32 0.0, %v2326
        %v2328 = vpop.f32.mrf.mxu0
        %2329 = vdwg.mxu0
        %2334 = vrot.lane.b32.xlu0 %v1260, 16
        %v2335 = vpop.permute.xlu0 %2334
        %2336 = vrot.lane.b32.xlu0 %v1263, 16
        %v2337 = vpop.permute.xlu0 %2336
        %2338 = vrot.lane.b32.xlu0 %v1268, 16
        %v2339 = vpop.permute.xlu0 %2338
        %2340 = vrot.lane.b32.xlu0 %v1271, 16
        %v2341 = vpop.permute.xlu0 %2340
        %2350 = vrot.lane.b32.xlu0 %v1436, 32
        %v2351 = vpop.permute.xlu0 %2350
        %2352 = vrot.lane.b32.xlu0 %v1439, 32
        %v2353 = vpop.permute.xlu0 %2352
        %2354 = vrot.lane.b32.xlu0 %v1444, 32
        %v2355 = vpop.permute.xlu0 %2354
        %2356 = vrot.lane.b32.xlu0 %v1447, 32
        %v2357 = vpop.permute.xlu0 %2356
        %2366 = vrot.lane.b32.xlu0 %v1612, 48
        %v2367 = vpop.permute.xlu0 %2366
        %2368 = vrot.lane.b32.xlu0 %v1615, 48
        %v2369 = vpop.permute.xlu0 %2368
        %2370 = vrot.lane.b32.xlu0 %v1620, 48
        %v2371 = vpop.permute.xlu0 %2370
        %2372 = vrot.lane.b32.xlu0 %v1623, 48
        %v2373 = vpop.permute.xlu0 %2372
        %2382 = vrot.lane.b32.xlu0 %v1788, 64
        %v2383 = vpop.permute.xlu0 %2382
        %2384 = vrot.lane.b32.xlu0 %v1791, 64
        %v2385 = vpop.permute.xlu0 %2384
        %2386 = vrot.lane.b32.xlu0 %v1796, 64
        %v2387 = vpop.permute.xlu0 %2386
        %2388 = vrot.lane.b32.xlu0 %v1799, 64
        %v2389 = vpop.permute.xlu0 %2388
        %2398 = vrot.lane.b32.xlu0 %v1964, 80
        %v2399 = vpop.permute.xlu0 %2398
        %2400 = vrot.lane.b32.xlu0 %v1967, 80
        %v2401 = vpop.permute.xlu0 %2400
        %2402 = vrot.lane.b32.xlu0 %v1972, 80
        %v2403 = vpop.permute.xlu0 %2402
        %2404 = vrot.lane.b32.xlu0 %v1975, 80
        %v2405 = vpop.permute.xlu0 %2404
        %2414 = vrot.lane.b32.xlu0 %v2140, 96
        %v2415 = vpop.permute.xlu0 %2414
        %2416 = vrot.lane.b32.xlu0 %v2143, 96
        %v2417 = vpop.permute.xlu0 %2416
        %2418 = vrot.lane.b32.xlu0 %v2148, 96
        %v2419 = vpop.permute.xlu0 %2418
        %2420 = vrot.lane.b32.xlu0 %v2151, 96
        %v2421 = vpop.permute.xlu0 %2420
        %2430 = vrot.lane.b32.xlu0 %v2316, 112
        %v2431 = vpop.permute.xlu0 %2430
        %2432 = vrot.lane.b32.xlu0 %v2319, 112
        %v2433 = vpop.permute.xlu0 %2432
        %2434 = vrot.lane.b32.xlu0 %v2324, 112
        %v2435 = vpop.permute.xlu0 %2434
        %2436 = vrot.lane.b32.xlu0 %v2327, 112
        %v2437 = vpop.permute.xlu0 %2436
        %v2442 = vsel %vm928, %v1078, %v2335
        %v2443 = vsel %vm928, %v1081, %v2337
        %v2444 = vsel %vm928, %v1086, %v2339
        %v2445 = vsel %vm928, %v1089, %v2341
        %v2446 = vsel %vm990, %v2442, %v2351
        %v2447 = vsel %vm990, %v2443, %v2353
        %v2448 = vsel %vm990, %v2444, %v2355
        %v2449 = vsel %vm990, %v2445, %v2357
        %vm2450 = vcmask 392192
        %v2451 = vsel %vm2450, %v2446, %v2367
        %v2452 = vsel %vm2450, %v2447, %v2369
        %v2453 = vsel %vm2450, %v2448, %v2371
        %v2454 = vsel %vm2450, %v2449, %v2373
        %vm2455 = vcmask 523264
        %v2456 = vsel %vm2455, %v2451, %v2383
        %v2457 = vsel %vm2455, %v2452, %v2385
        %v2458 = vsel %vm2455, %v2453, %v2387
        %v2459 = vsel %vm2455, %v2454, %v2389
        %vm2460 = vcmask 654336
        %v2461 = vsel %vm2460, %v2456, %v2399
        %v2462 = vsel %vm2460, %v2457, %v2401
        %v2463 = vsel %vm2460, %v2458, %v2403
        %v2464 = vsel %vm2460, %v2459, %v2405
        %vm2465 = vcmask 785408
        %v2466 = vsel %vm2465, %v2461, %v2415
        %v2467 = vsel %vm2465, %v2462, %v2417
        %v2468 = vsel %vm2465, %v2463, %v2419
        %v2469 = vsel %vm2465, %v2464, %v2421
        %vm2470 = vcmask 916480
        %v2471 = vsel %vm2470, %v2466, %v2431
        %v2472 = vsel %vm2470, %v2467, %v2433
        %v2473 = vsel %vm2470, %v2468, %v2435
        %v2474 = vsel %vm2470, %v2469, %v2437
        %v2475 = vpack.c.bf16 %v2472, %v2471
        %v2476 = vpack.c.bf16 %v2474, %v2473
        %v2477 = vld [vmem:[#allocation10] sm:$0xf]
        %v2478 = vld [vmem:[#allocation10 + $0x4] sm:$0xf]
        %v2479 = vld [vmem:[#allocation10 + $0x8] sm:$0xf]
        %v2480 = vld [vmem:[#allocation10 + $0xc] sm:$0xf]
        %v2481 = vld [vmem:[#allocation10 + $0x10] sm:$0xf]
        %v2482 = vld [vmem:[#allocation10 + $0x14] sm:$0xf]
        %v2483 = vld [vmem:[#allocation10 + $0x18] sm:$0xf]
        %v2484 = vld [vmem:[#allocation10 + $0x1c] sm:$0xf]
        %v2485 = vld [vmem:[#allocation10 + $0x20] sm:$0xf]
        %v2486 = vld [vmem:[#allocation10 + $0x24] sm:$0xf]
        %v2487 = vld [vmem:[#allocation10 + $0x28] sm:$0xf]
        %v2488 = vld [vmem:[#allocation10 + $0x2c] sm:$0xf]
        %v2489 = vld [vmem:[#allocation10 + $0x30] sm:$0xf]
        %v2490 = vld [vmem:[#allocation10 + $0x34] sm:$0xf]
        %v2491 = vld [vmem:[#allocation10 + $0x38] sm:$0xf]
        %v2492 = vld [vmem:[#allocation10 + $0x3c] sm:$0xf]
        %v2493 = vld [vmem:[%s6] sm:$0x1]
        %v2495 = vlaneseq
        %v2496 = vshrl.u32 %v2495, 7
        %v2497 = vsub.s32 0, %v2496
        %v2498 = vrot.slane %v2493, %v2497
        %v2516 = vunpack.c.l.b16 %v2477
        %v2517 = vunpack.c.l.b16 %v2478
        %v2518 = vunpack.c.l.b16 %v2479
        %v2519 = vunpack.c.l.b16 %v2480
        %v2520 = vunpack.c.l.b16 %v2481
        %v2521 = vunpack.c.l.b16 %v2482
        %v2522 = vunpack.c.l.b16 %v2483
        %v2523 = vunpack.c.l.b16 %v2484
        %v2524 = vunpack.c.l.b16 %v2485
        %v2525 = vunpack.c.l.b16 %v2486
        %v2526 = vunpack.c.l.b16 %v2487
        %v2527 = vunpack.c.l.b16 %v2488
        %v2528 = vunpack.c.l.b16 %v2489
        %v2529 = vunpack.c.l.b16 %v2490
        %v2530 = vunpack.c.l.b16 %v2491
        %v2531 = vunpack.c.l.b16 %v2492
        %v2532 = vpack.c.b16 %v2517, %v2516
        %v2533 = vpack.c.b16 %v2519, %v2518
        %v2534 = vpack.c.b16 %v2521, %v2520
        %v2535 = vpack.c.b16 %v2523, %v2522
        %v2536 = vpack.c.b16 %v2525, %v2524
        %v2537 = vpack.c.b16 %v2527, %v2526
        %v2538 = vpack.c.b16 %v2529, %v2528
        %v2539 = vpack.c.b16 %v2531, %v2530
        %2548 = vmatprep.subr.bf16.mxu0 0
        %2549 = vmatpush1.bf16.msra.mxu0 %v2539
        %2550 = vmatprep.subr.bf16.mxu0 0
        %2551 = vmatpush1.bf16.msra.mxu0 %v2538
        %2552 = vmatprep.subr.bf16.mxu0 0
        %2553 = vmatpush1.bf16.msra.mxu0 %v2537
        %2554 = vmatprep.subr.bf16.mxu0 0
        %2555 = vmatpush1.bf16.msra.mxu0 %v2536
        %2556 = vmatprep.subr.bf16.mxu0 0
        %2557 = vmatpush1.bf16.msra.mxu0 %v2535
        %2558 = vmatprep.subr.bf16.mxu0 0
        %2559 = vmatpush1.bf16.msra.mxu0 %v2534
        %2560 = vmatprep.subr.bf16.mxu0 0
        %2561 = vmatpush1.bf16.msra.mxu0 %v2533
        %2562 = vmatprep.subr.bf16.mxu0 0
        %2563 = vmatpush1.bf16.msra.mxu0 %v2532
        %2564 = vmatprep.subr.bf16.mxu0 0
        %2565 = vmatpush2.bf16.msra.mxu0 0
        %2566 = vmatprep.subr.bf16.mxu0 0
        %2567 = vmatpush2.bf16.msra.mxu0 0
        %2568 = vmatprep.subr.bf16.mxu0 0
        %2569 = vmatpush2.bf16.msra.mxu0 0
        %2570 = vmatprep.subr.bf16.mxu0 0
        %2571 = vmatpush2.bf16.msra.mxu0 0
        %2572 = vmatprep.subr.bf16.mxu0 0
        %2573 = vmatpush2.bf16.msra.mxu0 0
        %2574 = vmatprep.subr.bf16.mxu0 0
        %2575 = vmatpush2.bf16.msra.mxu0 0
        %2576 = vmatprep.subr.bf16.mxu0 0
        %2577 = vmatpush2.bf16.msra.mxu0 0
        %2578 = vmatprep.subr.bf16.mxu0 0
        %2579 = vmatpush2.bf16.msra.mxu0 0
        %2580 = vmatprep.mubr.bf16.mxu0 0
        %2581 = vmatmul.mubr.bf16.gmra.mxu0 %v2475
        %v2582 = vpop.f32.mrf.mxu0
        %v2583 = vadd.f32 %v2498, %v2582
        %v2584 = vpop.f32.mrf.mxu0
        %v2585 = vpop.f32.mrf.mxu0
        %v2586 = vadd.f32 %v2498, %v2585
        %v2587 = vpop.f32.mrf.mxu0
        %2588 = vmatprep.mubr.bf16.mxu0 0
        %2589 = vmatmul.mubr.bf16.gmra.mxu0 %v2476
        %v2590 = vpop.f32.mrf.mxu0
        %v2591 = vadd.f32 %v2498, %v2590
        %v2592 = vpop.f32.mrf.mxu0
        %v2593 = vpop.f32.mrf.mxu0
        %v2594 = vadd.f32 %v2498, %v2593
        %v2595 = vpop.f32.mrf.mxu0
        %2596 = vdwg.mxu0
        %v2597 = vadd.f32 %v2583, %v622
        %v2598 = vadd.f32 %v2586, %v623
        %v2599 = vadd.f32 %v2591, %v624
        %v2600 = vadd.f32 %v2594, %v625
        %v2601 = vld [vmem:[%s7] sm:$0x1]
        %v2602 = vld [vmem:[%s8] sm:$0x1]
        %2603 = vadd.xlane.f32.xlu0 %v2597
        %v2604 = vpop.xlane.xlu0 %2603
        %2605 = vadd.xlane.f32.xlu0 %v2598
        %v2606 = vpop.xlane.xlu0 %2605
        %2607 = vadd.xlane.f32.xlu0 %v2599
        %v2608 = vpop.xlane.xlu0 %2607
        %2609 = vadd.xlane.f32.xlu0 %v2600
        %v2610 = vpop.xlane.xlu0 %2609
        %v2611 = vrcp.pop 128.0
        %v2612 = vmul.f32 %v2604, %v2611
        %v2613 = vmul.f32 %v2606, %v2611
        %v2614 = vmul.f32 %v2608, %v2611
        %v2615 = vmul.f32 %v2610, %v2611
        %v2616 = vsub.f32 %v2597, %v2612
        %v2617 = vsub.f32 %v2598, %v2613
        %v2618 = vsub.f32 %v2599, %v2614
        %v2619 = vsub.f32 %v2600, %v2615
        %v2620 = vmul.f32 %v2616, %v2616
        %v2621 = vmul.f32 %v2617, %v2617
        %v2622 = vmul.f32 %v2618, %v2618
        %v2623 = vmul.f32 %v2619, %v2619
        %2624 = vadd.xlane.f32.xlu0 %v2620
        %v2625 = vpop.xlane.xlu0 %2624
        %2626 = vadd.xlane.f32.xlu0 %v2621
        %v2627 = vpop.xlane.xlu0 %2626
        %2628 = vadd.xlane.f32.xlu0 %v2622
        %v2629 = vpop.xlane.xlu0 %2628
        %2630 = vadd.xlane.f32.xlu0 %v2623
        %v2631 = vpop.xlane.xlu0 %2630
        %v2632 = vmul.f32 %v2625, %v2611
        %v2633 = vmul.f32 %v2627, %v2611
        %v2634 = vmul.f32 %v2629, %v2611
        %v2635 = vmul.f32 %v2631, %v2611
        %v2636 = vadd.f32 %v2632, 1e-12
        %v2637 = vadd.f32 %v2633, 1e-12
        %v2638 = vadd.f32 %v2634, 1e-12
        %v2639 = vadd.f32 %v2635, 1e-12
        %v2640 = vrsqrt.pop %v2636
        %v2641 = vrsqrt.pop %v2637
        %v2642 = vrsqrt.pop %v2638
        %v2643 = vrsqrt.pop %v2639
        %v2644 = vmul.f32 %v2616, %v2640
        %v2645 = vmul.f32 %v2617, %v2641
        %v2646 = vmul.f32 %v2618, %v2642
        %v2647 = vmul.f32 %v2619, %v2643
        %v2649 = vlaneseq
        %v2650 = vshrl.u32 %v2649, 7
        %v2651 = vsub.s32 0, %v2650
        %v2652 = vrot.slane %v2601, %v2651
        %v2654 = vmul.f32 %v2644, %v2652
        %v2655 = vmul.f32 %v2645, %v2652
        %v2656 = vmul.f32 %v2646, %v2652
        %v2657 = vmul.f32 %v2647, %v2652
        %v2659 = vlaneseq
        %v2660 = vshrl.u32 %v2659, 7
        %v2661 = vsub.s32 0, %v2660
        %v2662 = vrot.slane %v2602, %v2661
        %v2664 = vadd.f32 %v2654, %v2662
        %v2665 = vadd.f32 %v2655, %v2662
        %v2666 = vadd.f32 %v2656, %v2662
        %v2667 = vadd.f32 %v2657, %v2662
        %v2668 = vpack.c.bf16 %v2665, %v2664
        %v2669 = vpack.c.bf16 %v2667, %v2666
        %v2670 = vld [vmem:[#allocation11] sm:$0xff]
        %v2671 = vld [vmem:[#allocation11 + $0x8] sm:$0xff]
        %v2672 = vld [vmem:[#allocation11 + $0x10] sm:$0xff]
        %v2673 = vld [vmem:[#allocation11 + $0x18] sm:$0xff]
        %v2674 = vld [vmem:[#allocation11 + $0x20] sm:$0xff]
        %v2675 = vld [vmem:[#allocation11 + $0x28] sm:$0xff]
        %v2676 = vld [vmem:[#allocation11 + $0x30] sm:$0xff]
        %v2677 = vld [vmem:[#allocation11 + $0x38] sm:$0xff]
        %v2678 = vld [vmem:[#allocation11 + $0x40] sm:$0xff]
        %v2679 = vld [vmem:[#allocation11 + $0x48] sm:$0xff]
        %v2680 = vld [vmem:[#allocation11 + $0x50] sm:$0xff]
        %v2681 = vld [vmem:[#allocation11 + $0x58] sm:$0xff]
        %v2682 = vld [vmem:[#allocation11 + $0x60] sm:$0xff]
        %v2683 = vld [vmem:[#allocation11 + $0x68] sm:$0xff]
        %v2684 = vld [vmem:[#allocation11 + $0x70] sm:$0xff]
        %v2685 = vld [vmem:[#allocation11 + $0x78] sm:$0xff]
        %v2686 = vld [vmem:[%s10] sm:$0x3]
        %v2688 = vlaneseq
        %v2689 = vshrl.u32 %v2688, 7
        %v2690 = vsub.s32 0, %v2689
        %v2691 = vrot.slane %v2686, %v2690
        %v2692 = vlaneseq
        %v2693 = vshrl.u32 %v2692, 7
        %v2694 = vsub.s32 1, %v2693
        %v2695 = vrot.slane %v2686, %v2694
        %v2714 = vunpack.c.l.b16 %v2670
        %v2715 = vunpack.c.h.b16 %v2670
        %v2716 = vunpack.c.l.b16 %v2671
        %v2717 = vunpack.c.h.b16 %v2671
        %v2718 = vunpack.c.l.b16 %v2672
        %v2719 = vunpack.c.h.b16 %v2672
        %v2720 = vunpack.c.l.b16 %v2673
        %v2721 = vunpack.c.h.b16 %v2673
        %v2722 = vunpack.c.l.b16 %v2674
        %v2723 = vunpack.c.h.b16 %v2674
        %v2724 = vunpack.c.l.b16 %v2675
        %v2725 = vunpack.c.h.b16 %v2675
        %v2726 = vunpack.c.l.b16 %v2676
        %v2727 = vunpack.c.h.b16 %v2676
        %v2728 = vunpack.c.l.b16 %v2677
        %v2729 = vunpack.c.h.b16 %v2677
        %v2730 = vunpack.c.l.b16 %v2678
        %v2731 = vunpack.c.h.b16 %v2678
        %v2732 = vunpack.c.l.b16 %v2679
        %v2733 = vunpack.c.h.b16 %v2679
        %v2734 = vunpack.c.l.b16 %v2680
        %v2735 = vunpack.c.h.b16 %v2680
        %v2736 = vunpack.c.l.b16 %v2681
        %v2737 = vunpack.c.h.b16 %v2681
        %v2738 = vunpack.c.l.b16 %v2682
        %v2739 = vunpack.c.h.b16 %v2682
        %v2740 = vunpack.c.l.b16 %v2683
        %v2741 = vunpack.c.h.b16 %v2683
        %v2742 = vunpack.c.l.b16 %v2684
        %v2743 = vunpack.c.h.b16 %v2684
        %v2744 = vunpack.c.l.b16 %v2685
        %v2745 = vunpack.c.h.b16 %v2685
        %v2746 = vpack.c.b16 %v2716, %v2714
        %v2747 = vpack.c.b16 %v2717, %v2715
        %v2748 = vpack.c.b16 %v2720, %v2718
        %v2749 = vpack.c.b16 %v2721, %v2719
        %v2750 = vpack.c.b16 %v2724, %v2722
        %v2751 = vpack.c.b16 %v2725, %v2723
        %v2752 = vpack.c.b16 %v2728, %v2726
        %v2753 = vpack.c.b16 %v2729, %v2727
        %v2754 = vpack.c.b16 %v2732, %v2730
        %v2755 = vpack.c.b16 %v2733, %v2731
        %v2756 = vpack.c.b16 %v2736, %v2734
        %v2757 = vpack.c.b16 %v2737, %v2735
        %v2758 = vpack.c.b16 %v2740, %v2738
        %v2759 = vpack.c.b16 %v2741, %v2739
        %v2760 = vpack.c.b16 %v2744, %v2742
        %v2761 = vpack.c.b16 %v2745, %v2743
        %2778 = vmatprep.subr.bf16.mxu0 %v2761
        %2779 = vmatpush1.bf16.msra.mxu0 %v2760
        %2780 = vmatprep.subr.bf16.mxu0 %v2759
        %2781 = vmatpush1.bf16.msra.mxu0 %v2758
        %2782 = vmatprep.subr.bf16.mxu0 %v2757
        %2783 = vmatpush1.bf16.msra.mxu0 %v2756
        %2784 = vmatprep.subr.bf16.mxu0 %v2755
        %2785 = vmatpush1.bf16.msra.mxu0 %v2754
        %2786 = vmatprep.subr.bf16.mxu0 %v2753
        %2787 = vmatpush1.bf16.msra.mxu0 %v2752
        %2788 = vmatprep.subr.bf16.mxu0 %v2751
        %2789 = vmatpush1.bf16.msra.mxu0 %v2750
        %2790 = vmatprep.subr.bf16.mxu0 %v2749
        %2791 = vmatpush1.bf16.msra.mxu0 %v2748
        %2792 = vmatprep.subr.bf16.mxu0 %v2747
        %2793 = vmatpush1.bf16.msra.mxu0 %v2746
        %2794 = vmatprep.subr.bf16.mxu0 0
        %2795 = vmatpush2.bf16.msra.mxu0 0
        %2796 = vmatprep.subr.bf16.mxu0 0
        %2797 = vmatpush2.bf16.msra.mxu0 0
        %2798 = vmatprep.subr.bf16.mxu0 0
        %2799 = vmatpush2.bf16.msra.mxu0 0
        %2800 = vmatprep.subr.bf16.mxu0 0
        %2801 = vmatpush2.bf16.msra.mxu0 0
        %2802 = vmatprep.subr.bf16.mxu0 0
        %2803 = vmatpush2.bf16.msra.mxu0 0
        %2804 = vmatprep.subr.bf16.mxu0 0
        %2805 = vmatpush2.bf16.msra.mxu0 0
        %2806 = vmatprep.subr.bf16.mxu0 0
        %2807 = vmatpush2.bf16.msra.mxu0 0
        %2808 = vmatprep.subr.bf16.mxu0 0
        %2809 = vmatpush2.bf16.msra.mxu0 0
        %2810 = vmatprep.mubr.bf16.mxu0 0
        %2811 = vmatmul.mubr.bf16.gmra.mxu0 %v2668
        %v2812 = vpop.f32.mrf.mxu0
        %v2813 = vadd.f32 %v2691, %v2812
        %v2814 = vpop.f32.mrf.mxu0
        %v2815 = vadd.f32 %v2695, %v2814
        %v2816 = vpop.f32.mrf.mxu0
        %v2817 = vadd.f32 %v2691, %v2816
        %v2818 = vpop.f32.mrf.mxu0
        %v2819 = vadd.f32 %v2695, %v2818
        %2820 = vmatprep.mubr.bf16.mxu0 0
        %2821 = vmatmul.mubr.bf16.gmra.mxu0 %v2669
        %v2822 = vpop.f32.mrf.mxu0
        %v2823 = vadd.f32 %v2691, %v2822
        %v2824 = vpop.f32.mrf.mxu0
        %v2825 = vadd.f32 %v2695, %v2824
        %v2826 = vpop.f32.mrf.mxu0
        %v2827 = vadd.f32 %v2691, %v2826
        %v2828 = vpop.f32.mrf.mxu0
        %v2829 = vadd.f32 %v2695, %v2828
        %2830 = vdwg.mxu0
        %v2831 = vmul.f32 %v2813, 0.5
        %v2832 = vmul.f32 %v2815, 0.5
        %v2833 = vmul.f32 %v2817, 0.5
        %v2834 = vmul.f32 %v2819, 0.5
        %v2835 = vmul.f32 %v2823, 0.5
        %v2836 = vmul.f32 %v2825, 0.5
        %v2837 = vmul.f32 %v2827, 0.5
        %v2838 = vmul.f32 %v2829, 0.5
        %v2839 = vmul.f32 %v2813, 0.70710677
        %v2840 = vmul.f32 %v2815, 0.70710677
        %v2841 = vmul.f32 %v2817, 0.70710677
        %v2842 = vmul.f32 %v2819, 0.70710677
        %v2843 = vmul.f32 %v2823, 0.70710677
        %v2844 = vmul.f32 %v2825, 0.70710677
        %v2845 = vmul.f32 %v2827, 0.70710677
        %v2846 = vmul.f32 %v2829, 0.70710677
        %v2847 = vand.u32 2147483647, %v2839
        %v2848 = vand.u32 2147483647, %v2840
        %v2849 = vand.u32 2147483647, %v2841
        %v2850 = vand.u32 2147483647, %v2842
        %v2851 = vand.u32 2147483647, %v2843
        %v2852 = vand.u32 2147483647, %v2844
        %v2853 = vand.u32 2147483647, %v2845
        %v2854 = vand.u32 2147483647, %v2846
        %v2855 = vmul.f32 %v2847, 0.3275911
        %v2856 = vmul.f32 %v2848, 0.3275911
        %v2857 = vmul.f32 %v2849, 0.3275911
        %v2858 = vmul.f32 %v2850, 0.3275911
        %v2859 = vmul.f32 %v2851, 0.3275911
        %v2860 = vmul.f32 %v2852, 0.3275911
        %v2861 = vmul.f32 %v2853, 0.3275911
        %v2862 = vmul.f32 %v2854, 0.3275911
        %v2863 = vadd.f32 %v2855, 1.0
        %v2864 = vadd.f32 %v2856, 1.0
        %v2865 = vadd.f32 %v2857, 1.0
        %v2866 = vadd.f32 %v2858, 1.0
        %v2867 = vadd.f32 %v2859, 1.0
        %v2868 = vadd.f32 %v2860, 1.0
        %v2869 = vadd.f32 %v2861, 1.0
        %v2870 = vadd.f32 %v2862, 1.0
        %v2871 = vrcp.pop %v2863
        %v2872 = vmul.f32 1.0, %v2871
        %v2873 = vrcp.pop %v2864
        %v2874 = vmul.f32 1.0, %v2873
        %v2875 = vrcp.pop %v2865
        %v2876 = vmul.f32 1.0, %v2875
        %v2877 = vrcp.pop %v2866
        %v2878 = vmul.f32 1.0, %v2877
        %v2879 = vrcp.pop %v2867
        %v2880 = vmul.f32 1.0, %v2879
        %v2881 = vrcp.pop %v2868
        %v2882 = vmul.f32 1.0, %v2881
        %v2883 = vrcp.pop %v2869
        %v2884 = vmul.f32 1.0, %v2883
        %v2885 = vrcp.pop %v2870
        %v2886 = vmul.f32 1.0, %v2885
        %v2887 = vmul.f32 %v2872, 1.0614054
        %v2888 = vmul.f32 %v2874, 1.0614054
        %v2889 = vmul.f32 %v2876, 1.0614054
        %v2890 = vmul.f32 %v2878, 1.0614054
        %v2891 = vmul.f32 %v2880, 1.0614054
        %v2892 = vmul.f32 %v2882, 1.0614054
        %v2893 = vmul.f32 %v2884, 1.0614054
        %v2894 = vmul.f32 %v2886, 1.0614054
        %v2895 = vadd.f32 %v2887, -1.4531521
        %v2896 = vadd.f32 %v2888, -1.4531521
        %v2897 = vadd.f32 %v2889, -1.4531521
        %v2898 = vadd.f32 %v2890, -1.4531521
        %v2899 = vadd.f32 %v2891, -1.4531521
        %v2900 = vadd.f32 %v2892, -1.4531521
        %v2901 = vadd.f32 %v2893, -1.4531521
        %v2902 = vadd.f32 %v2894, -1.4531521
        %v2903 = vmul.f32 %v2895, %v2872
        %v2904 = vmul.f32 %v2896, %v2874
        %v2905 = vmul.f32 %v2897, %v2876
        %v2906 = vmul.f32 %v2898, %v2878
        %v2907 = vmul.f32 %v2899, %v2880
        %v2908 = vmul.f32 %v2900, %v2882
        %v2909 = vmul.f32 %v2901, %v2884
        %v2910 = vmul.f32 %v2902, %v2886
        %v2911 = vadd.f32 %v2903, 1.4214138
        %v2912 = vadd.f32 %v2904, 1.4214138
        %v2913 = vadd.f32 %v2905, 1.4214138
        %v2914 = vadd.f32 %v2906, 1.4214138
        %v2915 = vadd.f32 %v2907, 1.4214138
        %v2916 = vadd.f32 %v2908, 1.4214138
        %v2917 = vadd.f32 %v2909, 1.4214138
        %v2918 = vadd.f32 %v2910, 1.4214138
        %v2919 = vmul.f32 %v2911, %v2872
        %v2920 = vmul.f32 %v2912, %v2874
        %v2921 = vmul.f32 %v2913, %v2876
        %v2922 = vmul.f32 %v2914, %v2878
        %v2923 = vmul.f32 %v2915, %v2880
        %v2924 = vmul.f32 %v2916, %v2882
        %v2925 = vmul.f32 %v2917, %v2884
        %v2926 = vmul.f32 %v2918, %v2886
        %v2927 = vadd.f32 %v2919, -0.28449672
        %v2928 = vadd.f32 %v2920, -0.28449672
        %v2929 = vadd.f32 %v2921, -0.28449672
        %v2930 = vadd.f32 %v2922, -0.28449672
        %v2931 = vadd.f32 %v2923, -0.28449672
        %v2932 = vadd.f32 %v2924, -0.28449672
        %v2933 = vadd.f32 %v2925, -0.28449672
        %v2934 = vadd.f32 %v2926, -0.28449672
        %v2935 = vmul.f32 %v2927, %v2872
        %v2936 = vmul.f32 %v2928, %v2874
        %v2937 = vmul.f32 %v2929, %v2876
        %v2938 = vmul.f32 %v2930, %v2878
        %v2939 = vmul.f32 %v2931, %v2880
        %v2940 = vmul.f32 %v2932, %v2882
        %v2941 = vmul.f32 %v2933, %v2884
        %v2942 = vmul.f32 %v2934, %v2886
        %v2943 = vadd.f32 %v2935, 0.2548296
        %v2944 = vadd.f32 %v2936, 0.2548296
        %v2945 = vadd.f32 %v2937, 0.2548296
        %v2946 = vadd.f32 %v2938, 0.2548296
        %v2947 = vadd.f32 %v2939, 0.2548296
        %v2948 = vadd.f32 %v2940, 0.2548296
        %v2949 = vadd.f32 %v2941, 0.2548296
        %v2950 = vadd.f32 %v2942, 0.2548296
        %v2951 = vmul.f32 %v2943, %v2872
        %v2952 = vmul.f32 %v2944, %v2874
        %v2953 = vmul.f32 %v2945, %v2876
        %v2954 = vmul.f32 %v2946, %v2878
        %v2955 = vmul.f32 %v2947, %v2880
        %v2956 = vmul.f32 %v2948, %v2882
        %v2957 = vmul.f32 %v2949, %v2884
        %v2958 = vmul.f32 %v2950, %v2886
        %v2959 = vsub.f32 0.0, %v2847
        %v2960 = vsub.f32 0.0, %v2848
        %v2961 = vsub.f32 0.0, %v2849
        %v2962 = vsub.f32 0.0, %v2850
        %v2963 = vsub.f32 0.0, %v2851
        %v2964 = vsub.f32 0.0, %v2852
        %v2965 = vsub.f32 0.0, %v2853
        %v2966 = vsub.f32 0.0, %v2854
        %v2967 = vmul.f32 %v2959, %v2847
        %v2968 = vmul.f32 %v2960, %v2848
        %v2969 = vmul.f32 %v2961, %v2849
        %v2970 = vmul.f32 %v2962, %v2850
        %v2971 = vmul.f32 %v2963, %v2851
        %v2972 = vmul.f32 %v2964, %v2852
        %v2973 = vmul.f32 %v2965, %v2853
        %v2974 = vmul.f32 %v2966, %v2854
        %v2975 = vmul.f32 %v2967, 1.442695
        %v2976 = vpow.pop %v2975
        %v2977 = vmul.f32 %v2968, 1.442695
        %v2978 = vpow.pop %v2977
        %v2979 = vmul.f32 %v2969, 1.442695
        %v2980 = vpow.pop %v2979
        %v2981 = vmul.f32 %v2970, 1.442695
        %v2982 = vpow.pop %v2981
        %v2983 = vmul.f32 %v2971, 1.442695
        %v2984 = vpow.pop %v2983
        %v2985 = vmul.f32 %v2972, 1.442695
        %v2986 = vpow.pop %v2985
        %v2987 = vmul.f32 %v2973, 1.442695
        %v2988 = vpow.pop %v2987
        %v2989 = vmul.f32 %v2974, 1.442695
        %v2990 = vpow.pop %v2989
        %v2991 = vmul.f32 %v2951, %v2976
        %v2992 = vmul.f32 %v2952, %v2978
        %v2993 = vmul.f32 %v2953, %v2980
        %v2994 = vmul.f32 %v2954, %v2982
        %v2995 = vmul.f32 %v2955, %v2984
        %v2996 = vmul.f32 %v2956, %v2986
        %v2997 = vmul.f32 %v2957, %v2988
        %v2998 = vmul.f32 %v2958, %v2990
        %v2999 = vsub.f32 1.0, %v2991
        %v3000 = vsub.f32 1.0, %v2992
        %v3001 = vsub.f32 1.0, %v2993
        %v3002 = vsub.f32 1.0, %v2994
        %v3003 = vsub.f32 1.0, %v2995
        %v3004 = vsub.f32 1.0, %v2996
        %v3005 = vsub.f32 1.0, %v2997
        %v3006 = vsub.f32 1.0, %v2998
        %vm3007 = vcmp.ge.f32.partialorder %v2839, 0.0
        %vm3008 = vcmp.ge.f32.partialorder %v2840, 0.0
        %vm3009 = vcmp.ge.f32.partialorder %v2841, 0.0
        %vm3010 = vcmp.ge.f32.partialorder %v2842, 0.0
        %vm3011 = vcmp.ge.f32.partialorder %v2843, 0.0
        %vm3012 = vcmp.ge.f32.partialorder %v2844, 0.0
        %vm3013 = vcmp.ge.f32.partialorder %v2845, 0.0
        %vm3014 = vcmp.ge.f32.partialorder %v2846, 0.0
        %v3015 = vsub.f32 0.0, %v2999
        %v3016 = vsub.f32 0.0, %v3000
        %v3017 = vsub.f32 0.0, %v3001
        %v3018 = vsub.f32 0.0, %v3002
        %v3019 = vsub.f32 0.0, %v3003
        %v3020 = vsub.f32 0.0, %v3004
        %v3021 = vsub.f32 0.0, %v3005
        %v3022 = vsub.f32 0.0, %v3006
        %v3023 = vsel %vm3007, %v2999, %v3015
        %v3024 = vsel %vm3008, %v3000, %v3016
        %v3025 = vsel %vm3009, %v3001, %v3017
        %v3026 = vsel %vm3010, %v3002, %v3018
        %v3027 = vsel %vm3011, %v3003, %v3019
        %v3028 = vsel %vm3012, %v3004, %v3020
        %v3029 = vsel %vm3013, %v3005, %v3021
        %v3030 = vsel %vm3014, %v3006, %v3022
        %v3031 = vadd.f32 %v3023, 1.0
        %v3032 = vadd.f32 %v3024, 1.0
        %v3033 = vadd.f32 %v3025, 1.0
        %v3034 = vadd.f32 %v3026, 1.0
        %v3035 = vadd.f32 %v3027, 1.0
        %v3036 = vadd.f32 %v3028, 1.0
        %v3037 = vadd.f32 %v3029, 1.0
        %v3038 = vadd.f32 %v3030, 1.0
        %v3039 = vmul.f32 %v2831, %v3031
        %v3040 = vmul.f32 %v2832, %v3032
        %v3041 = vmul.f32 %v2833, %v3033
        %v3042 = vmul.f32 %v2834, %v3034
        %v3043 = vmul.f32 %v2835, %v3035
        %v3044 = vmul.f32 %v2836, %v3036
        %v3045 = vmul.f32 %v2837, %v3037
        %v3046 = vmul.f32 %v2838, %v3038
        %v3047 = vpack.c.bf16 %v3041, %v3039
        %v3048 = vpack.c.bf16 %v3042, %v3040
        %v3049 = vpack.c.bf16 %v3045, %v3043
        %v3050 = vpack.c.bf16 %v3046, %v3044
        %v3051 = vld [vmem:[#allocation13] sm:$0xf]
        %v3052 = vld [vmem:[#allocation13 + $0x4] sm:$0xf]
        %v3053 = vld [vmem:[#allocation13 + $0x8] sm:$0xf]
        %v3054 = vld [vmem:[#allocation13 + $0xc] sm:$0xf]
        %v3055 = vld [vmem:[#allocation13 + $0x10] sm:$0xf]
        %v3056 = vld [vmem:[#allocation13 + $0x14] sm:$0xf]
        %v3057 = vld [vmem:[#allocation13 + $0x18] sm:$0xf]
        %v3058 = vld [vmem:[#allocation13 + $0x1c] sm:$0xf]
        %v3059 = vld [vmem:[#allocation13 + $0x20] sm:$0xf]
        %v3060 = vld [vmem:[#allocation13 + $0x24] sm:$0xf]
        %v3061 = vld [vmem:[#allocation13 + $0x28] sm:$0xf]
        %v3062 = vld [vmem:[#allocation13 + $0x2c] sm:$0xf]
        %v3063 = vld [vmem:[#allocation13 + $0x30] sm:$0xf]
        %v3064 = vld [vmem:[#allocation13 + $0x34] sm:$0xf]
        %v3065 = vld [vmem:[#allocation13 + $0x38] sm:$0xf]
        %v3066 = vld [vmem:[#allocation13 + $0x3c] sm:$0xf]
        %v3067 = vld [vmem:[#allocation13 + $0x40] sm:$0xf]
        %v3068 = vld [vmem:[#allocation13 + $0x44] sm:$0xf]
        %v3069 = vld [vmem:[#allocation13 + $0x48] sm:$0xf]
        %v3070 = vld [vmem:[#allocation13 + $0x4c] sm:$0xf]
        %v3071 = vld [vmem:[#allocation13 + $0x50] sm:$0xf]
        %v3072 = vld [vmem:[#allocation13 + $0x54] sm:$0xf]
        %v3073 = vld [vmem:[#allocation13 + $0x58] sm:$0xf]
        %v3074 = vld [vmem:[#allocation13 + $0x5c] sm:$0xf]
        %v3075 = vld [vmem:[#allocation13 + $0x60] sm:$0xf]
        %v3076 = vld [vmem:[#allocation13 + $0x64] sm:$0xf]
        %v3077 = vld [vmem:[#allocation13 + $0x68] sm:$0xf]
        %v3078 = vld [vmem:[#allocation13 + $0x6c] sm:$0xf]
        %v3079 = vld [vmem:[#allocation13 + $0x70] sm:$0xf]
        %v3080 = vld [vmem:[#allocation13 + $0x74] sm:$0xf]
        %v3081 = vld [vmem:[#allocation13 + $0x78] sm:$0xf]
        %v3082 = vld [vmem:[#allocation13 + $0x7c] sm:$0xf]
        %v3083 = vld [vmem:[%s12] sm:$0x1]
        %v3085 = vlaneseq
        %v3086 = vshrl.u32 %v3085, 7
        %v3087 = vsub.s32 0, %v3086
        %v3088 = vrot.slane %v3083, %v3087
        %v3122 = vunpack.c.l.b16 %v3051
        %v3123 = vunpack.c.l.b16 %v3052
        %v3124 = vunpack.c.l.b16 %v3053
        %v3125 = vunpack.c.l.b16 %v3054
        %v3126 = vunpack.c.l.b16 %v3055
        %v3127 = vunpack.c.l.b16 %v3056
        %v3128 = vunpack.c.l.b16 %v3057
        %v3129 = vunpack.c.l.b16 %v3058
        %v3130 = vunpack.c.l.b16 %v3059
        %v3131 = vunpack.c.l.b16 %v3060
        %v3132 = vunpack.c.l.b16 %v3061
        %v3133 = vunpack.c.l.b16 %v3062
        %v3134 = vunpack.c.l.b16 %v3063
        %v3135 = vunpack.c.l.b16 %v3064
        %v3136 = vunpack.c.l.b16 %v3065
        %v3137 = vunpack.c.l.b16 %v3066
        %v3138 = vunpack.c.l.b16 %v3067
        %v3139 = vunpack.c.l.b16 %v3068
        %v3140 = vunpack.c.l.b16 %v3069
        %v3141 = vunpack.c.l.b16 %v3070
        %v3142 = vunpack.c.l.b16 %v3071
        %v3143 = vunpack.c.l.b16 %v3072
        %v3144 = vunpack.c.l.b16 %v3073
        %v3145 = vunpack.c.l.b16 %v3074
        %v3146 = vunpack.c.l.b16 %v3075
        %v3147 = vunpack.c.l.b16 %v3076
        %v3148 = vunpack.c.l.b16 %v3077
        %v3149 = vunpack.c.l.b16 %v3078
        %v3150 = vunpack.c.l.b16 %v3079
        %v3151 = vunpack.c.l.b16 %v3080
        %v3152 = vunpack.c.l.b16 %v3081
        %v3153 = vunpack.c.l.b16 %v3082
        %v3154 = vpack.c.b16 %v3123, %v3122
        %v3155 = vpack.c.b16 %v3125, %v3124
        %v3156 = vpack.c.b16 %v3127, %v3126
        %v3157 = vpack.c.b16 %v3129, %v3128
        %v3158 = vpack.c.b16 %v3131, %v3130
        %v3159 = vpack.c.b16 %v3133, %v3132
        %v3160 = vpack.c.b16 %v3135, %v3134
        %v3161 = vpack.c.b16 %v3137, %v3136
        %v3162 = vpack.c.b16 %v3139, %v3138
        %v3163 = vpack.c.b16 %v3141, %v3140
        %v3164 = vpack.c.b16 %v3143, %v3142
        %v3165 = vpack.c.b16 %v3145, %v3144
        %v3166 = vpack.c.b16 %v3147, %v3146
        %v3167 = vpack.c.b16 %v3149, %v3148
        %v3168 = vpack.c.b16 %v3151, %v3150
        %v3169 = vpack.c.b16 %v3153, %v3152
        %3186 = vmatprep.subr.bf16.mxu0 0
        %3187 = vmatpush1.bf16.msra.mxu0 %v3161
        %3188 = vmatprep.subr.bf16.mxu0 0
        %3189 = vmatpush1.bf16.msra.mxu0 %v3160
        %3190 = vmatprep.subr.bf16.mxu0 0
        %3191 = vmatpush1.bf16.msra.mxu0 %v3159
        %3192 = vmatprep.subr.bf16.mxu0 0
        %3193 = vmatpush1.bf16.msra.mxu0 %v3158
        %3194 = vmatprep.subr.bf16.mxu0 0
        %3195 = vmatpush1.bf16.msra.mxu0 %v3157
        %3196 = vmatprep.subr.bf16.mxu0 0
        %3197 = vmatpush1.bf16.msra.mxu0 %v3156
        %3198 = vmatprep.subr.bf16.mxu0 0
        %3199 = vmatpush1.bf16.msra.mxu0 %v3155
        %3200 = vmatprep.subr.bf16.mxu0 0
        %3201 = vmatpush1.bf16.msra.mxu0 %v3154
        %3202 = vmatprep.subr.bf16.mxu0 0
        %3203 = vmatpush2.bf16.msra.mxu0 %v3169
        %3204 = vmatprep.subr.bf16.mxu0 0
        %3205 = vmatpush2.bf16.msra.mxu0 %v3168
        %3206 = vmatprep.subr.bf16.mxu0 0
        %3207 = vmatpush2.bf16.msra.mxu0 %v3167
        %3208 = vmatprep.subr.bf16.mxu0 0
        %3209 = vmatpush2.bf16.msra.mxu0 %v3166
        %3210 = vmatprep.subr.bf16.mxu0 0
        %3211 = vmatpush2.bf16.msra.mxu0 %v3165
        %3212 = vmatprep.subr.bf16.mxu0 0
        %3213 = vmatpush2.bf16.msra.mxu0 %v3164
        %3214 = vmatprep.subr.bf16.mxu0 0
        %3215 = vmatpush2.bf16.msra.mxu0 %v3163
        %3216 = vmatprep.subr.bf16.mxu0 0
        %3217 = vmatpush2.bf16.msra.mxu0 %v3162
        %3218 = vmatprep.mubr.bf16.mxu0 %v3048
        %3219 = vmatmul.mubr.bf16.gmra.mxu0 %v3047
        %v3220 = vpop.f32.mrf.mxu0
        %v3221 = vadd.f32 %v3088, %v3220
        %v3222 = vpop.f32.mrf.mxu0
        %v3223 = vpop.f32.mrf.mxu0
        %v3224 = vadd.f32 %v3088, %v3223
        %v3225 = vpop.f32.mrf.mxu0
        %3226 = vmatprep.mubr.bf16.mxu0 %v3050
        %3227 = vmatmul.mubr.bf16.gmra.mxu0 %v3049
        %v3228 = vpop.f32.mrf.mxu0
        %v3229 = vadd.f32 %v3088, %v3228
        %v3230 = vpop.f32.mrf.mxu0
        %v3231 = vpop.f32.mrf.mxu0
        %v3232 = vadd.f32 %v3088, %v3231
        %v3233 = vpop.f32.mrf.mxu0
        %3234 = vdwg.mxu0
        %v3235 = vadd.f32 %v3221, %v2664
        %v3236 = vadd.f32 %v3224, %v2665
        %v3237 = vadd.f32 %v3229, %v2666
        %v3238 = vadd.f32 %v3232, %v2667
        %v3239 = vld [vmem:[%s13] sm:$0x1]
        %v3240 = vld [vmem:[%s14] sm:$0x1]
        %3241 = vadd.xlane.f32.xlu0 %v3235
        %v3242 = vpop.xlane.xlu0 %3241
        %3243 = vadd.xlane.f32.xlu0 %v3236
        %v3244 = vpop.xlane.xlu0 %3243
        %3245 = vadd.xlane.f32.xlu0 %v3237
        %v3246 = vpop.xlane.xlu0 %3245
        %3247 = vadd.xlane.f32.xlu0 %v3238
        %v3248 = vpop.xlane.xlu0 %3247
        %v3249 = vmul.f32 %v3242, %v2611
        %v3250 = vmul.f32 %v3244, %v2611
        %v3251 = vmul.f32 %v3246, %v2611
        %v3252 = vmul.f32 %v3248, %v2611
        %v3253 = vsub.f32 %v3235, %v3249
        %v3254 = vsub.f32 %v3236, %v3250
        %v3255 = vsub.f32 %v3237, %v3251
        %v3256 = vsub.f32 %v3238, %v3252
        %v3257 = vmul.f32 %v3253, %v3253
        %v3258 = vmul.f32 %v3254, %v3254
        %v3259 = vmul.f32 %v3255, %v3255
        %v3260 = vmul.f32 %v3256, %v3256
        %3261 = vadd.xlane.f32.xlu0 %v3257
        %v3262 = vpop.xlane.xlu0 %3261
        %3263 = vadd.xlane.f32.xlu0 %v3258
        %v3264 = vpop.xlane.xlu0 %3263
        %3265 = vadd.xlane.f32.xlu0 %v3259
        %v3266 = vpop.xlane.xlu0 %3265
        %3267 = vadd.xlane.f32.xlu0 %v3260
        %v3268 = vpop.xlane.xlu0 %3267
        %v3269 = vmul.f32 %v3262, %v2611
        %v3270 = vmul.f32 %v3264, %v2611
        %v3271 = vmul.f32 %v3266, %v2611
        %v3272 = vmul.f32 %v3268, %v2611
        %v3273 = vadd.f32 %v3269, 1e-12
        %v3274 = vadd.f32 %v3270, 1e-12
        %v3275 = vadd.f32 %v3271, 1e-12
        %v3276 = vadd.f32 %v3272, 1e-12
        %v3277 = vrsqrt.pop %v3273
        %v3278 = vrsqrt.pop %v3274
        %v3279 = vrsqrt.pop %v3275
        %v3280 = vrsqrt.pop %v3276
        %v3281 = vmul.f32 %v3253, %v3277
        %v3282 = vmul.f32 %v3254, %v3278
        %v3283 = vmul.f32 %v3255, %v3279
        %v3284 = vmul.f32 %v3256, %v3280
        %v3286 = vlaneseq
        %v3287 = vshrl.u32 %v3286, 7
        %v3288 = vsub.s32 0, %v3287
        %v3289 = vrot.slane %v3239, %v3288
        %v3291 = vmul.f32 %v3281, %v3289
        %v3292 = vmul.f32 %v3282, %v3289
        %v3293 = vmul.f32 %v3283, %v3289
        %v3294 = vmul.f32 %v3284, %v3289
        %v3296 = vlaneseq
        %v3297 = vshrl.u32 %v3296, 7
        %v3298 = vsub.s32 0, %v3297
        %v3299 = vrot.slane %v3240, %v3298
        %v3301 = vadd.f32 %v3291, %v3299
        %v3302 = vadd.f32 %v3292, %v3299
        %v3303 = vadd.f32 %v3293, %v3299
        %v3304 = vadd.f32 %v3294, %v3299
        %3305 = vst [vmem:[%s618] sm:$0xff] %v3301
        %3306 = vst [vmem:[%s618 + $0x8] sm:$0xff] %v3302
        %3307 = vst [vmem:[%s618 + $0x10] sm:$0xff] %v3303
        %3308 = vst [vmem:[%s618 + $0x18] sm:$0xff] %v3304
        %s3309 = sand.u32 %s370, 1
        %s3310 = scalar_lea.sflag [#allocation4], %s3309
        %s3311 = sand.u32 %s370, 1
        %s3312 = smul.addr %s3311, 32
        %s3313 = scalar_lea.vmem [#allocation14], %s3312
        // Predicated region
        $region109: #{tpu_custom_call.1} parent=79 // pred_check
          %p3314 = pneg %p380
        $region110: #{tpu_custom_call.1} parent=79 // pred_check_branch
          %3316 = sbr.rel (%p3314) target = $region112
        $region111: #{tpu_custom_call.1} parent=79 // pred_region
          %s3317 = smul.u32 4, %s37
          %s3319 = ssub.s32 512, 512
          %3320 = vsyncadd %s3310, %s3319
          %s3321 = smul.addr %s3317, 128
          %s3322 = scalar_lea.hbm %s15, %s3321
          %s3323 = sshll.u32 %s3313, 4
          %s3324 = int_to_ptr.vmem [resolvable:$true] %s3323
          %3329 = dma.vmem_to_hbm [thread:$0]  %s3324, 512, %s3322, %s3310, 128, 128, 8
        $region112: #{tpu_custom_call.1} parent=79 // pred_fallthru
          _
      $region80: #{tpu_custom_call.1} parent=5 // pred_fallthru
        _
      %p3330 = scmp.le.s32.totalorder 2, %s32
      // Predicated region
      $region113: #{tpu_custom_call.1} parent=5 // pred_check
        %p3331 = pneg %p3330
      $region114: #{tpu_custom_call.1} parent=5 // pred_check_branch
        %3333 = sbr.rel (%p3331) target = $region116
      $region115: #{tpu_custom_call.1} parent=5 // pred_region
        %s3334 = ssub.s32 %s32, 2
        // Predicated region
        $region117: #{tpu_custom_call.1} parent=115 // pred_check
          %p3335 = pneg %p386
        $region118: #{tpu_custom_call.1} parent=115 // pred_check_branch
          %3337 = sbr.rel (%p3335) target = $region120
        $region119: #{tpu_custom_call.1} parent=115 // pred_region
          %s3338 = sand.u32 %s371, 1
          %s3339 = scalar_lea.sflag [#allocation4], %s3338
          %s3340 = sand.u32 %s371, 1
          %s3341 = smul.addr %s3340, 32
          %s3342 = scalar_lea.vmem [#allocation14], %s3341
          %3343 = dma.done %s3339, 512
        $region120: #{tpu_custom_call.1} parent=115 // pred_fallthru
          _
      $region116: #{tpu_custom_call.1} parent=5 // pred_fallthru
        _
    $region6: #{tpu_custom_call.1} parent=1 // loop_footer
      %s36 = sadd.s32 1, %s32
    $region7: #{tpu_custom_call.1} parent=1 // loop_footer_branch
      %31 = sbr.rel target = $region3
    $region8: #{tpu_custom_call.1} parent=1 // loop_exit
      _
    %3344 = vsyncpa [#allocation3], 1
    %s3345 = scalar_lea.sflag [#allocation3], 1
    %3346 = vsyncpa %s3345, 1
    %3347 = vsyncpa [#allocation6], 1
    %s3348 = scalar_lea.sflag [#allocation6], 1
    %3349 = vsyncpa %s3348, 1
    %3350 = vsyncpa [#allocation9], 1
    %3351 = vsyncpa [#allocation12], 1
    %3352 = vsyncpa [#allocation4], 1
    %s3353 = scalar_lea.sflag [#allocation4], 1
    %3354 = vsyncpa %s3353, 1

</llo_original>
